<compile_context>
chip_gen: v7x
topology: tpu7x:2x2x1
jax: 0.10.0
libtpu: 0.0.40
codegen_flags: <defaults>
</compile_context>

<pallas_src>
import functools
import math

import jax
import jax.numpy as jnp
from jax.experimental import pallas as pl
from jax.experimental.pallas import tpu as pltpu


# ----------------------------- in-kernel helpers -----------------------------

def _layernorm(x, g, b, eps=1e-5):
    # x: (N, D), g/b: (1, D) -- matches torch.nn.LayerNorm (biased variance)
    mu = jnp.mean(x, axis=-1, keepdims=True)
    xc = x - mu
    var = jnp.mean(xc * xc, axis=-1, keepdims=True)
    return xc * jax.lax.rsqrt(var + eps) * g + b


def _gelu_exact(x):
    # torch nn.GELU() default = exact erf formulation
    return 0.5 * x * (1.0 + jax.lax.erf(x * (1.0 / math.sqrt(2.0))))


def _attention(qp, kp, vp, w_proj_heads, num_heads):
    """Multi-head attention + output projection.

    qp: (Bb, Nq, D) bf16 (scale already folded into the projection weights)
    kp, vp: (Bb, Nk, D) bf16
    w_proj_heads: (H, hd, D) bf16 (head-major output-projection weights)
    Returns (Bb*Nq, D) f32.
    """
    bb, nq, d = qp.shape
    hd = d // num_heads
    m = bb * nq
    out = jnp.zeros((m, d), jnp.float32)
    for h in range(num_heads):
        sl = slice(h * hd, (h + 1) * hd)
        # Batched over the Bb block (leading batch dim) -> fewer, larger MXU ops.
        s = jnp.einsum("bqe,bke->bqk", qp[:, :, sl], kp[:, :, sl],
                       preferred_element_type=jnp.float32)
        s = s - jnp.max(s, axis=-1, keepdims=True)
        p = jnp.exp(s)
        p = p * pl.reciprocal(jnp.sum(p, axis=-1, keepdims=True), approx=True)
        oh = jnp.einsum("bqk,bke->bqe", p.astype(jnp.bfloat16), vp[:, :, sl],
                        preferred_element_type=jnp.float32)
        # Accumulate the output projection per head (no lane-dim concatenate).
        out = out + jnp.dot(oh.reshape(m, hd).astype(jnp.bfloat16),
                            w_proj_heads[h],
                            preferred_element_type=jnp.float32)
    return out


# --------------------------------- kernel ------------------------------------

def decoder_block_kernel(
    q_ref, kv_ref,
    n1g, n1b, w_qkv, w_proj1h,
    qn2g, qn2b, kvn2g, kvn2b, w_q, w_kv, w_proj2h,
    n3g, n3b, w_fc1, b_fc1, w_fc2, b_fc2,
    o_ref,
    *, num_heads,
):
    bb, nq, d = q_ref.shape
    _, nk, _ = kv_ref.shape
    m, mk = bb * nq, bb * nk

    q2 = q_ref[...].reshape(m, d)          # residual stream, f32
    kv2 = kv_ref[...].reshape(mk, d)

    # ---- self-attention residual branch ----
    x1 = _layernorm(q2, n1g[...], n1b[...]).astype(jnp.bfloat16)
    qkv = jnp.dot(x1, w_qkv[...], preferred_element_type=jnp.float32)   # (m, 3D)
    qkv = qkv.astype(jnp.bfloat16).reshape(bb, nq, 3 * d)
    sa = _attention(qkv[:, :, :d], qkv[:, :, d:2 * d], qkv[:, :, 2 * d:],
                    w_proj1h[...], num_heads)
    q2 = q2 + sa

    # ---- cross-attention residual branch ----
    qn = _layernorm(q2, qn2g[...], qn2b[...]).astype(jnp.bfloat16)
    kvn = _layernorm(kv2, kvn2g[...], kvn2b[...]).astype(jnp.bfloat16)
    qp = jnp.dot(qn, w_q[...], preferred_element_type=jnp.float32)       # (m, D)
    kvp = jnp.dot(kvn, w_kv[...], preferred_element_type=jnp.float32)    # (mk, 2D)
    qp = qp.astype(jnp.bfloat16).reshape(bb, nq, d)
    kvp = kvp.astype(jnp.bfloat16).reshape(bb, nk, 2 * d)
    ca = _attention(qp, kvp[:, :, :d], kvp[:, :, d:],
                    w_proj2h[...], num_heads)
    q2 = q2 + ca

    # ---- MLP residual branch ----
    x3 = _layernorm(q2, n3g[...], n3b[...]).astype(jnp.bfloat16)
    h1 = jnp.dot(x3, w_fc1[...], preferred_element_type=jnp.float32) + b_fc1[...]
    h1 = _gelu_exact(h1).astype(jnp.bfloat16)
    y = jnp.dot(h1, w_fc2[...], preferred_element_type=jnp.float32) + b_fc2[...]
    q2 = q2 + y

    o_ref[...] = q2.reshape(bb, nq, d)


# --------------------------------- wrapper -----------------------------------

def decoder_block(q, kv, params, num_heads, block_b=None):
    B, Nq, D = q.shape
    _, Nkv, _ = kv.shape
    assert D % num_heads == 0
    hd = D // num_heads
    scale = hd ** -0.5

    if block_b is None:
        block_b = 2 if B % 2 == 0 else 1
    assert B % block_b == 0

    bf16 = jnp.bfloat16
    # Fold the attention scale into the q-side projection weights (free, host-side).
    col_scale = jnp.concatenate(
        [jnp.full((1, D), scale, jnp.float32), jnp.ones((1, 2 * D), jnp.float32)],
        axis=1)
    w_qkv = (params["w_qkv"] * col_scale).astype(bf16)
    w_q = (params["w_q"] * scale).astype(bf16)
    w_kv = params["w_kv"].astype(bf16)
    # Head-major output-projection weights: kernel accumulates per head, no concat.
    w_proj1h = params["w_proj1"].reshape(num_heads, hd, D).astype(bf16)
    w_proj2h = params["w_proj2"].reshape(num_heads, hd, D).astype(bf16)
    w_fc1 = params["w_fc1"].astype(bf16)
    w_fc2 = params["w_fc2"].astype(bf16)

    param_list = [
        params["n1g"], params["n1b"], w_qkv, w_proj1h,
        params["qn2g"], params["qn2b"], params["kvn2g"], params["kvn2b"],
        w_q, w_kv, w_proj2h,
        params["n3g"], params["n3b"],
        w_fc1, params["b_fc1"], w_fc2, params["b_fc2"],
    ]

    def full_spec(p):
        nd = p.ndim
        return pl.BlockSpec(p.shape, lambda b, _nd=nd: (0,) * _nd)

    in_specs = [
        pl.BlockSpec((block_b, Nq, D), lambda b: (b, 0, 0)),
        pl.BlockSpec((block_b, Nkv, D), lambda b: (b, 0, 0)),
    ] + [full_spec(p) for p in param_list]
    # TODO(synk): at production D, single-buffer the constant weight blocks
    # (pipeline_mode=pl.Buffered(1)) and tile w_fc1/w_fc2 over the hidden dim so
    # the resident set fits v7x's 64 MiB VMEM.

    weight_bytes = sum(int(p.size) * p.dtype.itemsize for p in param_list)
    act_bytes = (2 * block_b * Nq * D + block_b * Nkv * D) * 4
    vmem_limit = int(min(2 * weight_bytes + 4 * act_bytes + (8 << 20), 64 << 20))

    kernel = functools.partial(decoder_block_kernel, num_heads=num_heads)

    return pl.pallas_call(
        kernel,
        out_shape=jax.ShapeDtypeStruct((B, Nq, D), jnp.float32),
        grid_spec=pltpu.PrefetchScalarGridSpec(
            num_scalar_prefetch=0,
            grid=(B // block_b,),
            in_specs=in_specs,
            out_specs=pl.BlockSpec((block_b, Nq, D), lambda b: (b, 0, 0)),
        ),
        input_output_aliases={0: 0},
        compiler_params=pltpu.CompilerParams(
            dimension_semantics=("parallel",),
            vmem_limit_bytes=vmem_limit,
        ),
    )(q, kv, *param_list)


# ------------------------------ pure-JAX reference ----------------------------

def _ref_layernorm(x, g, b, eps=1e-5):
    mu = jnp.mean(x, axis=-1, keepdims=True)
    xc = x - mu
    var = jnp.mean(xc * xc, axis=-1, keepdims=True)
    return xc * jax.lax.rsqrt(var + eps) * g + b


def _ref_mha(qx, kx, vx, num_heads, scale):
    B, Nq, D = qx.shape
    Nk = kx.shape[1]
    hd = D // num_heads
    qh = qx.reshape(B, Nq, num_heads, hd).transpose(0, 2, 1, 3) * scale
    kh = kx.reshape(B, Nk, num_heads, hd).transpose(0, 2, 1, 3)
    vh = vx.reshape(B, Nk, num_heads, hd).transpose(0, 2, 1, 3)
    s = jnp.einsum("bhqd,bhkd->bhqk", qh, kh)
    p = jax.nn.softmax(s, axis=-1)
    o = jnp.einsum("bhqk,bhkd->bhqd", p, vh)
    return o.transpose(0, 2, 1, 3).reshape(B, Nq, D)


def decoder_block_ref(q, kv, params, num_heads):
    D = q.shape[-1]
    scale = (D // num_heads) ** -0.5

    x1 = _ref_layernorm(q, params["n1g"], params["n1b"])
    qkv = x1 @ params["w_qkv"]
    sa = _ref_mha(qkv[..., :D], qkv[..., D:2 * D], qkv[..., 2 * D:], num_heads, scale)
    q = q + sa @ params["w_proj1"]

    qn = _ref_layernorm(q, params["qn2g"], params["qn2b"])
    kvn = _ref_layernorm(kv, params["kvn2g"], params["kvn2b"])
    qp = qn @ params["w_q"]
    kvp = kvn @ params["w_kv"]
    ca = _ref_mha(qp, kvp[..., :D], kvp[..., D:], num_heads, scale)
    q = q + ca @ params["w_proj2"]

    x3 = _ref_layernorm(q, params["n3g"], params["n3b"])
    h = x3 @ params["w_fc1"] + params["b_fc1"]
    h = 0.5 * h * (1.0 + jax.lax.erf(h * (1.0 / math.sqrt(2.0))))
    q = q + (h @ params["w_fc2"] + params["b_fc2"])
    return q


# ---------------------------------- main --------------------------------------

if __name__ == "__main__":
    # Lane-dense small shapes: D = 128 lanes, Nq/Nkv multiples of 8 sublanes.
    B, Nq, Nkv, D = 4, 16, 32, 128
    num_heads = 4
    mlp_ratio = 4.0
    Hm = int(D * mlp_ratio)

    key = jax.random.PRNGKey(0)
    ks = jax.random.split(key, 12)

    def w(k, shape):
        return (0.02 * jax.random.normal(k, shape)).astype(jnp.float32)

    # Linear layers stored as (in, out) so y = x @ W (equivalent to torch x @ W.T).
    # qkv_bias=False, proj_bias=False, ffn_bias=True (module defaults).
    params = dict(
        n1g=jnp.ones((1, D), jnp.float32), n1b=jnp.zeros((1, D), jnp.float32),
        w_qkv=w(ks[0], (D, 3 * D)),
        w_proj1=w(ks[1], (D, D)),
        qn2g=jnp.ones((1, D), jnp.float32), qn2b=jnp.zeros((1, D), jnp.float32),
        kvn2g=jnp.ones((1, D), jnp.float32), kvn2b=jnp.zeros((1, D), jnp.float32),
        w_q=w(ks[2], (D, D)),
        w_kv=w(ks[3], (D, 2 * D)),
        w_proj2=w(ks[4], (D, D)),
        n3g=jnp.ones((1, D), jnp.float32), n3b=jnp.zeros((1, D), jnp.float32),
        w_fc1=w(ks[5], (D, Hm)), b_fc1=w(ks[6], (1, Hm)),
        w_fc2=w(ks[7], (Hm, D)), b_fc2=w(ks[8], (1, D)),
    )

    q = jax.random.normal(ks[9], (B, Nq, D), jnp.float32)
    kv = jax.random.normal(ks[10], (B, Nkv, D), jnp.float32)

    # f32 reference computed first (kernel aliases q's buffer for its output).
    ref = decoder_block_ref(q, kv, params, num_heads)

    out = decoder_block(q, kv, params, num_heads)
    out = jax.block_until_ready(out)

    assert out.shape == (B, Nq, D)
    max_err = float(jnp.max(jnp.abs(out - ref)))
    # bf16 MXU operands + approx-reciprocal softmax vs f32 reference => relaxed tol.
    assert jnp.allclose(out, ref, atol=2e-2, rtol=2e-2), max_err

    print("KERNEL_OK")
</pallas_src>

<mosaic_0001>
module attributes {stable_mosaic.version = 11 : i64} {
  func.func @decoder_block_kernel(%arg0: i32, %arg1: memref<2x16x128xf32, #tpu.memory_space<vmem>>, %arg2: memref<2x32x128xf32, #tpu.memory_space<vmem>>, %arg3: memref<1x128xf32, #tpu.memory_space<vmem>>, %arg4: memref<1x128xf32, #tpu.memory_space<vmem>>, %arg5: memref<128x384xbf16, #tpu.memory_space<vmem>>, %arg6: memref<4x32x128xbf16, #tpu.memory_space<vmem>>, %arg7: memref<1x128xf32, #tpu.memory_space<vmem>>, %arg8: memref<1x128xf32, #tpu.memory_space<vmem>>, %arg9: memref<1x128xf32, #tpu.memory_space<vmem>>, %arg10: memref<1x128xf32, #tpu.memory_space<vmem>>, %arg11: memref<128x128xbf16, #tpu.memory_space<vmem>>, %arg12: memref<128x256xbf16, #tpu.memory_space<vmem>>, %arg13: memref<4x32x128xbf16, #tpu.memory_space<vmem>>, %arg14: memref<1x128xf32, #tpu.memory_space<vmem>>, %arg15: memref<1x128xf32, #tpu.memory_space<vmem>>, %arg16: memref<128x512xbf16, #tpu.memory_space<vmem>>, %arg17: memref<1x512xf32, #tpu.memory_space<vmem>>, %arg18: memref<512x128xbf16, #tpu.memory_space<vmem>>, %arg19: memref<1x128xf32, #tpu.memory_space<vmem>>, %arg20: memref<2x16x128xf32, #tpu.memory_space<vmem>>) attributes {dimension_semantics = [#tpu.dimension_semantics<parallel>], iteration_bounds = array<i64: 2>, scalar_prefetch = 0 : i64, scratch_operands = 0 : i64, tpu.core_type = #tpu.core_type<tc>, window_params = [{transform_indices = @transform_0, window_bounds = array<i64: 2, 16, 128>}, {transform_indices = @transform_1, window_bounds = array<i64: 2, 32, 128>}, {pipeline_mode = #tpu.pipeline_mode<synchronous>, transform_indices = @transform_2, window_bounds = array<i64: 1, 128>}, {pipeline_mode = #tpu.pipeline_mode<synchronous>, transform_indices = @transform_3, window_bounds = array<i64: 1, 128>}, {pipeline_mode = #tpu.pipeline_mode<synchronous>, transform_indices = @transform_4, window_bounds = array<i64: 128, 384>}, {pipeline_mode = #tpu.pipeline_mode<synchronous>, transform_indices = @transform_5, window_bounds = array<i64: 4, 32, 128>}, {pipeline_mode = #tpu.pipeline_mode<synchronous>, transform_indices = @transform_6, window_bounds = array<i64: 1, 128>}, {pipeline_mode = #tpu.pipeline_mode<synchronous>, transform_indices = @transform_7, window_bounds = array<i64: 1, 128>}, {pipeline_mode = #tpu.pipeline_mode<synchronous>, transform_indices = @transform_8, window_bounds = array<i64: 1, 128>}, {pipeline_mode = #tpu.pipeline_mode<synchronous>, transform_indices = @transform_9, window_bounds = array<i64: 1, 128>}, {pipeline_mode = #tpu.pipeline_mode<synchronous>, transform_indices = @transform_10, window_bounds = array<i64: 128, 128>}, {pipeline_mode = #tpu.pipeline_mode<synchronous>, transform_indices = @transform_11, window_bounds = array<i64: 128, 256>}, {pipeline_mode = #tpu.pipeline_mode<synchronous>, transform_indices = @transform_12, window_bounds = array<i64: 4, 32, 128>}, {pipeline_mode = #tpu.pipeline_mode<synchronous>, transform_indices = @transform_13, window_bounds = array<i64: 1, 128>}, {pipeline_mode = #tpu.pipeline_mode<synchronous>, transform_indices = @transform_14, window_bounds = array<i64: 1, 128>}, {pipeline_mode = #tpu.pipeline_mode<synchronous>, transform_indices = @transform_15, window_bounds = array<i64: 128, 512>}, {pipeline_mode = #tpu.pipeline_mode<synchronous>, transform_indices = @transform_16, window_bounds = array<i64: 1, 512>}, {pipeline_mode = #tpu.pipeline_mode<synchronous>, transform_indices = @transform_17, window_bounds = array<i64: 512, 128>}, {pipeline_mode = #tpu.pipeline_mode<synchronous>, transform_indices = @transform_18, window_bounds = array<i64: 1, 128>}, {transform_indices = @transform_19, window_bounds = array<i64: 2, 16, 128>}]} {
    %c0 = arith.constant 0 : index
    %c0_0 = arith.constant 0 : index
    %c0_1 = arith.constant 0 : index
    %0 = vector.load %arg1[%c0, %c0_0, %c0_1] : memref<2x16x128xf32, #tpu.memory_space<vmem>>, vector<2x16x128xf32>
    %1 = vector.shape_cast %0 : vector<2x16x128xf32> to vector<32x128xf32>
    %c0_2 = arith.constant 0 : index
    %c0_3 = arith.constant 0 : index
    %c0_4 = arith.constant 0 : index
    %2 = vector.load %arg2[%c0_2, %c0_3, %c0_4] : memref<2x32x128xf32, #tpu.memory_space<vmem>>, vector<2x32x128xf32>
    %3 = vector.shape_cast %2 : vector<2x32x128xf32> to vector<64x128xf32>
    %c0_5 = arith.constant 0 : index
    %c0_6 = arith.constant 0 : index
    %4 = vector.load %arg3[%c0_5, %c0_6] : memref<1x128xf32, #tpu.memory_space<vmem>>, vector<1x128xf32>
    %c0_7 = arith.constant 0 : index
    %c0_8 = arith.constant 0 : index
    %5 = vector.load %arg4[%c0_7, %c0_8] : memref<1x128xf32, #tpu.memory_space<vmem>>, vector<1x128xf32>
    %cst = arith.constant dense<0.000000e+00> : vector<32xf32>
    %6 = vector.multi_reduction <add>, %1, %cst [1] : vector<32x128xf32> to vector<32xf32>
    %7 = vector.shape_cast %6 : vector<32xf32> to vector<32x1xf32>
    %cst_9 = arith.constant 1.280000e+02 : f32
    %8 = vector.broadcast %cst_9 : f32 to vector<32x1xf32>
    %9 = arith.divf %7, %8 : vector<32x1xf32>
    %10 = vector.broadcast %9 : vector<32x1xf32> to vector<32x128xf32>
    %11 = arith.subf %1, %10 : vector<32x128xf32>
    %12 = arith.mulf %11, %11 : vector<32x128xf32>
    %cst_10 = arith.constant dense<0.000000e+00> : vector<32xf32>
    %13 = vector.multi_reduction <add>, %12, %cst_10 [1] : vector<32x128xf32> to vector<32xf32>
    %14 = vector.shape_cast %13 : vector<32xf32> to vector<32x1xf32>
    %cst_11 = arith.constant 1.280000e+02 : f32
    %15 = vector.broadcast %cst_11 : f32 to vector<32x1xf32>
    %16 = arith.divf %14, %15 : vector<32x1xf32>
    %cst_12 = arith.constant 9.99999974E-6 : f32
    %17 = vector.broadcast %cst_12 : f32 to vector<32x1xf32>
    %18 = arith.addf %16, %17 : vector<32x1xf32>
    %19 = math.rsqrt %18 : vector<32x1xf32>
    %20 = vector.broadcast %19 : vector<32x1xf32> to vector<32x128xf32>
    %21 = arith.mulf %11, %20 : vector<32x128xf32>
    %22 = vector.broadcast %4 : vector<1x128xf32> to vector<32x128xf32>
    %23 = arith.mulf %21, %22 : vector<32x128xf32>
    %24 = vector.broadcast %5 : vector<1x128xf32> to vector<32x128xf32>
    %25 = arith.addf %23, %24 : vector<32x128xf32>
    %26 = arith.truncf %25 : vector<32x128xf32> to vector<32x128xbf16>
    %c0_13 = arith.constant 0 : index
    %c0_14 = arith.constant 0 : index
    %27 = vector.load %arg5[%c0_13, %c0_14] : memref<128x384xbf16, #tpu.memory_space<vmem>>, vector<128x384xbf16>
    %cst_15 = arith.constant dense<0.000000e+00> : vector<32x384xf32>
    %28 = tpu.matmul %26, %27, %cst_15 {dimension_numbers = #tpu.dot_dimension_numbers<[1], [0], [0], [1], [0, 0, 1, 1], [], []>} : vector<32x128xbf16>, vector<128x384xbf16>, vector<32x384xf32> -> vector<32x384xf32>
    %29 = arith.truncf %28 : vector<32x384xf32> to vector<32x384xbf16>
    %30 = vector.shape_cast %29 : vector<32x384xbf16> to vector<2x16x384xbf16>
    %31 = vector.extract_strided_slice %30 {offsets = [0, 0, 0], sizes = [2, 16, 128], strides = [1, 1, 1]} : vector<2x16x384xbf16> to vector<2x16x128xbf16>
    %32 = vector.extract_strided_slice %30 {offsets = [0, 0, 128], sizes = [2, 16, 128], strides = [1, 1, 1]} : vector<2x16x384xbf16> to vector<2x16x128xbf16>
    %33 = vector.extract_strided_slice %30 {offsets = [0, 0, 256], sizes = [2, 16, 128], strides = [1, 1, 1]} : vector<2x16x384xbf16> to vector<2x16x128xbf16>
    %c0_16 = arith.constant 0 : index
    %c0_17 = arith.constant 0 : index
    %c0_18 = arith.constant 0 : index
    %34 = vector.load %arg6[%c0_16, %c0_17, %c0_18] : memref<4x32x128xbf16, #tpu.memory_space<vmem>>, vector<4x32x128xbf16>
    %cst_19 = arith.constant 0.000000e+00 : f32
    %35 = vector.broadcast %cst_19 : f32 to vector<32x128xf32>
    %36 = vector.extract_strided_slice %31 {offsets = [0, 0, 0], sizes = [2, 16, 32], strides = [1, 1, 1]} : vector<2x16x128xbf16> to vector<2x16x32xbf16>
    %37 = vector.extract_strided_slice %32 {offsets = [0, 0, 0], sizes = [2, 16, 32], strides = [1, 1, 1]} : vector<2x16x128xbf16> to vector<2x16x32xbf16>
    "tpu.trace_start"() <{level = 10 : i32, message = "bqe,bke->bqk"}> : () -> ()
    %cst_20 = arith.constant dense<0.000000e+00> : vector<2x16x16xf32>
    %38 = tpu.matmul %36, %37, %cst_20 {dimension_numbers = #tpu.dot_dimension_numbers<[2], [2], [1], [1], [0, 0, 0, 1, 1, 1], [0], [0]>} : vector<2x16x32xbf16>, vector<2x16x32xbf16>, vector<2x16x16xf32> -> vector<2x16x16xf32>
    "tpu.trace_stop"() : () -> ()
    %cst_21 = arith.constant dense<0xFF800000> : vector<2x16xf32>
    %39 = vector.multi_reduction <maximumf>, %38, %cst_21 [2] : vector<2x16x16xf32> to vector<2x16xf32>
    %40 = vector.shape_cast %39 : vector<2x16xf32> to vector<2x16x1xf32>
    %41 = vector.broadcast %40 : vector<2x16x1xf32> to vector<2x16x16xf32>
    %42 = arith.subf %38, %41 : vector<2x16x16xf32>
    %43 = math.exp %42 : vector<2x16x16xf32>
    %cst_22 = arith.constant dense<0.000000e+00> : vector<2x16xf32>
    %44 = vector.multi_reduction <add>, %43, %cst_22 [2] : vector<2x16x16xf32> to vector<2x16xf32>
    %45 = vector.shape_cast %44 : vector<2x16xf32> to vector<2x16x1xf32>
    %46 = tpu.reciprocal %45 {approx = true} : vector<2x16x1xf32> -> vector<2x16x1xf32>
    %47 = vector.broadcast %46 : vector<2x16x1xf32> to vector<2x16x16xf32>
    %48 = arith.mulf %43, %47 : vector<2x16x16xf32>
    %49 = arith.truncf %48 : vector<2x16x16xf32> to vector<2x16x16xbf16>
    %50 = vector.extract_strided_slice %33 {offsets = [0, 0, 0], sizes = [2, 16, 32], strides = [1, 1, 1]} : vector<2x16x128xbf16> to vector<2x16x32xbf16>
    "tpu.trace_start"() <{level = 10 : i32, message = "bqk,bke->bqe"}> : () -> ()
    %cst_23 = arith.constant dense<0.000000e+00> : vector<2x16x32xf32>
    %51 = tpu.matmul %49, %50, %cst_23 {dimension_numbers = #tpu.dot_dimension_numbers<[2], [1], [1], [2], [0, 0, 0, 1, 1, 2], [0], [0]>} : vector<2x16x16xbf16>, vector<2x16x32xbf16>, vector<2x16x32xf32> -> vector<2x16x32xf32>
    "tpu.trace_stop"() : () -> ()
    %52 = vector.shape_cast %51 : vector<2x16x32xf32> to vector<32x32xf32>
    %53 = arith.truncf %52 : vector<32x32xf32> to vector<32x32xbf16>
    %54 = vector.extract_strided_slice %34 {offsets = [0, 0, 0], sizes = [1, 32, 128], strides = [1, 1, 1]} : vector<4x32x128xbf16> to vector<1x32x128xbf16>
    %55 = vector.shape_cast %54 : vector<1x32x128xbf16> to vector<32x128xbf16>
    %cst_24 = arith.constant dense<0.000000e+00> : vector<32x128xf32>
    %56 = tpu.matmul %53, %55, %cst_24 {dimension_numbers = #tpu.dot_dimension_numbers<[1], [0], [0], [1], [0, 0, 1, 1], [], []>} : vector<32x32xbf16>, vector<32x128xbf16>, vector<32x128xf32> -> vector<32x128xf32>
    %57 = arith.addf %35, %56 : vector<32x128xf32>
    %58 = vector.extract_strided_slice %31 {offsets = [0, 0, 32], sizes = [2, 16, 32], strides = [1, 1, 1]} : vector<2x16x128xbf16> to vector<2x16x32xbf16>
    %59 = vector.extract_strided_slice %32 {offsets = [0, 0, 32], sizes = [2, 16, 32], strides = [1, 1, 1]} : vector<2x16x128xbf16> to vector<2x16x32xbf16>
    "tpu.trace_start"() <{level = 10 : i32, message = "bqe,bke->bqk"}> : () -> ()
    %cst_25 = arith.constant dense<0.000000e+00> : vector<2x16x16xf32>
    %60 = tpu.matmul %58, %59, %cst_25 {dimension_numbers = #tpu.dot_dimension_numbers<[2], [2], [1], [1], [0, 0, 0, 1, 1, 1], [0], [0]>} : vector<2x16x32xbf16>, vector<2x16x32xbf16>, vector<2x16x16xf32> -> vector<2x16x16xf32>
    "tpu.trace_stop"() : () -> ()
    %cst_26 = arith.constant dense<0xFF800000> : vector<2x16xf32>
    %61 = vector.multi_reduction <maximumf>, %60, %cst_26 [2] : vector<2x16x16xf32> to vector<2x16xf32>
    %62 = vector.shape_cast %61 : vector<2x16xf32> to vector<2x16x1xf32>
    %63 = vector.broadcast %62 : vector<2x16x1xf32> to vector<2x16x16xf32>
    %64 = arith.subf %60, %63 : vector<2x16x16xf32>
    %65 = math.exp %64 : vector<2x16x16xf32>
    %cst_27 = arith.constant dense<0.000000e+00> : vector<2x16xf32>
    %66 = vector.multi_reduction <add>, %65, %cst_27 [2] : vector<2x16x16xf32> to vector<2x16xf32>
    %67 = vector.shape_cast %66 : vector<2x16xf32> to vector<2x16x1xf32>
    %68 = tpu.reciprocal %67 {approx = true} : vector<2x16x1xf32> -> vector<2x16x1xf32>
    %69 = vector.broadcast %68 : vector<2x16x1xf32> to vector<2x16x16xf32>
    %70 = arith.mulf %65, %69 : vector<2x16x16xf32>
    %71 = arith.truncf %70 : vector<2x16x16xf32> to vector<2x16x16xbf16>
    %72 = vector.extract_strided_slice %33 {offsets = [0, 0, 32], sizes = [2, 16, 32], strides = [1, 1, 1]} : vector<2x16x128xbf16> to vector<2x16x32xbf16>
    "tpu.trace_start"() <{level = 10 : i32, message = "bqk,bke->bqe"}> : () -> ()
    %cst_28 = arith.constant dense<0.000000e+00> : vector<2x16x32xf32>
    %73 = tpu.matmul %71, %72, %cst_28 {dimension_numbers = #tpu.dot_dimension_numbers<[2], [1], [1], [2], [0, 0, 0, 1, 1, 2], [0], [0]>} : vector<2x16x16xbf16>, vector<2x16x32xbf16>, vector<2x16x32xf32> -> vector<2x16x32xf32>
    "tpu.trace_stop"() : () -> ()
    %74 = vector.shape_cast %73 : vector<2x16x32xf32> to vector<32x32xf32>
    %75 = arith.truncf %74 : vector<32x32xf32> to vector<32x32xbf16>
    %76 = vector.extract_strided_slice %34 {offsets = [1, 0, 0], sizes = [1, 32, 128], strides = [1, 1, 1]} : vector<4x32x128xbf16> to vector<1x32x128xbf16>
    %77 = vector.shape_cast %76 : vector<1x32x128xbf16> to vector<32x128xbf16>
    %cst_29 = arith.constant dense<0.000000e+00> : vector<32x128xf32>
    %78 = tpu.matmul %75, %77, %cst_29 {dimension_numbers = #tpu.dot_dimension_numbers<[1], [0], [0], [1], [0, 0, 1, 1], [], []>} : vector<32x32xbf16>, vector<32x128xbf16>, vector<32x128xf32> -> vector<32x128xf32>
    %79 = arith.addf %57, %78 : vector<32x128xf32>
    %80 = vector.extract_strided_slice %31 {offsets = [0, 0, 64], sizes = [2, 16, 32], strides = [1, 1, 1]} : vector<2x16x128xbf16> to vector<2x16x32xbf16>
    %81 = vector.extract_strided_slice %32 {offsets = [0, 0, 64], sizes = [2, 16, 32], strides = [1, 1, 1]} : vector<2x16x128xbf16> to vector<2x16x32xbf16>
    "tpu.trace_start"() <{level = 10 : i32, message = "bqe,bke->bqk"}> : () -> ()
    %cst_30 = arith.constant dense<0.000000e+00> : vector<2x16x16xf32>
    %82 = tpu.matmul %80, %81, %cst_30 {dimension_numbers = #tpu.dot_dimension_numbers<[2], [2], [1], [1], [0, 0, 0, 1, 1, 1], [0], [0]>} : vector<2x16x32xbf16>, vector<2x16x32xbf16>, vector<2x16x16xf32> -> vector<2x16x16xf32>
    "tpu.trace_stop"() : () -> ()
    %cst_31 = arith.constant dense<0xFF800000> : vector<2x16xf32>
    %83 = vector.multi_reduction <maximumf>, %82, %cst_31 [2] : vector<2x16x16xf32> to vector<2x16xf32>
    %84 = vector.shape_cast %83 : vector<2x16xf32> to vector<2x16x1xf32>
    %85 = vector.broadcast %84 : vector<2x16x1xf32> to vector<2x16x16xf32>
    %86 = arith.subf %82, %85 : vector<2x16x16xf32>
    %87 = math.exp %86 : vector<2x16x16xf32>
    %cst_32 = arith.constant dense<0.000000e+00> : vector<2x16xf32>
    %88 = vector.multi_reduction <add>, %87, %cst_32 [2] : vector<2x16x16xf32> to vector<2x16xf32>
    %89 = vector.shape_cast %88 : vector<2x16xf32> to vector<2x16x1xf32>
    %90 = tpu.reciprocal %89 {approx = true} : vector<2x16x1xf32> -> vector<2x16x1xf32>
    %91 = vector.broadcast %90 : vector<2x16x1xf32> to vector<2x16x16xf32>
    %92 = arith.mulf %87, %91 : vector<2x16x16xf32>
    %93 = arith.truncf %92 : vector<2x16x16xf32> to vector<2x16x16xbf16>
    %94 = vector.extract_strided_slice %33 {offsets = [0, 0, 64], sizes = [2, 16, 32], strides = [1, 1, 1]} : vector<2x16x128xbf16> to vector<2x16x32xbf16>
    "tpu.trace_start"() <{level = 10 : i32, message = "bqk,bke->bqe"}> : () -> ()
    %cst_33 = arith.constant dense<0.000000e+00> : vector<2x16x32xf32>
    %95 = tpu.matmul %93, %94, %cst_33 {dimension_numbers = #tpu.dot_dimension_numbers<[2], [1], [1], [2], [0, 0, 0, 1, 1, 2], [0], [0]>} : vector<2x16x16xbf16>, vector<2x16x32xbf16>, vector<2x16x32xf32> -> vector<2x16x32xf32>
    "tpu.trace_stop"() : () -> ()
    %96 = vector.shape_cast %95 : vector<2x16x32xf32> to vector<32x32xf32>
    %97 = arith.truncf %96 : vector<32x32xf32> to vector<32x32xbf16>
    %98 = vector.extract_strided_slice %34 {offsets = [2, 0, 0], sizes = [1, 32, 128], strides = [1, 1, 1]} : vector<4x32x128xbf16> to vector<1x32x128xbf16>
    %99 = vector.shape_cast %98 : vector<1x32x128xbf16> to vector<32x128xbf16>
    %cst_34 = arith.constant dense<0.000000e+00> : vector<32x128xf32>
    %100 = tpu.matmul %97, %99, %cst_34 {dimension_numbers = #tpu.dot_dimension_numbers<[1], [0], [0], [1], [0, 0, 1, 1], [], []>} : vector<32x32xbf16>, vector<32x128xbf16>, vector<32x128xf32> -> vector<32x128xf32>
    %101 = arith.addf %79, %100 : vector<32x128xf32>
    %102 = vector.extract_strided_slice %31 {offsets = [0, 0, 96], sizes = [2, 16, 32], strides = [1, 1, 1]} : vector<2x16x128xbf16> to vector<2x16x32xbf16>
    %103 = vector.extract_strided_slice %32 {offsets = [0, 0, 96], sizes = [2, 16, 32], strides = [1, 1, 1]} : vector<2x16x128xbf16> to vector<2x16x32xbf16>
    "tpu.trace_start"() <{level = 10 : i32, message = "bqe,bke->bqk"}> : () -> ()
    %cst_35 = arith.constant dense<0.000000e+00> : vector<2x16x16xf32>
    %104 = tpu.matmul %102, %103, %cst_35 {dimension_numbers = #tpu.dot_dimension_numbers<[2], [2], [1], [1], [0, 0, 0, 1, 1, 1], [0], [0]>} : vector<2x16x32xbf16>, vector<2x16x32xbf16>, vector<2x16x16xf32> -> vector<2x16x16xf32>
    "tpu.trace_stop"() : () -> ()
    %cst_36 = arith.constant dense<0xFF800000> : vector<2x16xf32>
    %105 = vector.multi_reduction <maximumf>, %104, %cst_36 [2] : vector<2x16x16xf32> to vector<2x16xf32>
    %106 = vector.shape_cast %105 : vector<2x16xf32> to vector<2x16x1xf32>
    %107 = vector.broadcast %106 : vector<2x16x1xf32> to vector<2x16x16xf32>
    %108 = arith.subf %104, %107 : vector<2x16x16xf32>
    %109 = math.exp %108 : vector<2x16x16xf32>
    %cst_37 = arith.constant dense<0.000000e+00> : vector<2x16xf32>
    %110 = vector.multi_reduction <add>, %109, %cst_37 [2] : vector<2x16x16xf32> to vector<2x16xf32>
    %111 = vector.shape_cast %110 : vector<2x16xf32> to vector<2x16x1xf32>
    %112 = tpu.reciprocal %111 {approx = true} : vector<2x16x1xf32> -> vector<2x16x1xf32>
    %113 = vector.broadcast %112 : vector<2x16x1xf32> to vector<2x16x16xf32>
    %114 = arith.mulf %109, %113 : vector<2x16x16xf32>
    %115 = arith.truncf %114 : vector<2x16x16xf32> to vector<2x16x16xbf16>
    %116 = vector.extract_strided_slice %33 {offsets = [0, 0, 96], sizes = [2, 16, 32], strides = [1, 1, 1]} : vector<2x16x128xbf16> to vector<2x16x32xbf16>
    "tpu.trace_start"() <{level = 10 : i32, message = "bqk,bke->bqe"}> : () -> ()
    %cst_38 = arith.constant dense<0.000000e+00> : vector<2x16x32xf32>
    %117 = tpu.matmul %115, %116, %cst_38 {dimension_numbers = #tpu.dot_dimension_numbers<[2], [1], [1], [2], [0, 0, 0, 1, 1, 2], [0], [0]>} : vector<2x16x16xbf16>, vector<2x16x32xbf16>, vector<2x16x32xf32> -> vector<2x16x32xf32>
    "tpu.trace_stop"() : () -> ()
    %118 = vector.shape_cast %117 : vector<2x16x32xf32> to vector<32x32xf32>
    %119 = arith.truncf %118 : vector<32x32xf32> to vector<32x32xbf16>
    %120 = vector.extract_strided_slice %34 {offsets = [3, 0, 0], sizes = [1, 32, 128], strides = [1, 1, 1]} : vector<4x32x128xbf16> to vector<1x32x128xbf16>
    %121 = vector.shape_cast %120 : vector<1x32x128xbf16> to vector<32x128xbf16>
    %cst_39 = arith.constant dense<0.000000e+00> : vector<32x128xf32>
    %122 = tpu.matmul %119, %121, %cst_39 {dimension_numbers = #tpu.dot_dimension_numbers<[1], [0], [0], [1], [0, 0, 1, 1], [], []>} : vector<32x32xbf16>, vector<32x128xbf16>, vector<32x128xf32> -> vector<32x128xf32>
    %123 = arith.addf %101, %122 : vector<32x128xf32>
    %124 = arith.addf %1, %123 : vector<32x128xf32>
    %c0_40 = arith.constant 0 : index
    %c0_41 = arith.constant 0 : index
    %125 = vector.load %arg7[%c0_40, %c0_41] : memref<1x128xf32, #tpu.memory_space<vmem>>, vector<1x128xf32>
    %c0_42 = arith.constant 0 : index
    %c0_43 = arith.constant 0 : index
    %126 = vector.load %arg8[%c0_42, %c0_43] : memref<1x128xf32, #tpu.memory_space<vmem>>, vector<1x128xf32>
    %cst_44 = arith.constant dense<0.000000e+00> : vector<32xf32>
    %127 = vector.multi_reduction <add>, %124, %cst_44 [1] : vector<32x128xf32> to vector<32xf32>
    %128 = vector.shape_cast %127 : vector<32xf32> to vector<32x1xf32>
    %cst_45 = arith.constant 1.280000e+02 : f32
    %129 = vector.broadcast %cst_45 : f32 to vector<32x1xf32>
    %130 = arith.divf %128, %129 : vector<32x1xf32>
    %131 = vector.broadcast %130 : vector<32x1xf32> to vector<32x128xf32>
    %132 = arith.subf %124, %131 : vector<32x128xf32>
    %133 = arith.mulf %132, %132 : vector<32x128xf32>
    %cst_46 = arith.constant dense<0.000000e+00> : vector<32xf32>
    %134 = vector.multi_reduction <add>, %133, %cst_46 [1] : vector<32x128xf32> to vector<32xf32>
    %135 = vector.shape_cast %134 : vector<32xf32> to vector<32x1xf32>
    %cst_47 = arith.constant 1.280000e+02 : f32
    %136 = vector.broadcast %cst_47 : f32 to vector<32x1xf32>
    %137 = arith.divf %135, %136 : vector<32x1xf32>
    %cst_48 = arith.constant 9.99999974E-6 : f32
    %138 = vector.broadcast %cst_48 : f32 to vector<32x1xf32>
    %139 = arith.addf %137, %138 : vector<32x1xf32>
    %140 = math.rsqrt %139 : vector<32x1xf32>
    %141 = vector.broadcast %140 : vector<32x1xf32> to vector<32x128xf32>
    %142 = arith.mulf %132, %141 : vector<32x128xf32>
    %143 = vector.broadcast %125 : vector<1x128xf32> to vector<32x128xf32>
    %144 = arith.mulf %142, %143 : vector<32x128xf32>
    %145 = vector.broadcast %126 : vector<1x128xf32> to vector<32x128xf32>
    %146 = arith.addf %144, %145 : vector<32x128xf32>
    %147 = arith.truncf %146 : vector<32x128xf32> to vector<32x128xbf16>
    %c0_49 = arith.constant 0 : index
    %c0_50 = arith.constant 0 : index
    %148 = vector.load %arg9[%c0_49, %c0_50] : memref<1x128xf32, #tpu.memory_space<vmem>>, vector<1x128xf32>
    %c0_51 = arith.constant 0 : index
    %c0_52 = arith.constant 0 : index
    %149 = vector.load %arg10[%c0_51, %c0_52] : memref<1x128xf32, #tpu.memory_space<vmem>>, vector<1x128xf32>
    %cst_53 = arith.constant dense<0.000000e+00> : vector<64xf32>
    %150 = vector.multi_reduction <add>, %3, %cst_53 [1] : vector<64x128xf32> to vector<64xf32>
    %151 = vector.shape_cast %150 : vector<64xf32> to vector<64x1xf32>
    %cst_54 = arith.constant 1.280000e+02 : f32
    %152 = vector.broadcast %cst_54 : f32 to vector<64x1xf32>
    %153 = arith.divf %151, %152 : vector<64x1xf32>
    %154 = vector.broadcast %153 : vector<64x1xf32> to vector<64x128xf32>
    %155 = arith.subf %3, %154 : vector<64x128xf32>
    %156 = arith.mulf %155, %155 : vector<64x128xf32>
    %cst_55 = arith.constant dense<0.000000e+00> : vector<64xf32>
    %157 = vector.multi_reduction <add>, %156, %cst_55 [1] : vector<64x128xf32> to vector<64xf32>
    %158 = vector.shape_cast %157 : vector<64xf32> to vector<64x1xf32>
    %cst_56 = arith.constant 1.280000e+02 : f32
    %159 = vector.broadcast %cst_56 : f32 to vector<64x1xf32>
    %160 = arith.divf %158, %159 : vector<64x1xf32>
    %cst_57 = arith.constant 9.99999974E-6 : f32
    %161 = vector.broadcast %cst_57 : f32 to vector<64x1xf32>
    %162 = arith.addf %160, %161 : vector<64x1xf32>
    %163 = math.rsqrt %162 : vector<64x1xf32>
    %164 = vector.broadcast %163 : vector<64x1xf32> to vector<64x128xf32>
    %165 = arith.mulf %155, %164 : vector<64x128xf32>
    %166 = vector.broadcast %148 : vector<1x128xf32> to vector<64x128xf32>
    %167 = arith.mulf %165, %166 : vector<64x128xf32>
    %168 = vector.broadcast %149 : vector<1x128xf32> to vector<64x128xf32>
    %169 = arith.addf %167, %168 : vector<64x128xf32>
    %170 = arith.truncf %169 : vector<64x128xf32> to vector<64x128xbf16>
    %c0_58 = arith.constant 0 : index
    %c0_59 = arith.constant 0 : index
    %171 = vector.load %arg11[%c0_58, %c0_59] : memref<128x128xbf16, #tpu.memory_space<vmem>>, vector<128x128xbf16>
    %cst_60 = arith.constant dense<0.000000e+00> : vector<32x128xf32>
    %172 = tpu.matmul %147, %171, %cst_60 {dimension_numbers = #tpu.dot_dimension_numbers<[1], [0], [0], [1], [0, 0, 1, 1], [], []>} : vector<32x128xbf16>, vector<128x128xbf16>, vector<32x128xf32> -> vector<32x128xf32>
    %c0_61 = arith.constant 0 : index
    %c0_62 = arith.constant 0 : index
    %173 = vector.load %arg12[%c0_61, %c0_62] : memref<128x256xbf16, #tpu.memory_space<vmem>>, vector<128x256xbf16>
    %cst_63 = arith.constant dense<0.000000e+00> : vector<64x256xf32>
    %174 = tpu.matmul %170, %173, %cst_63 {dimension_numbers = #tpu.dot_dimension_numbers<[1], [0], [0], [1], [0, 0, 1, 1], [], []>} : vector<64x128xbf16>, vector<128x256xbf16>, vector<64x256xf32> -> vector<64x256xf32>
    %175 = arith.truncf %172 : vector<32x128xf32> to vector<32x128xbf16>
    %176 = vector.shape_cast %175 : vector<32x128xbf16> to vector<2x16x128xbf16>
    %177 = arith.truncf %174 : vector<64x256xf32> to vector<64x256xbf16>
    %178 = vector.shape_cast %177 : vector<64x256xbf16> to vector<2x32x256xbf16>
    %179 = vector.extract_strided_slice %178 {offsets = [0, 0, 0], sizes = [2, 32, 128], strides = [1, 1, 1]} : vector<2x32x256xbf16> to vector<2x32x128xbf16>
    %180 = vector.extract_strided_slice %178 {offsets = [0, 0, 128], sizes = [2, 32, 128], strides = [1, 1, 1]} : vector<2x32x256xbf16> to vector<2x32x128xbf16>
    %c0_64 = arith.constant 0 : index
    %c0_65 = arith.constant 0 : index
    %c0_66 = arith.constant 0 : index
    %181 = vector.load %arg13[%c0_64, %c0_65, %c0_66] : memref<4x32x128xbf16, #tpu.memory_space<vmem>>, vector<4x32x128xbf16>
    %cst_67 = arith.constant 0.000000e+00 : f32
    %182 = vector.broadcast %cst_67 : f32 to vector<32x128xf32>
    %183 = vector.extract_strided_slice %176 {offsets = [0, 0, 0], sizes = [2, 16, 32], strides = [1, 1, 1]} : vector<2x16x128xbf16> to vector<2x16x32xbf16>
    %184 = vector.extract_strided_slice %179 {offsets = [0, 0, 0], sizes = [2, 32, 32], strides = [1, 1, 1]} : vector<2x32x128xbf16> to vector<2x32x32xbf16>
    "tpu.trace_start"() <{level = 10 : i32, message = "bqe,bke->bqk"}> : () -> ()
    %cst_68 = arith.constant dense<0.000000e+00> : vector<2x16x32xf32>
    %185 = tpu.matmul %183, %184, %cst_68 {dimension_numbers = #tpu.dot_dimension_numbers<[2], [2], [1], [1], [0, 0, 0, 1, 1, 1], [0], [0]>} : vector<2x16x32xbf16>, vector<2x32x32xbf16>, vector<2x16x32xf32> -> vector<2x16x32xf32>
    "tpu.trace_stop"() : () -> ()
    %cst_69 = arith.constant dense<0xFF800000> : vector<2x16xf32>
    %186 = vector.multi_reduction <maximumf>, %185, %cst_69 [2] : vector<2x16x32xf32> to vector<2x16xf32>
    %187 = vector.shape_cast %186 : vector<2x16xf32> to vector<2x16x1xf32>
    %188 = vector.broadcast %187 : vector<2x16x1xf32> to vector<2x16x32xf32>
    %189 = arith.subf %185, %188 : vector<2x16x32xf32>
    %190 = math.exp %189 : vector<2x16x32xf32>
    %cst_70 = arith.constant dense<0.000000e+00> : vector<2x16xf32>
    %191 = vector.multi_reduction <add>, %190, %cst_70 [2] : vector<2x16x32xf32> to vector<2x16xf32>
    %192 = vector.shape_cast %191 : vector<2x16xf32> to vector<2x16x1xf32>
    %193 = tpu.reciprocal %192 {approx = true} : vector<2x16x1xf32> -> vector<2x16x1xf32>
    %194 = vector.broadcast %193 : vector<2x16x1xf32> to vector<2x16x32xf32>
    %195 = arith.mulf %190, %194 : vector<2x16x32xf32>
    %196 = arith.truncf %195 : vector<2x16x32xf32> to vector<2x16x32xbf16>
    %197 = vector.extract_strided_slice %180 {offsets = [0, 0, 0], sizes = [2, 32, 32], strides = [1, 1, 1]} : vector<2x32x128xbf16> to vector<2x32x32xbf16>
    "tpu.trace_start"() <{level = 10 : i32, message = "bqk,bke->bqe"}> : () -> ()
    %cst_71 = arith.constant dense<0.000000e+00> : vector<2x16x32xf32>
    %198 = tpu.matmul %196, %197, %cst_71 {dimension_numbers = #tpu.dot_dimension_numbers<[2], [1], [1], [2], [0, 0, 0, 1, 1, 2], [0], [0]>} : vector<2x16x32xbf16>, vector<2x32x32xbf16>, vector<2x16x32xf32> -> vector<2x16x32xf32>
    "tpu.trace_stop"() : () -> ()
    %199 = vector.shape_cast %198 : vector<2x16x32xf32> to vector<32x32xf32>
    %200 = arith.truncf %199 : vector<32x32xf32> to vector<32x32xbf16>
    %201 = vector.extract_strided_slice %181 {offsets = [0, 0, 0], sizes = [1, 32, 128], strides = [1, 1, 1]} : vector<4x32x128xbf16> to vector<1x32x128xbf16>
    %202 = vector.shape_cast %201 : vector<1x32x128xbf16> to vector<32x128xbf16>
    %cst_72 = arith.constant dense<0.000000e+00> : vector<32x128xf32>
    %203 = tpu.matmul %200, %202, %cst_72 {dimension_numbers = #tpu.dot_dimension_numbers<[1], [0], [0], [1], [0, 0, 1, 1], [], []>} : vector<32x32xbf16>, vector<32x128xbf16>, vector<32x128xf32> -> vector<32x128xf32>
    %204 = arith.addf %182, %203 : vector<32x128xf32>
    %205 = vector.extract_strided_slice %176 {offsets = [0, 0, 32], sizes = [2, 16, 32], strides = [1, 1, 1]} : vector<2x16x128xbf16> to vector<2x16x32xbf16>
    %206 = vector.extract_strided_slice %179 {offsets = [0, 0, 32], sizes = [2, 32, 32], strides = [1, 1, 1]} : vector<2x32x128xbf16> to vector<2x32x32xbf16>
    "tpu.trace_start"() <{level = 10 : i32, message = "bqe,bke->bqk"}> : () -> ()
    %cst_73 = arith.constant dense<0.000000e+00> : vector<2x16x32xf32>
    %207 = tpu.matmul %205, %206, %cst_73 {dimension_numbers = #tpu.dot_dimension_numbers<[2], [2], [1], [1], [0, 0, 0, 1, 1, 1], [0], [0]>} : vector<2x16x32xbf16>, vector<2x32x32xbf16>, vector<2x16x32xf32> -> vector<2x16x32xf32>
    "tpu.trace_stop"() : () -> ()
    %cst_74 = arith.constant dense<0xFF800000> : vector<2x16xf32>
    %208 = vector.multi_reduction <maximumf>, %207, %cst_74 [2] : vector<2x16x32xf32> to vector<2x16xf32>
    %209 = vector.shape_cast %208 : vector<2x16xf32> to vector<2x16x1xf32>
    %210 = vector.broadcast %209 : vector<2x16x1xf32> to vector<2x16x32xf32>
    %211 = arith.subf %207, %210 : vector<2x16x32xf32>
    %212 = math.exp %211 : vector<2x16x32xf32>
    %cst_75 = arith.constant dense<0.000000e+00> : vector<2x16xf32>
    %213 = vector.multi_reduction <add>, %212, %cst_75 [2] : vector<2x16x32xf32> to vector<2x16xf32>
    %214 = vector.shape_cast %213 : vector<2x16xf32> to vector<2x16x1xf32>
    %215 = tpu.reciprocal %214 {approx = true} : vector<2x16x1xf32> -> vector<2x16x1xf32>
    %216 = vector.broadcast %215 : vector<2x16x1xf32> to vector<2x16x32xf32>
    %217 = arith.mulf %212, %216 : vector<2x16x32xf32>
    %218 = arith.truncf %217 : vector<2x16x32xf32> to vector<2x16x32xbf16>
    %219 = vector.extract_strided_slice %180 {offsets = [0, 0, 32], sizes = [2, 32, 32], strides = [1, 1, 1]} : vector<2x32x128xbf16> to vector<2x32x32xbf16>
    "tpu.trace_start"() <{level = 10 : i32, message = "bqk,bke->bqe"}> : () -> ()
    %cst_76 = arith.constant dense<0.000000e+00> : vector<2x16x32xf32>
    %220 = tpu.matmul %218, %219, %cst_76 {dimension_numbers = #tpu.dot_dimension_numbers<[2], [1], [1], [2], [0, 0, 0, 1, 1, 2], [0], [0]>} : vector<2x16x32xbf16>, vector<2x32x32xbf16>, vector<2x16x32xf32> -> vector<2x16x32xf32>
    "tpu.trace_stop"() : () -> ()
    %221 = vector.shape_cast %220 : vector<2x16x32xf32> to vector<32x32xf32>
    %222 = arith.truncf %221 : vector<32x32xf32> to vector<32x32xbf16>
    %223 = vector.extract_strided_slice %181 {offsets = [1, 0, 0], sizes = [1, 32, 128], strides = [1, 1, 1]} : vector<4x32x128xbf16> to vector<1x32x128xbf16>
    %224 = vector.shape_cast %223 : vector<1x32x128xbf16> to vector<32x128xbf16>
    %cst_77 = arith.constant dense<0.000000e+00> : vector<32x128xf32>
    %225 = tpu.matmul %222, %224, %cst_77 {dimension_numbers = #tpu.dot_dimension_numbers<[1], [0], [0], [1], [0, 0, 1, 1], [], []>} : vector<32x32xbf16>, vector<32x128xbf16>, vector<32x128xf32> -> vector<32x128xf32>
    %226 = arith.addf %204, %225 : vector<32x128xf32>
    %227 = vector.extract_strided_slice %176 {offsets = [0, 0, 64], sizes = [2, 16, 32], strides = [1, 1, 1]} : vector<2x16x128xbf16> to vector<2x16x32xbf16>
    %228 = vector.extract_strided_slice %179 {offsets = [0, 0, 64], sizes = [2, 32, 32], strides = [1, 1, 1]} : vector<2x32x128xbf16> to vector<2x32x32xbf16>
    "tpu.trace_start"() <{level = 10 : i32, message = "bqe,bke->bqk"}> : () -> ()
    %cst_78 = arith.constant dense<0.000000e+00> : vector<2x16x32xf32>
    %229 = tpu.matmul %227, %228, %cst_78 {dimension_numbers = #tpu.dot_dimension_numbers<[2], [2], [1], [1], [0, 0, 0, 1, 1, 1], [0], [0]>} : vector<2x16x32xbf16>, vector<2x32x32xbf16>, vector<2x16x32xf32> -> vector<2x16x32xf32>
    "tpu.trace_stop"() : () -> ()
    %cst_79 = arith.constant dense<0xFF800000> : vector<2x16xf32>
    %230 = vector.multi_reduction <maximumf>, %229, %cst_79 [2] : vector<2x16x32xf32> to vector<2x16xf32>
    %231 = vector.shape_cast %230 : vector<2x16xf32> to vector<2x16x1xf32>
    %232 = vector.broadcast %231 : vector<2x16x1xf32> to vector<2x16x32xf32>
    %233 = arith.subf %229, %232 : vector<2x16x32xf32>
    %234 = math.exp %233 : vector<2x16x32xf32>
    %cst_80 = arith.constant dense<0.000000e+00> : vector<2x16xf32>
    %235 = vector.multi_reduction <add>, %234, %cst_80 [2] : vector<2x16x32xf32> to vector<2x16xf32>
    %236 = vector.shape_cast %235 : vector<2x16xf32> to vector<2x16x1xf32>
    %237 = tpu.reciprocal %236 {approx = true} : vector<2x16x1xf32> -> vector<2x16x1xf32>
    %238 = vector.broadcast %237 : vector<2x16x1xf32> to vector<2x16x32xf32>
    %239 = arith.mulf %234, %238 : vector<2x16x32xf32>
    %240 = arith.truncf %239 : vector<2x16x32xf32> to vector<2x16x32xbf16>
    %241 = vector.extract_strided_slice %180 {offsets = [0, 0, 64], sizes = [2, 32, 32], strides = [1, 1, 1]} : vector<2x32x128xbf16> to vector<2x32x32xbf16>
    "tpu.trace_start"() <{level = 10 : i32, message = "bqk,bke->bqe"}> : () -> ()
    %cst_81 = arith.constant dense<0.000000e+00> : vector<2x16x32xf32>
    %242 = tpu.matmul %240, %241, %cst_81 {dimension_numbers = #tpu.dot_dimension_numbers<[2], [1], [1], [2], [0, 0, 0, 1, 1, 2], [0], [0]>} : vector<2x16x32xbf16>, vector<2x32x32xbf16>, vector<2x16x32xf32> -> vector<2x16x32xf32>
    "tpu.trace_stop"() : () -> ()
    %243 = vector.shape_cast %242 : vector<2x16x32xf32> to vector<32x32xf32>
    %244 = arith.truncf %243 : vector<32x32xf32> to vector<32x32xbf16>
    %245 = vector.extract_strided_slice %181 {offsets = [2, 0, 0], sizes = [1, 32, 128], strides = [1, 1, 1]} : vector<4x32x128xbf16> to vector<1x32x128xbf16>
    %246 = vector.shape_cast %245 : vector<1x32x128xbf16> to vector<32x128xbf16>
    %cst_82 = arith.constant dense<0.000000e+00> : vector<32x128xf32>
    %247 = tpu.matmul %244, %246, %cst_82 {dimension_numbers = #tpu.dot_dimension_numbers<[1], [0], [0], [1], [0, 0, 1, 1], [], []>} : vector<32x32xbf16>, vector<32x128xbf16>, vector<32x128xf32> -> vector<32x128xf32>
    %248 = arith.addf %226, %247 : vector<32x128xf32>
    %249 = vector.extract_strided_slice %176 {offsets = [0, 0, 96], sizes = [2, 16, 32], strides = [1, 1, 1]} : vector<2x16x128xbf16> to vector<2x16x32xbf16>
    %250 = vector.extract_strided_slice %179 {offsets = [0, 0, 96], sizes = [2, 32, 32], strides = [1, 1, 1]} : vector<2x32x128xbf16> to vector<2x32x32xbf16>
    "tpu.trace_start"() <{level = 10 : i32, message = "bqe,bke->bqk"}> : () -> ()
    %cst_83 = arith.constant dense<0.000000e+00> : vector<2x16x32xf32>
    %251 = tpu.matmul %249, %250, %cst_83 {dimension_numbers = #tpu.dot_dimension_numbers<[2], [2], [1], [1], [0, 0, 0, 1, 1, 1], [0], [0]>} : vector<2x16x32xbf16>, vector<2x32x32xbf16>, vector<2x16x32xf32> -> vector<2x16x32xf32>
    "tpu.trace_stop"() : () -> ()
    %cst_84 = arith.constant dense<0xFF800000> : vector<2x16xf32>
    %252 = vector.multi_reduction <maximumf>, %251, %cst_84 [2] : vector<2x16x32xf32> to vector<2x16xf32>
    %253 = vector.shape_cast %252 : vector<2x16xf32> to vector<2x16x1xf32>
    %254 = vector.broadcast %253 : vector<2x16x1xf32> to vector<2x16x32xf32>
    %255 = arith.subf %251, %254 : vector<2x16x32xf32>
    %256 = math.exp %255 : vector<2x16x32xf32>
    %cst_85 = arith.constant dense<0.000000e+00> : vector<2x16xf32>
    %257 = vector.multi_reduction <add>, %256, %cst_85 [2] : vector<2x16x32xf32> to vector<2x16xf32>
    %258 = vector.shape_cast %257 : vector<2x16xf32> to vector<2x16x1xf32>
    %259 = tpu.reciprocal %258 {approx = true} : vector<2x16x1xf32> -> vector<2x16x1xf32>
    %260 = vector.broadcast %259 : vector<2x16x1xf32> to vector<2x16x32xf32>
    %261 = arith.mulf %256, %260 : vector<2x16x32xf32>
    %262 = arith.truncf %261 : vector<2x16x32xf32> to vector<2x16x32xbf16>
    %263 = vector.extract_strided_slice %180 {offsets = [0, 0, 96], sizes = [2, 32, 32], strides = [1, 1, 1]} : vector<2x32x128xbf16> to vector<2x32x32xbf16>
    "tpu.trace_start"() <{level = 10 : i32, message = "bqk,bke->bqe"}> : () -> ()
    %cst_86 = arith.constant dense<0.000000e+00> : vector<2x16x32xf32>
    %264 = tpu.matmul %262, %263, %cst_86 {dimension_numbers = #tpu.dot_dimension_numbers<[2], [1], [1], [2], [0, 0, 0, 1, 1, 2], [0], [0]>} : vector<2x16x32xbf16>, vector<2x32x32xbf16>, vector<2x16x32xf32> -> vector<2x16x32xf32>
    "tpu.trace_stop"() : () -> ()
    %265 = vector.shape_cast %264 : vector<2x16x32xf32> to vector<32x32xf32>
    %266 = arith.truncf %265 : vector<32x32xf32> to vector<32x32xbf16>
    %267 = vector.extract_strided_slice %181 {offsets = [3, 0, 0], sizes = [1, 32, 128], strides = [1, 1, 1]} : vector<4x32x128xbf16> to vector<1x32x128xbf16>
    %268 = vector.shape_cast %267 : vector<1x32x128xbf16> to vector<32x128xbf16>
    %cst_87 = arith.constant dense<0.000000e+00> : vector<32x128xf32>
    %269 = tpu.matmul %266, %268, %cst_87 {dimension_numbers = #tpu.dot_dimension_numbers<[1], [0], [0], [1], [0, 0, 1, 1], [], []>} : vector<32x32xbf16>, vector<32x128xbf16>, vector<32x128xf32> -> vector<32x128xf32>
    %270 = arith.addf %248, %269 : vector<32x128xf32>
    %271 = arith.addf %124, %270 : vector<32x128xf32>
    %c0_88 = arith.constant 0 : index
    %c0_89 = arith.constant 0 : index
    %272 = vector.load %arg14[%c0_88, %c0_89] : memref<1x128xf32, #tpu.memory_space<vmem>>, vector<1x128xf32>
    %c0_90 = arith.constant 0 : index
    %c0_91 = arith.constant 0 : index
    %273 = vector.load %arg15[%c0_90, %c0_91] : memref<1x128xf32, #tpu.memory_space<vmem>>, vector<1x128xf32>
    %cst_92 = arith.constant dense<0.000000e+00> : vector<32xf32>
    %274 = vector.multi_reduction <add>, %271, %cst_92 [1] : vector<32x128xf32> to vector<32xf32>
    %275 = vector.shape_cast %274 : vector<32xf32> to vector<32x1xf32>
    %cst_93 = arith.constant 1.280000e+02 : f32
    %276 = vector.broadcast %cst_93 : f32 to vector<32x1xf32>
    %277 = arith.divf %275, %276 : vector<32x1xf32>
    %278 = vector.broadcast %277 : vector<32x1xf32> to vector<32x128xf32>
    %279 = arith.subf %271, %278 : vector<32x128xf32>
    %280 = arith.mulf %279, %279 : vector<32x128xf32>
    %cst_94 = arith.constant dense<0.000000e+00> : vector<32xf32>
    %281 = vector.multi_reduction <add>, %280, %cst_94 [1] : vector<32x128xf32> to vector<32xf32>
    %282 = vector.shape_cast %281 : vector<32xf32> to vector<32x1xf32>
    %cst_95 = arith.constant 1.280000e+02 : f32
    %283 = vector.broadcast %cst_95 : f32 to vector<32x1xf32>
    %284 = arith.divf %282, %283 : vector<32x1xf32>
    %cst_96 = arith.constant 9.99999974E-6 : f32
    %285 = vector.broadcast %cst_96 : f32 to vector<32x1xf32>
    %286 = arith.addf %284, %285 : vector<32x1xf32>
    %287 = math.rsqrt %286 : vector<32x1xf32>
    %288 = vector.broadcast %287 : vector<32x1xf32> to vector<32x128xf32>
    %289 = arith.mulf %279, %288 : vector<32x128xf32>
    %290 = vector.broadcast %272 : vector<1x128xf32> to vector<32x128xf32>
    %291 = arith.mulf %289, %290 : vector<32x128xf32>
    %292 = vector.broadcast %273 : vector<1x128xf32> to vector<32x128xf32>
    %293 = arith.addf %291, %292 : vector<32x128xf32>
    %294 = arith.truncf %293 : vector<32x128xf32> to vector<32x128xbf16>
    %c0_97 = arith.constant 0 : index
    %c0_98 = arith.constant 0 : index
    %295 = vector.load %arg16[%c0_97, %c0_98] : memref<128x512xbf16, #tpu.memory_space<vmem>>, vector<128x512xbf16>
    %cst_99 = arith.constant dense<0.000000e+00> : vector<32x512xf32>
    %296 = tpu.matmul %294, %295, %cst_99 {dimension_numbers = #tpu.dot_dimension_numbers<[1], [0], [0], [1], [0, 0, 1, 1], [], []>} : vector<32x128xbf16>, vector<128x512xbf16>, vector<32x512xf32> -> vector<32x512xf32>
    %c0_100 = arith.constant 0 : index
    %c0_101 = arith.constant 0 : index
    %297 = vector.load %arg17[%c0_100, %c0_101] : memref<1x512xf32, #tpu.memory_space<vmem>>, vector<1x512xf32>
    %298 = vector.broadcast %297 : vector<1x512xf32> to vector<32x512xf32>
    %299 = arith.addf %296, %298 : vector<32x512xf32>
    %cst_102 = arith.constant 5.000000e-01 : f32
    %300 = vector.broadcast %cst_102 : f32 to vector<32x512xf32>
    %301 = arith.mulf %300, %299 : vector<32x512xf32>
    %cst_103 = arith.constant 0.707106769 : f32
    %302 = vector.broadcast %cst_103 : f32 to vector<32x512xf32>
    %303 = arith.mulf %299, %302 : vector<32x512xf32>
    %304 = math.erf %303 : vector<32x512xf32>
    %cst_104 = arith.constant 1.000000e+00 : f32
    %305 = vector.broadcast %cst_104 : f32 to vector<32x512xf32>
    %306 = arith.addf %305, %304 : vector<32x512xf32>
    %307 = arith.mulf %301, %306 : vector<32x512xf32>
    %308 = arith.truncf %307 : vector<32x512xf32> to vector<32x512xbf16>
    %c0_105 = arith.constant 0 : index
    %c0_106 = arith.constant 0 : index
    %309 = vector.load %arg18[%c0_105, %c0_106] : memref<512x128xbf16, #tpu.memory_space<vmem>>, vector<512x128xbf16>
    %cst_107 = arith.constant dense<0.000000e+00> : vector<32x128xf32>
    %310 = tpu.matmul %308, %309, %cst_107 {dimension_numbers = #tpu.dot_dimension_numbers<[1], [0], [0], [1], [0, 0, 1, 1], [], []>} : vector<32x512xbf16>, vector<512x128xbf16>, vector<32x128xf32> -> vector<32x128xf32>
    %c0_108 = arith.constant 0 : index
    %c0_109 = arith.constant 0 : index
    %311 = vector.load %arg19[%c0_108, %c0_109] : memref<1x128xf32, #tpu.memory_space<vmem>>, vector<1x128xf32>
    %312 = vector.broadcast %311 : vector<1x128xf32> to vector<32x128xf32>
    %313 = arith.addf %310, %312 : vector<32x128xf32>
    %314 = arith.addf %271, %313 : vector<32x128xf32>
    %315 = vector.shape_cast %314 : vector<32x128xf32> to vector<2x16x128xf32>
    %c0_110 = arith.constant 0 : index
    %c0_111 = arith.constant 0 : index
    %c0_112 = arith.constant 0 : index
    %316 = vector.load %arg20[%c0_110, %c0_111, %c0_112] : memref<2x16x128xf32, #tpu.memory_space<vmem>>, vector<2x16x128xf32>
    tpu.vector_store %arg20[%c0_110, %c0_111, %c0_112], %315 {strides = array<i32>} : memref<2x16x128xf32, #tpu.memory_space<vmem>>, vector<2x16x128xf32>,
    return
  }
  func.func @transform_0(%arg0: i32) -> (i32, i32, i32) {
    %c0_i32 = arith.constant 0 : i32
    %c0_i32_0 = arith.constant 0 : i32
    %c0_i32_1 = arith.constant 0 : i32
    return %arg0, %c0_i32, %c0_i32_0 : i32, i32, i32
  }
  func.func @transform_1(%arg0: i32) -> (i32, i32, i32) {
    %c0_i32 = arith.constant 0 : i32
    %c0_i32_0 = arith.constant 0 : i32
    %c0_i32_1 = arith.constant 0 : i32
    return %arg0, %c0_i32, %c0_i32_0 : i32, i32, i32
  }
  func.func @transform_2(%arg0: i32) -> (i32, i32) {
    %c0_i32 = arith.constant 0 : i32
    %c0_i32_0 = arith.constant 0 : i32
    %c0_i32_1 = arith.constant 0 : i32
    return %c0_i32, %c0_i32_0 : i32, i32
  }
  func.func @transform_3(%arg0: i32) -> (i32, i32) {
    %c0_i32 = arith.constant 0 : i32
    %c0_i32_0 = arith.constant 0 : i32
    %c0_i32_1 = arith.constant 0 : i32
    return %c0_i32, %c0_i32_0 : i32, i32
  }
  func.func @transform_4(%arg0: i32) -> (i32, i32) {
    %c0_i32 = arith.constant 0 : i32
    %c0_i32_0 = arith.constant 0 : i32
    %c0_i32_1 = arith.constant 0 : i32
    return %c0_i32, %c0_i32_0 : i32, i32
  }
  func.func @transform_5(%arg0: i32) -> (i32, i32, i32) {
    %c0_i32 = arith.constant 0 : i32
    %c0_i32_0 = arith.constant 0 : i32
    %c0_i32_1 = arith.constant 0 : i32
    %c0_i32_2 = arith.constant 0 : i32
    return %c0_i32, %c0_i32_0, %c0_i32_1 : i32, i32, i32
  }
  func.func @transform_6(%arg0: i32) -> (i32, i32) {
    %c0_i32 = arith.constant 0 : i32
    %c0_i32_0 = arith.constant 0 : i32
    %c0_i32_1 = arith.constant 0 : i32
    return %c0_i32, %c0_i32_0 : i32, i32
  }
  func.func @transform_7(%arg0: i32) -> (i32, i32) {
    %c0_i32 = arith.constant 0 : i32
    %c0_i32_0 = arith.constant 0 : i32
    %c0_i32_1 = arith.constant 0 : i32
    return %c0_i32, %c0_i32_0 : i32, i32
  }
  func.func @transform_8(%arg0: i32) -> (i32, i32) {
    %c0_i32 = arith.constant 0 : i32
    %c0_i32_0 = arith.constant 0 : i32
    %c0_i32_1 = arith.constant 0 : i32
    return %c0_i32, %c0_i32_0 : i32, i32
  }
  func.func @transform_9(%arg0: i32) -> (i32, i32) {
    %c0_i32 = arith.constant 0 : i32
    %c0_i32_0 = arith.constant 0 : i32
    %c0_i32_1 = arith.constant 0 : i32
    return %c0_i32, %c0_i32_0 : i32, i32
  }
  func.func @transform_10(%arg0: i32) -> (i32, i32) {
    %c0_i32 = arith.constant 0 : i32
    %c0_i32_0 = arith.constant 0 : i32
    %c0_i32_1 = arith.constant 0 : i32
    return %c0_i32, %c0_i32_0 : i32, i32
  }
  func.func @transform_11(%arg0: i32) -> (i32, i32) {
    %c0_i32 = arith.constant 0 : i32
    %c0_i32_0 = arith.constant 0 : i32
    %c0_i32_1 = arith.constant 0 : i32
    return %c0_i32, %c0_i32_0 : i32, i32
  }
  func.func @transform_12(%arg0: i32) -> (i32, i32, i32) {
    %c0_i32 = arith.constant 0 : i32
    %c0_i32_0 = arith.constant 0 : i32
    %c0_i32_1 = arith.constant 0 : i32
    %c0_i32_2 = arith.constant 0 : i32
    return %c0_i32, %c0_i32_0, %c0_i32_1 : i32, i32, i32
  }
  func.func @transform_13(%arg0: i32) -> (i32, i32) {
    %c0_i32 = arith.constant 0 : i32
    %c0_i32_0 = arith.constant 0 : i32
    %c0_i32_1 = arith.constant 0 : i32
    return %c0_i32, %c0_i32_0 : i32, i32
  }
  func.func @transform_14(%arg0: i32) -> (i32, i32) {
    %c0_i32 = arith.constant 0 : i32
    %c0_i32_0 = arith.constant 0 : i32
    %c0_i32_1 = arith.constant 0 : i32
    return %c0_i32, %c0_i32_0 : i32, i32
  }
  func.func @transform_15(%arg0: i32) -> (i32, i32) {
    %c0_i32 = arith.constant 0 : i32
    %c0_i32_0 = arith.constant 0 : i32
    %c0_i32_1 = arith.constant 0 : i32
    return %c0_i32, %c0_i32_0 : i32, i32
  }
  func.func @transform_16(%arg0: i32) -> (i32, i32) {
    %c0_i32 = arith.constant 0 : i32
    %c0_i32_0 = arith.constant 0 : i32
    %c0_i32_1 = arith.constant 0 : i32
    return %c0_i32, %c0_i32_0 : i32, i32
  }
  func.func @transform_17(%arg0: i32) -> (i32, i32) {
    %c0_i32 = arith.constant 0 : i32
    %c0_i32_0 = arith.constant 0 : i32
    %c0_i32_1 = arith.constant 0 : i32
    return %c0_i32, %c0_i32_0 : i32, i32
  }
  func.func @transform_18(%arg0: i32) -> (i32, i32) {
    %c0_i32 = arith.constant 0 : i32
    %c0_i32_0 = arith.constant 0 : i32
    %c0_i32_1 = arith.constant 0 : i32
    return %c0_i32, %c0_i32_0 : i32, i32
  }
  func.func @transform_19(%arg0: i32) -> (i32, i32, i32) {
    %c0_i32 = arith.constant 0 : i32
    %c0_i32_0 = arith.constant 0 : i32
    %c0_i32_1 = arith.constant 0 : i32
    return %arg0, %c0_i32, %c0_i32_0 : i32, i32, i32
  }
}

</mosaic_0001>

<llo_original>
// kernel: tpu_custom_call.1
$region0: #{tpu_custom_call.1}
  #allocation0 [shape = 'u32[]', space=smem, size = 0x4, offset = 0x4, fixed_abs, tag = 'smem constant byte address 0x4 - core index']
  #allocation1 [shape = 'u32[144,128]{1,0:T(1,128)}', space=vmem, size = 0x12000, scoped, tag = 'internal scratch']
  %s0 = inlined_call_operand.hbm [shape: f32[4,16,128], index: 0, kind: input, shape index: {}, may-alias: {0,19}]
  %s1 = inlined_call_operand.vmem [shape: f32[4,32,128], index: 1, kind: input, shape index: {}]
  %s2 = inlined_call_operand.vmem [shape: f32[1,128], index: 2, kind: input, shape index: {}]
  %s3 = inlined_call_operand.vmem [shape: f32[1,128], index: 3, kind: input, shape index: {}]
  %s4 = inlined_call_operand.hbm [shape: bf16[128,384], index: 4, kind: input, shape index: {}]
  %s5 = inlined_call_operand.hbm [shape: bf16[4,32,128], index: 5, kind: input, shape index: {}]
  %s6 = inlined_call_operand.vmem [shape: f32[1,128], index: 6, kind: input, shape index: {}]
  %s7 = inlined_call_operand.vmem [shape: f32[1,128], index: 7, kind: input, shape index: {}]
  %s8 = inlined_call_operand.vmem [shape: f32[1,128], index: 8, kind: input, shape index: {}]
  %s9 = inlined_call_operand.vmem [shape: f32[1,128], index: 9, kind: input, shape index: {}]
  %s10 = inlined_call_operand.hbm [shape: bf16[128,128], index: 10, kind: input, shape index: {}]
  %s11 = inlined_call_operand.hbm [shape: bf16[128,256], index: 11, kind: input, shape index: {}]
  %s12 = inlined_call_operand.hbm [shape: bf16[4,32,128], index: 12, kind: input, shape index: {}]
  %s13 = inlined_call_operand.vmem [shape: f32[1,128], index: 13, kind: input, shape index: {}]
  %s14 = inlined_call_operand.vmem [shape: f32[1,128], index: 14, kind: input, shape index: {}]
  %s15 = inlined_call_operand.hbm [shape: bf16[128,512], index: 15, kind: input, shape index: {}]
  %s16 = inlined_call_operand.vmem [shape: f32[1,512], index: 16, kind: input, shape index: {}]
  %s17 = inlined_call_operand.hbm [shape: bf16[512,128], index: 17, kind: input, shape index: {}]
  %s18 = inlined_call_operand.vmem [shape: f32[1,128], index: 18, kind: input, shape index: {}]
  %s19 = inlined_call_operand.hbm [shape: f32[4,16,128], index: 19, kind: output, shape index: {}, may-alias: {0,19}]
  %s20 = sld [smem:[#allocation0]]
  $region141: #{tpu_custom_call.1} parent=0
    _
  %s22 = ssub.s32 1, %s20
  %s23 = scalar_select 0, %s22, %s20
  $region1: #{tpu_custom_call.1} parent=0
    #allocation2 [shape = 'u8[32768]{0}', space=vmem, size = 0x8000, scoped, tag = 'input window, operand 0']
    #allocation3 [shape = 's32[2]{0}', space=sflag, size = 0x8, scoped, tag = 'scoped memory for tpu_custom_call.1']
    #allocation4 [shape = 's32[2]{0}', space=sflag, size = 0x8, scoped, tag = 'scoped memory for tpu_custom_call.1']
    #allocation5 [shape = 'u8[98304]{0}', space=vmem, size = 0x18000, scoped, tag = 'input window, operand 4, single buffered']
    #allocation6 [shape = 's32[1]{0}', space=sflag, size = 0x4, scoped, tag = 'scoped memory for tpu_custom_call.1']
    #allocation7 [shape = 'u8[32768]{0}', space=vmem, size = 0x8000, scoped, tag = 'input window, operand 5, single buffered']
    #allocation8 [shape = 'u8[32768]{0}', space=vmem, size = 0x8000, scoped, tag = 'input window, operand 10, single buffered']
    #allocation9 [shape = 's32[1]{0}', space=sflag, size = 0x4, scoped, tag = 'scoped memory for tpu_custom_call.1']
    #allocation10 [shape = 'u8[65536]{0}', space=vmem, size = 0x10000, scoped, tag = 'input window, operand 11, single buffered']
    #allocation11 [shape = 'u8[32768]{0}', space=vmem, size = 0x8000, scoped, tag = 'input window, operand 12, single buffered']
    #allocation12 [shape = 's32[1]{0}', space=sflag, size = 0x4, scoped, tag = 'scoped memory for tpu_custom_call.1']
    #allocation13 [shape = 'u8[131072]{0}', space=vmem, size = 0x20000, scoped, tag = 'input window, operand 15, single buffered']
    #allocation14 [shape = 'u8[131072]{0}', space=vmem, size = 0x20000, scoped, tag = 'input window, operand 17, single buffered']
    #allocation15 [shape = 's32[1]{0}', space=sflag, size = 0x4, scoped, tag = 'scoped memory for tpu_custom_call.1']
    #allocation16 [shape = 'u8[32768]{0}', space=vmem, size = 0x8000, scoped, tag = 'output window, operand 0']
    %24 = vsyncpa [#allocation3], 0
    %s25 = scalar_lea.sflag [#allocation3], 1
    %26 = vsyncpa %s25, 0
    %27 = vsyncpa [#allocation6], 0
    %28 = vsyncpa [#allocation9], 0
    %29 = vsyncpa [#allocation12], 0
    %30 = vsyncpa [#allocation15], 0
    %31 = vsyncpa [#allocation4], 0
    %s32 = scalar_lea.sflag [#allocation4], 1
    %33 = vsyncpa %s32, 0
    loop: start=0, step=1, limit=4
    $region2: #{tpu_custom_call.1} parent=1 // loop_pre_header
      _
    $region3: #{tpu_custom_call.1} parent=1 // loop_header
      %s35 = sphi 0, %s39
      %p36 = scmp.ge.s32.totalorder %s35, 4
      %s45 = sphi 0, %s47
      %s48 = sphi 0, %s45
      %s49 = sphi 0, %s48
      %s65 = sphi 0, %s49
      %s71 = sphi 0, %s73
      %s74 = sphi 0, %s71
      %s75 = sphi 0, %s74
      %s91 = sphi 0, %s75
      %s95 = sphi 0, %s95
      %s97 = sphi 0, %s95
      %s98 = sphi 0, %s97
      %s112 = sphi 0, %s98
      %s116 = sphi 0, %s116
      %s118 = sphi 0, %s116
      %s119 = sphi 0, %s118
      %s133 = sphi 0, %s119
      %s137 = sphi 0, %s137
      %s139 = sphi 0, %s137
      %s140 = sphi 0, %s139
      %s154 = sphi 0, %s140
      %s158 = sphi 0, %s158
      %s160 = sphi 0, %s158
      %s161 = sphi 0, %s160
      %s175 = sphi 0, %s161
      %s179 = sphi 0, %s179
      %s181 = sphi 0, %s179
      %s182 = sphi 0, %s181
      %s196 = sphi 0, %s182
      %s200 = sphi 0, %s200
      %s202 = sphi 0, %s200
      %s203 = sphi 0, %s202
      %s217 = sphi 0, %s203
      %s221 = sphi 0, %s221
      %s223 = sphi 0, %s221
      %s224 = sphi 0, %s223
      %s238 = sphi 0, %s224
      %s242 = sphi 0, %s242
      %s244 = sphi 0, %s242
      %s245 = sphi 0, %s244
      %s259 = sphi 0, %s245
      %s263 = sphi 0, %s263
      %s265 = sphi 0, %s263
      %s266 = sphi 0, %s265
      %s280 = sphi 0, %s266
      %s284 = sphi 0, %s284
      %s286 = sphi 0, %s284
      %s287 = sphi 0, %s286
      %s301 = sphi 0, %s287
      %s305 = sphi 0, %s305
      %s307 = sphi 0, %s305
      %s308 = sphi 0, %s307
      %s322 = sphi 0, %s308
      %s326 = sphi 0, %s326
      %s328 = sphi 0, %s326
      %s329 = sphi 0, %s328
      %s343 = sphi 0, %s329
      %s347 = sphi 0, %s347
      %s349 = sphi 0, %s347
      %s350 = sphi 0, %s349
      %s364 = sphi 0, %s350
      %s368 = sphi 0, %s368
      %s370 = sphi 0, %s368
      %s371 = sphi 0, %s370
      %s385 = sphi 0, %s371
      %s389 = sphi 0, %s389
      %s391 = sphi 0, %s389
      %s392 = sphi 0, %s391
      %s406 = sphi 0, %s392
      %s410 = sphi 0, %s410
      %s412 = sphi 0, %s410
      %s413 = sphi 0, %s412
      %s427 = sphi 0, %s413
      %s431 = sphi 0, %s431
      %s433 = sphi 0, %s431
      %s434 = sphi 0, %s433
      %s448 = sphi 0, %s434
      %s454 = sphi 0, %s456
      %s457 = sphi 0, %s454
      %s458 = sphi 0, %s457
      %s474 = sphi 0, %s458
    $region4: #{tpu_custom_call.1} parent=1 // loop_header_branch
      %38 = sbr.rel (%p36) target = $region8
    $region5: #{tpu_custom_call.1} parent=1 // loop_body
      %s40 = ssub.s32 %s35, 1
      %s41 = ssub.s32 %s35, 2
      %s42 = sadd.s32 %s35, 1
      %s43 = ssub.s32 %s35, %s42
      %p44 = scmp.eq.s32.totalorder %s43, 0
      %s46 = sadd.s32 %s45, 1
      %s47 = scalar_select %p44, %s45, %s46
      %p50 = pneg %p44
      %p51 = scmp.eq.s32.totalorder %s35, 1
      %p52 = por %p50, %p51
      %p53 = scmp.ne.s32.totalorder %s45, %s48
      %p54 = scmp.eq.s32.totalorder %s35, 0
      %p55 = por %p53, %p54
      %p56 = scmp.ne.s32.totalorder %s45, %s48
      %p57 = scmp.eq.s32.totalorder %s40, 1
      %p58 = por %p56, %p57
      %p59 = scmp.ne.s32.totalorder %s48, %s49
      %p60 = scmp.eq.s32.totalorder %s40, 0
      %p61 = por %p59, %p60
      %p62 = scmp.ne.s32.totalorder %s48, %s49
      %p63 = scmp.eq.s32.totalorder %s41, 1
      %p64 = por %p62, %p63
      %p66 = scmp.ne.s32.totalorder %s49, %s65
      %p67 = scmp.eq.s32.totalorder %s41, 0
      %p68 = por %p66, %p67
      %s69 = ssub.s32 %s35, %s42
      %p70 = scmp.eq.s32.totalorder %s69, 0
      %s72 = sadd.s32 %s71, 1
      %s73 = scalar_select %p70, %s71, %s72
      %p76 = pneg %p70
      %p77 = scmp.eq.s32.totalorder %s35, 1
      %p78 = por %p76, %p77
      %p79 = scmp.ne.s32.totalorder %s71, %s74
      %p80 = scmp.eq.s32.totalorder %s35, 0
      %p81 = por %p79, %p80
      %p82 = scmp.ne.s32.totalorder %s71, %s74
      %p83 = scmp.eq.s32.totalorder %s40, 1
      %p84 = por %p82, %p83
      %p85 = scmp.ne.s32.totalorder %s74, %s75
      %p86 = scmp.eq.s32.totalorder %s40, 0
      %p87 = por %p85, %p86
      %p88 = scmp.ne.s32.totalorder %s74, %s75
      %p89 = scmp.eq.s32.totalorder %s41, 1
      %p90 = por %p88, %p89
      %p92 = scmp.ne.s32.totalorder %s75, %s91
      %p93 = scmp.eq.s32.totalorder %s41, 0
      %p94 = por %p92, %p93
      %s96 = sadd.s32 %s95, 1
      %p99 = scmp.eq.s32.totalorder %s35, 1
      %p100 = scmp.ne.s32.totalorder %s95, %s97
      %p101 = scmp.eq.s32.totalorder %s35, 0
      %p102 = por %p100, %p101
      %p103 = scmp.ne.s32.totalorder %s95, %s97
      %p104 = scmp.eq.s32.totalorder %s40, 1
      %p105 = por %p103, %p104
      %p106 = scmp.ne.s32.totalorder %s97, %s98
      %p107 = scmp.eq.s32.totalorder %s40, 0
      %p108 = por %p106, %p107
      %p109 = scmp.ne.s32.totalorder %s97, %s98
      %p110 = scmp.eq.s32.totalorder %s41, 1
      %p111 = por %p109, %p110
      %p113 = scmp.ne.s32.totalorder %s98, %s112
      %p114 = scmp.eq.s32.totalorder %s41, 0
      %p115 = por %p113, %p114
      %s117 = sadd.s32 %s116, 1
      %p120 = scmp.eq.s32.totalorder %s35, 1
      %p121 = scmp.ne.s32.totalorder %s116, %s118
      %p122 = scmp.eq.s32.totalorder %s35, 0
      %p123 = por %p121, %p122
      %p124 = scmp.ne.s32.totalorder %s116, %s118
      %p125 = scmp.eq.s32.totalorder %s40, 1
      %p126 = por %p124, %p125
      %p127 = scmp.ne.s32.totalorder %s118, %s119
      %p128 = scmp.eq.s32.totalorder %s40, 0
      %p129 = por %p127, %p128
      %p130 = scmp.ne.s32.totalorder %s118, %s119
      %p131 = scmp.eq.s32.totalorder %s41, 1
      %p132 = por %p130, %p131
      %p134 = scmp.ne.s32.totalorder %s119, %s133
      %p135 = scmp.eq.s32.totalorder %s41, 0
      %p136 = por %p134, %p135
      %s138 = sadd.s32 %s137, 1
      %p141 = scmp.eq.s32.totalorder %s35, 1
      %p142 = scmp.ne.s32.totalorder %s137, %s139
      %p143 = scmp.eq.s32.totalorder %s35, 0
      %p144 = por %p142, %p143
      %p145 = scmp.ne.s32.totalorder %s137, %s139
      %p146 = scmp.eq.s32.totalorder %s40, 1
      %p147 = por %p145, %p146
      %p148 = scmp.ne.s32.totalorder %s139, %s140
      %p149 = scmp.eq.s32.totalorder %s40, 0
      %p150 = por %p148, %p149
      %p151 = scmp.ne.s32.totalorder %s139, %s140
      %p152 = scmp.eq.s32.totalorder %s41, 1
      %p153 = por %p151, %p152
      %p155 = scmp.ne.s32.totalorder %s140, %s154
      %p156 = scmp.eq.s32.totalorder %s41, 0
      %p157 = por %p155, %p156
      %s159 = sadd.s32 %s158, 1
      %p162 = scmp.eq.s32.totalorder %s35, 1
      %p163 = scmp.ne.s32.totalorder %s158, %s160
      %p164 = scmp.eq.s32.totalorder %s35, 0
      %p165 = por %p163, %p164
      %p166 = scmp.ne.s32.totalorder %s158, %s160
      %p167 = scmp.eq.s32.totalorder %s40, 1
      %p168 = por %p166, %p167
      %p169 = scmp.ne.s32.totalorder %s160, %s161
      %p170 = scmp.eq.s32.totalorder %s40, 0
      %p171 = por %p169, %p170
      %p172 = scmp.ne.s32.totalorder %s160, %s161
      %p173 = scmp.eq.s32.totalorder %s41, 1
      %p174 = por %p172, %p173
      %p176 = scmp.ne.s32.totalorder %s161, %s175
      %p177 = scmp.eq.s32.totalorder %s41, 0
      %p178 = por %p176, %p177
      %s180 = sadd.s32 %s179, 1
      %p183 = scmp.eq.s32.totalorder %s35, 1
      %p184 = scmp.ne.s32.totalorder %s179, %s181
      %p185 = scmp.eq.s32.totalorder %s35, 0
      %p186 = por %p184, %p185
      %p187 = scmp.ne.s32.totalorder %s179, %s181
      %p188 = scmp.eq.s32.totalorder %s40, 1
      %p189 = por %p187, %p188
      %p190 = scmp.ne.s32.totalorder %s181, %s182
      %p191 = scmp.eq.s32.totalorder %s40, 0
      %p192 = por %p190, %p191
      %p193 = scmp.ne.s32.totalorder %s181, %s182
      %p194 = scmp.eq.s32.totalorder %s41, 1
      %p195 = por %p193, %p194
      %p197 = scmp.ne.s32.totalorder %s182, %s196
      %p198 = scmp.eq.s32.totalorder %s41, 0
      %p199 = por %p197, %p198
      %s201 = sadd.s32 %s200, 1
      %p204 = scmp.eq.s32.totalorder %s35, 1
      %p205 = scmp.ne.s32.totalorder %s200, %s202
      %p206 = scmp.eq.s32.totalorder %s35, 0
      %p207 = por %p205, %p206
      %p208 = scmp.ne.s32.totalorder %s200, %s202
      %p209 = scmp.eq.s32.totalorder %s40, 1
      %p210 = por %p208, %p209
      %p211 = scmp.ne.s32.totalorder %s202, %s203
      %p212 = scmp.eq.s32.totalorder %s40, 0
      %p213 = por %p211, %p212
      %p214 = scmp.ne.s32.totalorder %s202, %s203
      %p215 = scmp.eq.s32.totalorder %s41, 1
      %p216 = por %p214, %p215
      %p218 = scmp.ne.s32.totalorder %s203, %s217
      %p219 = scmp.eq.s32.totalorder %s41, 0
      %p220 = por %p218, %p219
      %s222 = sadd.s32 %s221, 1
      %p225 = scmp.eq.s32.totalorder %s35, 1
      %p226 = scmp.ne.s32.totalorder %s221, %s223
      %p227 = scmp.eq.s32.totalorder %s35, 0
      %p228 = por %p226, %p227
      %p229 = scmp.ne.s32.totalorder %s221, %s223
      %p230 = scmp.eq.s32.totalorder %s40, 1
      %p231 = por %p229, %p230
      %p232 = scmp.ne.s32.totalorder %s223, %s224
      %p233 = scmp.eq.s32.totalorder %s40, 0
      %p234 = por %p232, %p233
      %p235 = scmp.ne.s32.totalorder %s223, %s224
      %p236 = scmp.eq.s32.totalorder %s41, 1
      %p237 = por %p235, %p236
      %p239 = scmp.ne.s32.totalorder %s224, %s238
      %p240 = scmp.eq.s32.totalorder %s41, 0
      %p241 = por %p239, %p240
      %s243 = sadd.s32 %s242, 1
      %p246 = scmp.eq.s32.totalorder %s35, 1
      %p247 = scmp.ne.s32.totalorder %s242, %s244
      %p248 = scmp.eq.s32.totalorder %s35, 0
      %p249 = por %p247, %p248
      %p250 = scmp.ne.s32.totalorder %s242, %s244
      %p251 = scmp.eq.s32.totalorder %s40, 1
      %p252 = por %p250, %p251
      %p253 = scmp.ne.s32.totalorder %s244, %s245
      %p254 = scmp.eq.s32.totalorder %s40, 0
      %p255 = por %p253, %p254
      %p256 = scmp.ne.s32.totalorder %s244, %s245
      %p257 = scmp.eq.s32.totalorder %s41, 1
      %p258 = por %p256, %p257
      %p260 = scmp.ne.s32.totalorder %s245, %s259
      %p261 = scmp.eq.s32.totalorder %s41, 0
      %p262 = por %p260, %p261
      %s264 = sadd.s32 %s263, 1
      %p267 = scmp.eq.s32.totalorder %s35, 1
      %p268 = scmp.ne.s32.totalorder %s263, %s265
      %p269 = scmp.eq.s32.totalorder %s35, 0
      %p270 = por %p268, %p269
      %p271 = scmp.ne.s32.totalorder %s263, %s265
      %p272 = scmp.eq.s32.totalorder %s40, 1
      %p273 = por %p271, %p272
      %p274 = scmp.ne.s32.totalorder %s265, %s266
      %p275 = scmp.eq.s32.totalorder %s40, 0
      %p276 = por %p274, %p275
      %p277 = scmp.ne.s32.totalorder %s265, %s266
      %p278 = scmp.eq.s32.totalorder %s41, 1
      %p279 = por %p277, %p278
      %p281 = scmp.ne.s32.totalorder %s266, %s280
      %p282 = scmp.eq.s32.totalorder %s41, 0
      %p283 = por %p281, %p282
      %s285 = sadd.s32 %s284, 1
      %p288 = scmp.eq.s32.totalorder %s35, 1
      %p289 = scmp.ne.s32.totalorder %s284, %s286
      %p290 = scmp.eq.s32.totalorder %s35, 0
      %p291 = por %p289, %p290
      %p292 = scmp.ne.s32.totalorder %s284, %s286
      %p293 = scmp.eq.s32.totalorder %s40, 1
      %p294 = por %p292, %p293
      %p295 = scmp.ne.s32.totalorder %s286, %s287
      %p296 = scmp.eq.s32.totalorder %s40, 0
      %p297 = por %p295, %p296
      %p298 = scmp.ne.s32.totalorder %s286, %s287
      %p299 = scmp.eq.s32.totalorder %s41, 1
      %p300 = por %p298, %p299
      %p302 = scmp.ne.s32.totalorder %s287, %s301
      %p303 = scmp.eq.s32.totalorder %s41, 0
      %p304 = por %p302, %p303
      %s306 = sadd.s32 %s305, 1
      %p309 = scmp.eq.s32.totalorder %s35, 1
      %p310 = scmp.ne.s32.totalorder %s305, %s307
      %p311 = scmp.eq.s32.totalorder %s35, 0
      %p312 = por %p310, %p311
      %p313 = scmp.ne.s32.totalorder %s305, %s307
      %p314 = scmp.eq.s32.totalorder %s40, 1
      %p315 = por %p313, %p314
      %p316 = scmp.ne.s32.totalorder %s307, %s308
      %p317 = scmp.eq.s32.totalorder %s40, 0
      %p318 = por %p316, %p317
      %p319 = scmp.ne.s32.totalorder %s307, %s308
      %p320 = scmp.eq.s32.totalorder %s41, 1
      %p321 = por %p319, %p320
      %p323 = scmp.ne.s32.totalorder %s308, %s322
      %p324 = scmp.eq.s32.totalorder %s41, 0
      %p325 = por %p323, %p324
      %s327 = sadd.s32 %s326, 1
      %p330 = scmp.eq.s32.totalorder %s35, 1
      %p331 = scmp.ne.s32.totalorder %s326, %s328
      %p332 = scmp.eq.s32.totalorder %s35, 0
      %p333 = por %p331, %p332
      %p334 = scmp.ne.s32.totalorder %s326, %s328
      %p335 = scmp.eq.s32.totalorder %s40, 1
      %p336 = por %p334, %p335
      %p337 = scmp.ne.s32.totalorder %s328, %s329
      %p338 = scmp.eq.s32.totalorder %s40, 0
      %p339 = por %p337, %p338
      %p340 = scmp.ne.s32.totalorder %s328, %s329
      %p341 = scmp.eq.s32.totalorder %s41, 1
      %p342 = por %p340, %p341
      %p344 = scmp.ne.s32.totalorder %s329, %s343
      %p345 = scmp.eq.s32.totalorder %s41, 0
      %p346 = por %p344, %p345
      %s348 = sadd.s32 %s347, 1
      %p351 = scmp.eq.s32.totalorder %s35, 1
      %p352 = scmp.ne.s32.totalorder %s347, %s349
      %p353 = scmp.eq.s32.totalorder %s35, 0
      %p354 = por %p352, %p353
      %p355 = scmp.ne.s32.totalorder %s347, %s349
      %p356 = scmp.eq.s32.totalorder %s40, 1
      %p357 = por %p355, %p356
      %p358 = scmp.ne.s32.totalorder %s349, %s350
      %p359 = scmp.eq.s32.totalorder %s40, 0
      %p360 = por %p358, %p359
      %p361 = scmp.ne.s32.totalorder %s349, %s350
      %p362 = scmp.eq.s32.totalorder %s41, 1
      %p363 = por %p361, %p362
      %p365 = scmp.ne.s32.totalorder %s350, %s364
      %p366 = scmp.eq.s32.totalorder %s41, 0
      %p367 = por %p365, %p366
      %s369 = sadd.s32 %s368, 1
      %p372 = scmp.eq.s32.totalorder %s35, 1
      %p373 = scmp.ne.s32.totalorder %s368, %s370
      %p374 = scmp.eq.s32.totalorder %s35, 0
      %p375 = por %p373, %p374
      %p376 = scmp.ne.s32.totalorder %s368, %s370
      %p377 = scmp.eq.s32.totalorder %s40, 1
      %p378 = por %p376, %p377
      %p379 = scmp.ne.s32.totalorder %s370, %s371
      %p380 = scmp.eq.s32.totalorder %s40, 0
      %p381 = por %p379, %p380
      %p382 = scmp.ne.s32.totalorder %s370, %s371
      %p383 = scmp.eq.s32.totalorder %s41, 1
      %p384 = por %p382, %p383
      %p386 = scmp.ne.s32.totalorder %s371, %s385
      %p387 = scmp.eq.s32.totalorder %s41, 0
      %p388 = por %p386, %p387
      %s390 = sadd.s32 %s389, 1
      %p393 = scmp.eq.s32.totalorder %s35, 1
      %p394 = scmp.ne.s32.totalorder %s389, %s391
      %p395 = scmp.eq.s32.totalorder %s35, 0
      %p396 = por %p394, %p395
      %p397 = scmp.ne.s32.totalorder %s389, %s391
      %p398 = scmp.eq.s32.totalorder %s40, 1
      %p399 = por %p397, %p398
      %p400 = scmp.ne.s32.totalorder %s391, %s392
      %p401 = scmp.eq.s32.totalorder %s40, 0
      %p402 = por %p400, %p401
      %p403 = scmp.ne.s32.totalorder %s391, %s392
      %p404 = scmp.eq.s32.totalorder %s41, 1
      %p405 = por %p403, %p404
      %p407 = scmp.ne.s32.totalorder %s392, %s406
      %p408 = scmp.eq.s32.totalorder %s41, 0
      %p409 = por %p407, %p408
      %s411 = sadd.s32 %s410, 1
      %p414 = scmp.eq.s32.totalorder %s35, 1
      %p415 = scmp.ne.s32.totalorder %s410, %s412
      %p416 = scmp.eq.s32.totalorder %s35, 0
      %p417 = por %p415, %p416
      %p418 = scmp.ne.s32.totalorder %s410, %s412
      %p419 = scmp.eq.s32.totalorder %s40, 1
      %p420 = por %p418, %p419
      %p421 = scmp.ne.s32.totalorder %s412, %s413
      %p422 = scmp.eq.s32.totalorder %s40, 0
      %p423 = por %p421, %p422
      %p424 = scmp.ne.s32.totalorder %s412, %s413
      %p425 = scmp.eq.s32.totalorder %s41, 1
      %p426 = por %p424, %p425
      %p428 = scmp.ne.s32.totalorder %s413, %s427
      %p429 = scmp.eq.s32.totalorder %s41, 0
      %p430 = por %p428, %p429
      %s432 = sadd.s32 %s431, 1
      %p435 = scmp.eq.s32.totalorder %s35, 1
      %p436 = scmp.ne.s32.totalorder %s431, %s433
      %p437 = scmp.eq.s32.totalorder %s35, 0
      %p438 = por %p436, %p437
      %p439 = scmp.ne.s32.totalorder %s431, %s433
      %p440 = scmp.eq.s32.totalorder %s40, 1
      %p441 = por %p439, %p440
      %p442 = scmp.ne.s32.totalorder %s433, %s434
      %p443 = scmp.eq.s32.totalorder %s40, 0
      %p444 = por %p442, %p443
      %p445 = scmp.ne.s32.totalorder %s433, %s434
      %p446 = scmp.eq.s32.totalorder %s41, 1
      %p447 = por %p445, %p446
      %p449 = scmp.ne.s32.totalorder %s434, %s448
      %p450 = scmp.eq.s32.totalorder %s41, 0
      %p451 = por %p449, %p450
      %s452 = ssub.s32 %s35, %s42
      %p453 = scmp.eq.s32.totalorder %s452, 0
      %s455 = sadd.s32 %s454, 1
      %s456 = scalar_select %p453, %s454, %s455
      %p459 = pneg %p453
      %p460 = scmp.eq.s32.totalorder %s35, 1
      %p461 = por %p459, %p460
      %p462 = scmp.ne.s32.totalorder %s454, %s457
      %p463 = scmp.eq.s32.totalorder %s35, 0
      %p464 = por %p462, %p463
      %p465 = scmp.ne.s32.totalorder %s454, %s457
      %p466 = scmp.eq.s32.totalorder %s40, 1
      %p467 = por %p465, %p466
      %p468 = scmp.ne.s32.totalorder %s457, %s458
      %p469 = scmp.eq.s32.totalorder %s40, 0
      %p470 = por %p468, %p469
      %p471 = scmp.ne.s32.totalorder %s457, %s458
      %p472 = scmp.eq.s32.totalorder %s41, 1
      %p473 = por %p471, %p472
      %p475 = scmp.ne.s32.totalorder %s458, %s474
      %p476 = scmp.eq.s32.totalorder %s41, 0
      %p477 = por %p475, %p476
      %p478 = scmp.le.s32.totalorder 1, %s35
      %p479 = scmp.lt.s32.totalorder %s35, 3
      %p480 = pnand %p478, %p479
      %p481 = pneg %p480
      // Predicated region
      $region9: #{tpu_custom_call.1} parent=5 // pred_check
        _
      $region10: #{tpu_custom_call.1} parent=5 // pred_check_branch
        %483 = sbr.rel (%p480) target = $region12
      $region11: #{tpu_custom_call.1} parent=5 // pred_region
        %s484 = ssub.s32 %s35, 1
        // Predicated region
        $region13: #{tpu_custom_call.1} parent=11 // pred_check
          %p485 = pneg %p108
        $region14: #{tpu_custom_call.1} parent=11 // pred_check_branch
          %487 = sbr.rel (%p485) target = $region16
        $region15: #{tpu_custom_call.1} parent=11 // pred_region
          _
        $region16: #{tpu_custom_call.1} parent=11 // pred_fallthru
          _
        // Predicated region
        $region17: #{tpu_custom_call.1} parent=11 // pred_check
          %p488 = pneg %p129
        $region18: #{tpu_custom_call.1} parent=11 // pred_check_branch
          %490 = sbr.rel (%p488) target = $region20
        $region19: #{tpu_custom_call.1} parent=11 // pred_region
          _
        $region20: #{tpu_custom_call.1} parent=11 // pred_fallthru
          _
        // Predicated region
        $region21: #{tpu_custom_call.1} parent=11 // pred_check
          %p491 = pneg %p150
        $region22: #{tpu_custom_call.1} parent=11 // pred_check_branch
          %493 = sbr.rel (%p491) target = $region24
        $region23: #{tpu_custom_call.1} parent=11 // pred_region
          %s495 = ssub.s32 3072, 3072
          %496 = vsyncadd [#allocation6], %s495
          %s497 = sshll.u32 [#allocation5], 4
          %s498 = int_to_ptr.vmem [resolvable:$true] %s497
          %503 = dma.hbm_to_vmem [thread:$0]  %s4, 3072, %s498, [#allocation6], 192, 192, 12
        $region24: #{tpu_custom_call.1} parent=11 // pred_fallthru
          _
        // Predicated region
        $region25: #{tpu_custom_call.1} parent=11 // pred_check
          %p504 = pneg %p171
        $region26: #{tpu_custom_call.1} parent=11 // pred_check_branch
          %506 = sbr.rel (%p504) target = $region28
        $region27: #{tpu_custom_call.1} parent=11 // pred_region
          %s508 = ssub.s32 1024, 1024
          %509 = vsyncadd [#allocation6], %s508
          %s510 = sshll.u32 [#allocation7], 4
          %s511 = int_to_ptr.vmem [resolvable:$true] %s510
          %516 = dma.hbm_to_vmem [thread:$0]  %s5, 1024, %s511, [#allocation6], 64, 64, 4
        $region28: #{tpu_custom_call.1} parent=11 // pred_fallthru
          _
        // Predicated region
        $region29: #{tpu_custom_call.1} parent=11 // pred_check
          %p517 = pneg %p192
        $region30: #{tpu_custom_call.1} parent=11 // pred_check_branch
          %519 = sbr.rel (%p517) target = $region32
        $region31: #{tpu_custom_call.1} parent=11 // pred_region
          _
        $region32: #{tpu_custom_call.1} parent=11 // pred_fallthru
          _
        // Predicated region
        $region33: #{tpu_custom_call.1} parent=11 // pred_check
          %p520 = pneg %p213
        $region34: #{tpu_custom_call.1} parent=11 // pred_check_branch
          %522 = sbr.rel (%p520) target = $region36
        $region35: #{tpu_custom_call.1} parent=11 // pred_region
          _
        $region36: #{tpu_custom_call.1} parent=11 // pred_fallthru
          _
        // Predicated region
        $region37: #{tpu_custom_call.1} parent=11 // pred_check
          %p523 = pneg %p234
        $region38: #{tpu_custom_call.1} parent=11 // pred_check_branch
          %525 = sbr.rel (%p523) target = $region40
        $region39: #{tpu_custom_call.1} parent=11 // pred_region
          _
        $region40: #{tpu_custom_call.1} parent=11 // pred_fallthru
          _
        // Predicated region
        $region41: #{tpu_custom_call.1} parent=11 // pred_check
          %p526 = pneg %p255
        $region42: #{tpu_custom_call.1} parent=11 // pred_check_branch
          %528 = sbr.rel (%p526) target = $region44
        $region43: #{tpu_custom_call.1} parent=11 // pred_region
          _
        $region44: #{tpu_custom_call.1} parent=11 // pred_fallthru
          _
        // Predicated region
        $region45: #{tpu_custom_call.1} parent=11 // pred_check
          %p529 = pneg %p276
        $region46: #{tpu_custom_call.1} parent=11 // pred_check_branch
          %531 = sbr.rel (%p529) target = $region48
        $region47: #{tpu_custom_call.1} parent=11 // pred_region
          %s533 = ssub.s32 1024, 1024
          %534 = vsyncadd [#allocation9], %s533
          %s535 = sshll.u32 [#allocation8], 4
          %s536 = int_to_ptr.vmem [resolvable:$true] %s535
          %541 = dma.hbm_to_vmem [thread:$0]  %s10, 1024, %s536, [#allocation9], 64, 64, 4
        $region48: #{tpu_custom_call.1} parent=11 // pred_fallthru
          _
        // Predicated region
        $region49: #{tpu_custom_call.1} parent=11 // pred_check
          %p542 = pneg %p297
        $region50: #{tpu_custom_call.1} parent=11 // pred_check_branch
          %544 = sbr.rel (%p542) target = $region52
        $region51: #{tpu_custom_call.1} parent=11 // pred_region
          %s546 = ssub.s32 2048, 2048
          %547 = vsyncadd [#allocation9], %s546
          %s548 = sshll.u32 [#allocation10], 4
          %s549 = int_to_ptr.vmem [resolvable:$true] %s548
          %554 = dma.hbm_to_vmem [thread:$0]  %s11, 2048, %s549, [#allocation9], 128, 128, 8
        $region52: #{tpu_custom_call.1} parent=11 // pred_fallthru
          _
        // Predicated region
        $region53: #{tpu_custom_call.1} parent=11 // pred_check
          %p555 = pneg %p318
        $region54: #{tpu_custom_call.1} parent=11 // pred_check_branch
          %557 = sbr.rel (%p555) target = $region56
        $region55: #{tpu_custom_call.1} parent=11 // pred_region
          %s559 = ssub.s32 1024, 1024
          %560 = vsyncadd [#allocation12], %s559
          %s561 = sshll.u32 [#allocation11], 4
          %s562 = int_to_ptr.vmem [resolvable:$true] %s561
          %567 = dma.hbm_to_vmem [thread:$0]  %s12, 1024, %s562, [#allocation12], 64, 64, 4
        $region56: #{tpu_custom_call.1} parent=11 // pred_fallthru
          _
        // Predicated region
        $region57: #{tpu_custom_call.1} parent=11 // pred_check
          %p568 = pneg %p339
        $region58: #{tpu_custom_call.1} parent=11 // pred_check_branch
          %570 = sbr.rel (%p568) target = $region60
        $region59: #{tpu_custom_call.1} parent=11 // pred_region
          _
        $region60: #{tpu_custom_call.1} parent=11 // pred_fallthru
          _
        // Predicated region
        $region61: #{tpu_custom_call.1} parent=11 // pred_check
          %p571 = pneg %p360
        $region62: #{tpu_custom_call.1} parent=11 // pred_check_branch
          %573 = sbr.rel (%p571) target = $region64
        $region63: #{tpu_custom_call.1} parent=11 // pred_region
          _
        $region64: #{tpu_custom_call.1} parent=11 // pred_fallthru
          _
        // Predicated region
        $region65: #{tpu_custom_call.1} parent=11 // pred_check
          %p574 = pneg %p381
        $region66: #{tpu_custom_call.1} parent=11 // pred_check_branch
          %576 = sbr.rel (%p574) target = $region68
        $region67: #{tpu_custom_call.1} parent=11 // pred_region
          %s578 = ssub.s32 4096, 4096
          %579 = vsyncadd [#allocation12], %s578
          %s580 = sshll.u32 [#allocation13], 4
          %s581 = int_to_ptr.vmem [resolvable:$true] %s580
          %586 = dma.hbm_to_vmem [thread:$0]  %s15, 4096, %s581, [#allocation12], 256, 256, 16
        $region68: #{tpu_custom_call.1} parent=11 // pred_fallthru
          _
        // Predicated region
        $region69: #{tpu_custom_call.1} parent=11 // pred_check
          %p587 = pneg %p402
        $region70: #{tpu_custom_call.1} parent=11 // pred_check_branch
          %589 = sbr.rel (%p587) target = $region72
        $region71: #{tpu_custom_call.1} parent=11 // pred_region
          _
        $region72: #{tpu_custom_call.1} parent=11 // pred_fallthru
          _
        // Predicated region
        $region73: #{tpu_custom_call.1} parent=11 // pred_check
          %p590 = pneg %p423
        $region74: #{tpu_custom_call.1} parent=11 // pred_check_branch
          %592 = sbr.rel (%p590) target = $region76
        $region75: #{tpu_custom_call.1} parent=11 // pred_region
          %s594 = ssub.s32 4096, 4096
          %595 = vsyncadd [#allocation15], %s594
          %s596 = sshll.u32 [#allocation14], 4
          %s597 = int_to_ptr.vmem [resolvable:$true] %s596
          %602 = dma.hbm_to_vmem [thread:$0]  %s17, 4096, %s597, [#allocation15], 64, 64, 4
        $region76: #{tpu_custom_call.1} parent=11 // pred_fallthru
          _
        // Predicated region
        $region77: #{tpu_custom_call.1} parent=11 // pred_check
          %p603 = pneg %p444
        $region78: #{tpu_custom_call.1} parent=11 // pred_check_branch
          %605 = sbr.rel (%p603) target = $region80
        $region79: #{tpu_custom_call.1} parent=11 // pred_region
          _
        $region80: #{tpu_custom_call.1} parent=11 // pred_fallthru
          _
      $region12: #{tpu_custom_call.1} parent=5 // pred_fallthru
        _
      %p606 = scmp.lt.s32.totalorder %s35, 2
      // Predicated region
      $region81: #{tpu_custom_call.1} parent=5 // pred_check
        %p607 = pneg %p606
      $region82: #{tpu_custom_call.1} parent=5 // pred_check_branch
        %609 = sbr.rel (%p607) target = $region84
      $region83: #{tpu_custom_call.1} parent=5 // pred_region
        // Predicated region
        $region85: #{tpu_custom_call.1} parent=83 // pred_check
          %p610 = pneg %p55
        $region86: #{tpu_custom_call.1} parent=83 // pred_check_branch
          %612 = sbr.rel (%p610) target = $region88
        $region87: #{tpu_custom_call.1} parent=83 // pred_region
          %s613 = sand.u32 %s45, 1
          %s614 = scalar_lea.sflag [#allocation3], %s613
          %s615 = sand.u32 %s45, 1
          %s616 = smul.addr %s615, 32
          %s617 = scalar_lea.vmem [#allocation2], %s616
          %s618 = smul.u32 2, %s35
          %s620 = ssub.s32 512, 512
          %621 = vsyncadd %s614, %s620
          %s622 = smul.addr %s618, 2
          %s623 = smul.addr %s622, 128
          %s624 = scalar_lea.hbm %s0, %s623
          %s625 = sshll.u32 %s617, 4
          %s626 = int_to_ptr.vmem [resolvable:$true] %s625
          %631 = dma.hbm_to_vmem [thread:$0]  %s624, 512, %s626, %s614, 128, 128, 8
        $region88: #{tpu_custom_call.1} parent=83 // pred_fallthru
          _
        // Predicated region
        $region89: #{tpu_custom_call.1} parent=83 // pred_check
          %p632 = pneg %p81
        $region90: #{tpu_custom_call.1} parent=83 // pred_check_branch
          %634 = sbr.rel (%p632) target = $region92
        $region91: #{tpu_custom_call.1} parent=83 // pred_region
          %s635 = smul.u32 2, %s35
          %p636 = scmp.lt.s32.totalorder %s635, 3
          %s637 = scalar_select %p636, %s635, 3
          %s638 = smul.addr %s637, 4
          %s639 = smul.addr %s638, 8
          %s640 = scalar_lea.vmem %s1, %s639
          %s641 = smul.u32 2, %s35
        $region92: #{tpu_custom_call.1} parent=83 // pred_fallthru
          _
      $region84: #{tpu_custom_call.1} parent=5 // pred_fallthru
        _
      %p642 = scmp.le.s32.totalorder 1, %s35
      %p643 = scmp.lt.s32.totalorder %s35, 3
      %p644 = pnand %p642, %p643
      %p645 = pneg %p644
      // Predicated region
      $region93: #{tpu_custom_call.1} parent=5 // pred_check
        _
      $region94: #{tpu_custom_call.1} parent=5 // pred_check_branch
        %647 = sbr.rel (%p644) target = $region96
      $region95: #{tpu_custom_call.1} parent=5 // pred_region
        %s648 = ssub.s32 %s35, 1
        %s649 = sand.u32 %s48, 1
        %s650 = scalar_lea.sflag [#allocation3], %s649
        %s651 = sand.u32 %s48, 1
        %s652 = smul.addr %s651, 32
        %s653 = scalar_lea.vmem [#allocation2], %s652
        // Predicated region
        $region97: #{tpu_custom_call.1} parent=95 // pred_check
          %p654 = pneg %p61
        $region98: #{tpu_custom_call.1} parent=95 // pred_check_branch
          %656 = sbr.rel (%p654) target = $region100
        $region99: #{tpu_custom_call.1} parent=95 // pred_region
          %657 = dma.done %s650, 512
        $region100: #{tpu_custom_call.1} parent=95 // pred_fallthru
          _
        // Predicated region
        $region101: #{tpu_custom_call.1} parent=95 // pred_check
          %p658 = pneg %p150
        $region102: #{tpu_custom_call.1} parent=95 // pred_check_branch
          %660 = sbr.rel (%p658) target = $region104
        $region103: #{tpu_custom_call.1} parent=95 // pred_region
          %661 = dma.done [#allocation6], 3072
        $region104: #{tpu_custom_call.1} parent=95 // pred_fallthru
          _
        // Predicated region
        $region105: #{tpu_custom_call.1} parent=95 // pred_check
          %p662 = pneg %p171
        $region106: #{tpu_custom_call.1} parent=95 // pred_check_branch
          %664 = sbr.rel (%p662) target = $region108
        $region107: #{tpu_custom_call.1} parent=95 // pred_region
          %665 = dma.done [#allocation6], 1024
        $region108: #{tpu_custom_call.1} parent=95 // pred_fallthru
          _
        // Predicated region
        $region109: #{tpu_custom_call.1} parent=95 // pred_check
          %p666 = pneg %p276
        $region110: #{tpu_custom_call.1} parent=95 // pred_check_branch
          %668 = sbr.rel (%p666) target = $region112
        $region111: #{tpu_custom_call.1} parent=95 // pred_region
          %669 = dma.done [#allocation9], 1024
        $region112: #{tpu_custom_call.1} parent=95 // pred_fallthru
          _
        // Predicated region
        $region113: #{tpu_custom_call.1} parent=95 // pred_check
          %p670 = pneg %p297
        $region114: #{tpu_custom_call.1} parent=95 // pred_check_branch
          %672 = sbr.rel (%p670) target = $region116
        $region115: #{tpu_custom_call.1} parent=95 // pred_region
          %673 = dma.done [#allocation9], 2048
        $region116: #{tpu_custom_call.1} parent=95 // pred_fallthru
          _
        // Predicated region
        $region117: #{tpu_custom_call.1} parent=95 // pred_check
          %p674 = pneg %p318
        $region118: #{tpu_custom_call.1} parent=95 // pred_check_branch
          %676 = sbr.rel (%p674) target = $region120
        $region119: #{tpu_custom_call.1} parent=95 // pred_region
          %677 = dma.done [#allocation12], 1024
        $region120: #{tpu_custom_call.1} parent=95 // pred_fallthru
          _
        // Predicated region
        $region121: #{tpu_custom_call.1} parent=95 // pred_check
          %p678 = pneg %p381
        $region122: #{tpu_custom_call.1} parent=95 // pred_check_branch
          %680 = sbr.rel (%p678) target = $region124
        $region123: #{tpu_custom_call.1} parent=95 // pred_region
          %681 = dma.done [#allocation12], 4096
        $region124: #{tpu_custom_call.1} parent=95 // pred_fallthru
          _
        // Predicated region
        $region125: #{tpu_custom_call.1} parent=95 // pred_check
          %p682 = pneg %p423
        $region126: #{tpu_custom_call.1} parent=95 // pred_check_branch
          %684 = sbr.rel (%p682) target = $region128
        $region127: #{tpu_custom_call.1} parent=95 // pred_region
          %685 = dma.done [#allocation15], 4096
        $region128: #{tpu_custom_call.1} parent=95 // pred_fallthru
          _
        %s686 = sand.u32 %s48, 1
        %s687 = scalar_lea.sflag [#allocation3], %s686
        %s688 = sand.u32 %s48, 1
        %s689 = smul.addr %s688, 32
        %s690 = scalar_lea.vmem [#allocation2], %s689
        %p691 = pneg %p61
        %p692 = pneg %p58
        %s693 = smul.u32 2, %s40
        %p694 = scmp.lt.s32.totalorder %s693, 3
        %s695 = scalar_select %p694, %s693, 3
        %s696 = smul.addr %s695, 4
        %s697 = smul.addr %s696, 8
        %s698 = scalar_lea.vmem %s1, %s697
        %p699 = pneg %p87
        %p700 = pneg %p84
        %p701 = pneg %p108
        %p702 = pneg %p105
        %p703 = pneg %p129
        %p704 = pneg %p126
        %p705 = pneg %p150
        %p706 = pneg %p147
        %p707 = pneg %p171
        %p708 = pneg %p168
        %p709 = pneg %p192
        %p710 = pneg %p189
        %p711 = pneg %p213
        %p712 = pneg %p210
        %p713 = pneg %p234
        %p714 = pneg %p231
        %p715 = pneg %p255
        %p716 = pneg %p252
        %p717 = pneg %p276
        %p718 = pneg %p273
        %p719 = pneg %p297
        %p720 = pneg %p294
        %p721 = pneg %p318
        %p722 = pneg %p315
        %p723 = pneg %p339
        %p724 = pneg %p336
        %p725 = pneg %p360
        %p726 = pneg %p357
        %p727 = pneg %p381
        %p728 = pneg %p378
        %p729 = pneg %p402
        %p730 = pneg %p399
        %p731 = pneg %p423
        %p732 = pneg %p420
        %p733 = pneg %p444
        %p734 = pneg %p441
        %p735 = pneg %p470
        %p736 = pneg %p467
        %s737 = sand.u32 %s457, 1
        %s738 = scalar_lea.sflag [#allocation4], %s737
        %s739 = sand.u32 %s457, 1
        %s740 = smul.addr %s739, 32
        %s741 = scalar_lea.vmem [#allocation16], %s740
        %s742 = smul.u32 2, %s40
        %s743 = smul.u32 2, %s40
        %p744 = scmp.lt.s32.totalorder %s743, 3
        %s745 = scalar_select %p744, %s743, 3
        %s746 = smul.addr %s745, 4
        %s747 = smul.addr %s746, 8
        %s748 = scalar_lea.vmem %s1, %s747
        %s749 = smul.u32 2, %s40
        %s750 = smul.u32 2, %s40
        %v752 = vld [vmem:[%s653] sm:$0xff]
        %v753 = vld [vmem:[%s653 + $0x8] sm:$0xff]
        %v754 = vld [vmem:[%s653 + $0x10] sm:$0xff]
        %v755 = vld [vmem:[%s653 + $0x18] sm:$0xff]
        %v756 = vld [vmem:[%s748] sm:$0xff]
        %v757 = vld [vmem:[%s748 + $0x8] sm:$0xff]
        %v758 = vld [vmem:[%s748 + $0x10] sm:$0xff]
        %v759 = vld [vmem:[%s748 + $0x18] sm:$0xff]
        %v760 = vld [vmem:[%s748 + $0x20] sm:$0xff]
        %v761 = vld [vmem:[%s748 + $0x28] sm:$0xff]
        %v762 = vld [vmem:[%s748 + $0x30] sm:$0xff]
        %v763 = vld [vmem:[%s748 + $0x38] sm:$0xff]
        %v764 = vld [vmem:[%s2] sm:$0x1]
        %v765 = vld [vmem:[%s3] sm:$0x1]
        %766 = vadd.xlane.f32.xlu0 %v752
        %v767 = vpop.xlane.xlu0 %766
        %768 = vadd.xlane.f32.xlu0 %v753
        %v769 = vpop.xlane.xlu0 %768
        %770 = vadd.xlane.f32.xlu0 %v754
        %v771 = vpop.xlane.xlu0 %770
        %772 = vadd.xlane.f32.xlu0 %v755
        %v773 = vpop.xlane.xlu0 %772
        %v774 = vrcp.pop 128.0
        %v775 = vmul.f32 %v767, %v774
        %v776 = vmul.f32 %v769, %v774
        %v777 = vmul.f32 %v771, %v774
        %v778 = vmul.f32 %v773, %v774
        %v779 = vsub.f32 %v752, %v775
        %v780 = vsub.f32 %v753, %v776
        %v781 = vsub.f32 %v754, %v777
        %v782 = vsub.f32 %v755, %v778
        %v783 = vmul.f32 %v779, %v779
        %v784 = vmul.f32 %v780, %v780
        %v785 = vmul.f32 %v781, %v781
        %v786 = vmul.f32 %v782, %v782
        %787 = vadd.xlane.f32.xlu0 %v783
        %v788 = vpop.xlane.xlu0 %787
        %789 = vadd.xlane.f32.xlu0 %v784
        %v790 = vpop.xlane.xlu0 %789
        %791 = vadd.xlane.f32.xlu0 %v785
        %v792 = vpop.xlane.xlu0 %791
        %793 = vadd.xlane.f32.xlu0 %v786
        %v794 = vpop.xlane.xlu0 %793
        %v795 = vmul.f32 %v788, %v774
        %v796 = vmul.f32 %v790, %v774
        %v797 = vmul.f32 %v792, %v774
        %v798 = vmul.f32 %v794, %v774
        %v799 = vadd.f32 %v795, 1e-05
        %v800 = vadd.f32 %v796, 1e-05
        %v801 = vadd.f32 %v797, 1e-05
        %v802 = vadd.f32 %v798, 1e-05
        %v803 = vrsqrt.pop %v799
        %v804 = vrsqrt.pop %v800
        %v805 = vrsqrt.pop %v801
        %v806 = vrsqrt.pop %v802
        %v807 = vmul.f32 %v779, %v803
        %v808 = vmul.f32 %v780, %v804
        %v809 = vmul.f32 %v781, %v805
        %v810 = vmul.f32 %v782, %v806
        %v812 = vlaneseq
        %v813 = vshrl.u32 %v812, 7
        %v814 = vsub.s32 0, %v813
        %v815 = vrot.slane %v764, %v814
        %v817 = vmul.f32 %v807, %v815
        %v818 = vmul.f32 %v808, %v815
        %v819 = vmul.f32 %v809, %v815
        %v820 = vmul.f32 %v810, %v815
        %v822 = vlaneseq
        %v823 = vshrl.u32 %v822, 7
        %v824 = vsub.s32 0, %v823
        %v825 = vrot.slane %v765, %v824
        %v827 = vadd.f32 %v817, %v825
        %v828 = vadd.f32 %v818, %v825
        %v829 = vadd.f32 %v819, %v825
        %v830 = vadd.f32 %v820, %v825
        %v831 = vpack.c.bf16 %v828, %v827
        %v832 = vpack.c.bf16 %v830, %v829
        %v833 = vld [vmem:[#allocation5] sm:$0xff]
        %v834 = vld [vmem:[#allocation5 + $0x8] sm:$0xf]
        %v835 = vld [vmem:[#allocation5 + $0xc] sm:$0xff]
        %v836 = vld [vmem:[#allocation5 + $0x14] sm:$0xf]
        %v837 = vld [vmem:[#allocation5 + $0x18] sm:$0xff]
        %v838 = vld [vmem:[#allocation5 + $0x20] sm:$0xf]
        %v839 = vld [vmem:[#allocation5 + $0x24] sm:$0xff]
        %v840 = vld [vmem:[#allocation5 + $0x2c] sm:$0xf]
        %v841 = vld [vmem:[#allocation5 + $0x30] sm:$0xff]
        %v842 = vld [vmem:[#allocation5 + $0x38] sm:$0xf]
        %v843 = vld [vmem:[#allocation5 + $0x3c] sm:$0xff]
        %v844 = vld [vmem:[#allocation5 + $0x44] sm:$0xf]
        %v845 = vld [vmem:[#allocation5 + $0x48] sm:$0xff]
        %v846 = vld [vmem:[#allocation5 + $0x50] sm:$0xf]
        %v847 = vld [vmem:[#allocation5 + $0x54] sm:$0xff]
        %v848 = vld [vmem:[#allocation5 + $0x5c] sm:$0xf]
        %v849 = vld [vmem:[#allocation5 + $0x60] sm:$0xff]
        %v850 = vld [vmem:[#allocation5 + $0x68] sm:$0xf]
        %v851 = vld [vmem:[#allocation5 + $0x6c] sm:$0xff]
        %v852 = vld [vmem:[#allocation5 + $0x74] sm:$0xf]
        %v853 = vld [vmem:[#allocation5 + $0x78] sm:$0xff]
        %v854 = vld [vmem:[#allocation5 + $0x80] sm:$0xf]
        %v855 = vld [vmem:[#allocation5 + $0x84] sm:$0xff]
        %v856 = vld [vmem:[#allocation5 + $0x8c] sm:$0xf]
        %v857 = vld [vmem:[#allocation5 + $0x90] sm:$0xff]
        %v858 = vld [vmem:[#allocation5 + $0x98] sm:$0xf]
        %v859 = vld [vmem:[#allocation5 + $0x9c] sm:$0xff]
        %v860 = vld [vmem:[#allocation5 + $0xa4] sm:$0xf]
        %v861 = vld [vmem:[#allocation5 + $0xa8] sm:$0xff]
        %v862 = vld [vmem:[#allocation5 + $0xb0] sm:$0xf]
        %v863 = vld [vmem:[#allocation5 + $0xb4] sm:$0xff]
        %v864 = vld [vmem:[#allocation5 + $0xbc] sm:$0xf]
        %v897 = vunpack.c.l.b16 %v833
        %v898 = vunpack.c.h.b16 %v833
        %v899 = vunpack.c.l.b16 %v834
        %v900 = vunpack.c.l.b16 %v835
        %v901 = vunpack.c.h.b16 %v835
        %v902 = vunpack.c.l.b16 %v836
        %v903 = vunpack.c.l.b16 %v837
        %v904 = vunpack.c.h.b16 %v837
        %v905 = vunpack.c.l.b16 %v838
        %v906 = vunpack.c.l.b16 %v839
        %v907 = vunpack.c.h.b16 %v839
        %v908 = vunpack.c.l.b16 %v840
        %v909 = vunpack.c.l.b16 %v841
        %v910 = vunpack.c.h.b16 %v841
        %v911 = vunpack.c.l.b16 %v842
        %v912 = vunpack.c.l.b16 %v843
        %v913 = vunpack.c.h.b16 %v843
        %v914 = vunpack.c.l.b16 %v844
        %v915 = vunpack.c.l.b16 %v845
        %v916 = vunpack.c.h.b16 %v845
        %v917 = vunpack.c.l.b16 %v846
        %v918 = vunpack.c.l.b16 %v847
        %v919 = vunpack.c.h.b16 %v847
        %v920 = vunpack.c.l.b16 %v848
        %v921 = vunpack.c.l.b16 %v849
        %v922 = vunpack.c.h.b16 %v849
        %v923 = vunpack.c.l.b16 %v850
        %v924 = vunpack.c.l.b16 %v851
        %v925 = vunpack.c.h.b16 %v851
        %v926 = vunpack.c.l.b16 %v852
        %v927 = vunpack.c.l.b16 %v853
        %v928 = vunpack.c.h.b16 %v853
        %v929 = vunpack.c.l.b16 %v854
        %v930 = vunpack.c.l.b16 %v855
        %v931 = vunpack.c.h.b16 %v855
        %v932 = vunpack.c.l.b16 %v856
        %v933 = vunpack.c.l.b16 %v857
        %v934 = vunpack.c.h.b16 %v857
        %v935 = vunpack.c.l.b16 %v858
        %v936 = vunpack.c.l.b16 %v859
        %v937 = vunpack.c.h.b16 %v859
        %v938 = vunpack.c.l.b16 %v860
        %v939 = vunpack.c.l.b16 %v861
        %v940 = vunpack.c.h.b16 %v861
        %v941 = vunpack.c.l.b16 %v862
        %v942 = vunpack.c.l.b16 %v863
        %v943 = vunpack.c.h.b16 %v863
        %v944 = vunpack.c.l.b16 %v864
        %v945 = vpack.c.b16 %v900, %v897
        %v946 = vpack.c.b16 %v901, %v898
        %v947 = vpack.c.b16 %v902, %v899
        %v948 = vpack.c.b16 %v906, %v903
        %v949 = vpack.c.b16 %v907, %v904
        %v950 = vpack.c.b16 %v908, %v905
        %v951 = vpack.c.b16 %v912, %v909
        %v952 = vpack.c.b16 %v913, %v910
        %v953 = vpack.c.b16 %v914, %v911
        %v954 = vpack.c.b16 %v918, %v915
        %v955 = vpack.c.b16 %v919, %v916
        %v956 = vpack.c.b16 %v920, %v917
        %v957 = vpack.c.b16 %v924, %v921
        %v958 = vpack.c.b16 %v925, %v922
        %v959 = vpack.c.b16 %v926, %v923
        %v960 = vpack.c.b16 %v930, %v927
        %v961 = vpack.c.b16 %v931, %v928
        %v962 = vpack.c.b16 %v932, %v929
        %v963 = vpack.c.b16 %v936, %v933
        %v964 = vpack.c.b16 %v937, %v934
        %v965 = vpack.c.b16 %v938, %v935
        %v966 = vpack.c.b16 %v942, %v939
        %v967 = vpack.c.b16 %v943, %v940
        %v968 = vpack.c.b16 %v944, %v941
        %993 = vmatprep.subr.bf16.mxu0 %v946
        %994 = vmatpush1.bf16.msra.mxu0 %v945
        %995 = vmatprep.subr.bf16.mxu0 %v949
        %996 = vmatpush1.bf16.msra.mxu0 %v948
        %997 = vmatprep.subr.bf16.mxu0 %v952
        %998 = vmatpush1.bf16.msra.mxu0 %v951
        %999 = vmatprep.subr.bf16.mxu0 %v955
        %1000 = vmatpush1.bf16.msra.mxu0 %v954
        %1001 = vmatprep.subr.bf16.mxu0 %v958
        %1002 = vmatpush1.bf16.msra.mxu0 %v957
        %1003 = vmatprep.subr.bf16.mxu0 %v961
        %1004 = vmatpush1.bf16.msra.mxu0 %v960
        %1005 = vmatprep.subr.bf16.mxu0 %v964
        %1006 = vmatpush1.bf16.msra.mxu0 %v963
        %1007 = vmatprep.subr.bf16.mxu0 %v967
        %1008 = vmatpush1.bf16.msra.mxu0 %v966
        %1009 = vmatprep.subr.bf16.mxu0 0
        %1010 = vmatpush1.bf16.msra.mxu0 0
        %1011 = vmatprep.subr.bf16.mxu0 0
        %1012 = vmatpush1.bf16.msra.mxu0 0
        %1013 = vmatprep.subr.bf16.mxu0 0
        %1014 = vmatpush1.bf16.msra.mxu0 0
        %1015 = vmatprep.subr.bf16.mxu0 0
        %1016 = vmatpush1.bf16.msra.mxu0 0
        %1017 = vmatprep.subr.bf16.mxu0 0
        %1018 = vmatpush1.bf16.msra.mxu0 0
        %1019 = vmatprep.subr.bf16.mxu0 0
        %1020 = vmatpush1.bf16.msra.mxu0 0
        %1021 = vmatprep.subr.bf16.mxu0 0
        %1022 = vmatpush1.bf16.msra.mxu0 0
        %1023 = vmatprep.subr.bf16.mxu0 0
        %1024 = vmatpush1.bf16.msra.mxu0 0
        %1025 = vmatprep.mubr.bf16.mxu0 0
        %1026 = vmatmul.mubr.bf16.gmra.mrb[0].mxu0 %v831
        %v1027 = vpop.f32.mrb[0].mxu0
        %v1028 = vadd.f32 0.0, %v1027
        %v1029 = vpop.f32.mrb[0].mxu0
        %v1030 = vadd.f32 0.0, %v1029
        %v1031 = vpop.f32.mrb[0].mxu0
        %v1032 = vadd.f32 0.0, %v1031
        %v1033 = vpop.f32.mrb[0].mxu0
        %v1034 = vadd.f32 0.0, %v1033
        %1035 = vmatprep.mubr.bf16.mxu0 0
        %1036 = vmatmul.mubr.bf16.gmra.mrb[0].mxu0 %v832
        %v1037 = vpop.f32.mrb[0].mxu0
        %v1038 = vadd.f32 0.0, %v1037
        %v1039 = vpop.f32.mrb[0].mxu0
        %v1040 = vadd.f32 0.0, %v1039
        %v1041 = vpop.f32.mrb[0].mxu0
        %v1042 = vadd.f32 0.0, %v1041
        %v1043 = vpop.f32.mrb[0].mxu0
        %v1044 = vadd.f32 0.0, %v1043
        %1045 = vdwg.mxu0
        %1046 = vmatprep.subr.bf16.mxu0 0
        %1047 = vmatpush1.bf16.msra.mxu0 %v947
        %1048 = vmatprep.subr.bf16.mxu0 0
        %1049 = vmatpush1.bf16.msra.mxu0 %v950
        %1050 = vmatprep.subr.bf16.mxu0 0
        %1051 = vmatpush1.bf16.msra.mxu0 %v953
        %1052 = vmatprep.subr.bf16.mxu0 0
        %1053 = vmatpush1.bf16.msra.mxu0 %v956
        %1054 = vmatprep.subr.bf16.mxu0 0
        %1055 = vmatpush1.bf16.msra.mxu0 %v959
        %1056 = vmatprep.subr.bf16.mxu0 0
        %1057 = vmatpush1.bf16.msra.mxu0 %v962
        %1058 = vmatprep.subr.bf16.mxu0 0
        %1059 = vmatpush1.bf16.msra.mxu0 %v965
        %1060 = vmatprep.subr.bf16.mxu0 0
        %1061 = vmatpush1.bf16.msra.mxu0 %v968
        %1062 = vmatprep.subr.bf16.mxu0 0
        %1063 = vmatpush1.bf16.msra.mxu0 0
        %1064 = vmatprep.subr.bf16.mxu0 0
        %1065 = vmatpush1.bf16.msra.mxu0 0
        %1066 = vmatprep.subr.bf16.mxu0 0
        %1067 = vmatpush1.bf16.msra.mxu0 0
        %1068 = vmatprep.subr.bf16.mxu0 0
        %1069 = vmatpush1.bf16.msra.mxu0 0
        %1070 = vmatprep.subr.bf16.mxu0 0
        %1071 = vmatpush1.bf16.msra.mxu0 0
        %1072 = vmatprep.subr.bf16.mxu0 0
        %1073 = vmatpush1.bf16.msra.mxu0 0
        %1074 = vmatprep.subr.bf16.mxu0 0
        %1075 = vmatpush1.bf16.msra.mxu0 0
        %1076 = vmatprep.subr.bf16.mxu0 0
        %1077 = vmatpush1.bf16.msra.mxu0 0
        %1078 = vmatprep.mubr.bf16.mxu0 0
        %1079 = vmatmul.mubr.bf16.gmra.mrb[0].mxu0 %v831
        %v1080 = vpop.f32.mrb[0].mxu0
        %v1081 = vadd.f32 0.0, %v1080
        %v1082 = vpop.f32.mrb[0].mxu0
        %v1083 = vpop.f32.mrb[0].mxu0
        %v1084 = vadd.f32 0.0, %v1083
        %v1085 = vpop.f32.mrb[0].mxu0
        %1086 = vmatprep.mubr.bf16.mxu0 0
        %1087 = vmatmul.mubr.bf16.gmra.mrb[0].mxu0 %v832
        %v1088 = vpop.f32.mrb[0].mxu0
        %v1089 = vadd.f32 0.0, %v1088
        %v1090 = vpop.f32.mrb[0].mxu0
        %v1091 = vpop.f32.mrb[0].mxu0
        %v1092 = vadd.f32 0.0, %v1091
        %v1093 = vpop.f32.mrb[0].mxu0
        %1094 = vdwg.mxu0
        %v1095 = vpack.c.bf16 %v1032, %v1028
        %v1096 = vpack.c.bf16 %v1034, %v1030
        %v1097 = vpack.c.bf16 %v1084, %v1081
        %v1098 = vpack.c.bf16 %v1042, %v1038
        %v1099 = vpack.c.bf16 %v1044, %v1040
        %v1100 = vpack.c.bf16 %v1092, %v1089
        %v1101 = vld [vmem:[#allocation7] sm:$0xf]
        %v1102 = vld [vmem:[#allocation7 + $0x4] sm:$0xf]
        %v1103 = vld [vmem:[#allocation7 + $0x8] sm:$0xf]
        %v1104 = vld [vmem:[#allocation7 + $0xc] sm:$0xf]
        %v1105 = vld [vmem:[#allocation7 + $0x10] sm:$0xf]
        %v1106 = vld [vmem:[#allocation7 + $0x14] sm:$0xf]
        %v1107 = vld [vmem:[#allocation7 + $0x18] sm:$0xf]
        %v1108 = vld [vmem:[#allocation7 + $0x1c] sm:$0xf]
        %v1109 = vld [vmem:[#allocation7 + $0x20] sm:$0xf]
        %v1110 = vld [vmem:[#allocation7 + $0x24] sm:$0xf]
        %v1111 = vld [vmem:[#allocation7 + $0x28] sm:$0xf]
        %v1112 = vld [vmem:[#allocation7 + $0x2c] sm:$0xf]
        %v1113 = vld [vmem:[#allocation7 + $0x30] sm:$0xf]
        %v1114 = vld [vmem:[#allocation7 + $0x34] sm:$0xf]
        %v1115 = vld [vmem:[#allocation7 + $0x38] sm:$0xf]
        %v1116 = vld [vmem:[#allocation7 + $0x3c] sm:$0xf]
        %vm1117 = vcmask 261120
        %v1119 = vsel %vm1117, %v1095, 0
        %v1122 = vsel %vm1117, %v1096, 0
        %1124 = vmatprep.subr.bf16.mxu0 0
        %1125 = vmatpush1.bf16.xpose.msra.mxu0 %v1122
        %1126 = vmatprep.subr.bf16.mxu0 0
        %1127 = vmatpush1.bf16.xpose.msra.mxu0 0
        %1128 = vmatprep.subr.bf16.mxu0 0
        %1129 = vmatpush1.bf16.xpose.msra.mxu0 0
        %1130 = vmatprep.subr.bf16.mxu0 0
        %1131 = vmatpush1.bf16.xpose.msra.mxu0 0
        %1132 = vmatprep.subr.bf16.mxu0 0
        %1133 = vmatpush1.bf16.xpose.msra.mxu0 0
        %1134 = vmatprep.subr.bf16.mxu0 0
        %1135 = vmatpush1.bf16.xpose.msra.mxu0 0
        %1136 = vmatprep.subr.bf16.mxu0 0
        %1137 = vmatpush1.bf16.xpose.msra.mxu0 0
        %1138 = vmatprep.subr.bf16.mxu0 0
        %1139 = vmatpush1.bf16.xpose.msra.mxu0 0
        %1140 = vmatprep.subr.bf16.mxu0 0
        %1141 = vmatpush1.bf16.xpose.msra.mxu0 0
        %1142 = vmatprep.subr.bf16.mxu0 0
        %1143 = vmatpush1.bf16.xpose.msra.mxu0 0
        %1144 = vmatprep.subr.bf16.mxu0 0
        %1145 = vmatpush1.bf16.xpose.msra.mxu0 0
        %1146 = vmatprep.subr.bf16.mxu0 0
        %1147 = vmatpush1.bf16.xpose.msra.mxu0 0
        %1148 = vmatprep.subr.bf16.mxu0 0
        %1149 = vmatpush1.bf16.xpose.msra.mxu0 0
        %1150 = vmatprep.subr.bf16.mxu0 0
        %1151 = vmatpush1.bf16.xpose.msra.mxu0 0
        %1152 = vmatprep.subr.bf16.mxu0 0
        %1153 = vmatpush1.bf16.xpose.msra.mxu0 0
        %1154 = vmatprep.subr.bf16.mxu0 0
        %1155 = vmatpush1.bf16.xpose.msra.mxu0 0
        %1156 = vmatprep.mubr.bf16.mxu0 0
        %1157 = vmatmul.mubr.bf16.gmra.mrb[0].mxu0 %v1119
        %v1158 = vpop.f32.mrb[0].mxu0
        %v1159 = vadd.f32 0.0, %v1158
        %v1160 = vpop.f32.mrb[0].mxu0
        %v1161 = vpop.f32.mrb[0].mxu0
        %v1162 = vadd.f32 0.0, %v1161
        %v1163 = vpop.f32.mrb[0].mxu0
        %1164 = vdwg.mxu0
        %v1166 = vsel %vm1117, %v1098, 0
        %v1169 = vsel %vm1117, %v1099, 0
        %1171 = vmatprep.subr.bf16.mxu0 0
        %1172 = vmatpush1.bf16.xpose.msra.mxu0 %v1169
        %1173 = vmatprep.subr.bf16.mxu0 0
        %1174 = vmatpush1.bf16.xpose.msra.mxu0 0
        %1175 = vmatprep.subr.bf16.mxu0 0
        %1176 = vmatpush1.bf16.xpose.msra.mxu0 0
        %1177 = vmatprep.subr.bf16.mxu0 0
        %1178 = vmatpush1.bf16.xpose.msra.mxu0 0
        %1179 = vmatprep.subr.bf16.mxu0 0
        %1180 = vmatpush1.bf16.xpose.msra.mxu0 0
        %1181 = vmatprep.subr.bf16.mxu0 0
        %1182 = vmatpush1.bf16.xpose.msra.mxu0 0
        %1183 = vmatprep.subr.bf16.mxu0 0
        %1184 = vmatpush1.bf16.xpose.msra.mxu0 0
        %1185 = vmatprep.subr.bf16.mxu0 0
        %1186 = vmatpush1.bf16.xpose.msra.mxu0 0
        %1187 = vmatprep.subr.bf16.mxu0 0
        %1188 = vmatpush1.bf16.xpose.msra.mxu0 0
        %1189 = vmatprep.subr.bf16.mxu0 0
        %1190 = vmatpush1.bf16.xpose.msra.mxu0 0
        %1191 = vmatprep.subr.bf16.mxu0 0
        %1192 = vmatpush1.bf16.xpose.msra.mxu0 0
        %1193 = vmatprep.subr.bf16.mxu0 0
        %1194 = vmatpush1.bf16.xpose.msra.mxu0 0
        %1195 = vmatprep.subr.bf16.mxu0 0
        %1196 = vmatpush1.bf16.xpose.msra.mxu0 0
        %1197 = vmatprep.subr.bf16.mxu0 0
        %1198 = vmatpush1.bf16.xpose.msra.mxu0 0
        %1199 = vmatprep.subr.bf16.mxu0 0
        %1200 = vmatpush1.bf16.xpose.msra.mxu0 0
        %1201 = vmatprep.subr.bf16.mxu0 0
        %1202 = vmatpush1.bf16.xpose.msra.mxu0 0
        %1203 = vmatprep.mubr.bf16.mxu0 0
        %1204 = vmatmul.mubr.bf16.gmra.mrb[0].mxu0 %v1166
        %v1205 = vpop.f32.mrb[0].mxu0
        %v1206 = vadd.f32 0.0, %v1205
        %v1207 = vpop.f32.mrb[0].mxu0
        %v1208 = vpop.f32.mrb[0].mxu0
        %v1209 = vadd.f32 0.0, %v1208
        %v1210 = vpop.f32.mrb[0].mxu0
        %1211 = vdwg.mxu0
        %vm1212 = vcmask 130048
        %v1213 = vsel %vm1212, %v1159, -inf
        %1214 = vmax.xlane.f32.xlu0 %v1213
        %v1215 = vpop.xlane.xlu0 %1214
        %v1216 = vsel %vm1212, %v1162, -inf
        %1217 = vmax.xlane.f32.xlu0 %v1216
        %v1218 = vpop.xlane.xlu0 %1217
        %v1219 = vsel %vm1212, %v1206, -inf
        %1220 = vmax.xlane.f32.xlu0 %v1219
        %v1221 = vpop.xlane.xlu0 %1220
        %v1222 = vsel %vm1212, %v1209, -inf
        %1223 = vmax.xlane.f32.xlu0 %v1222
        %v1224 = vpop.xlane.xlu0 %1223
        %v1225 = vsub.f32 %v1159, %v1215
        %v1226 = vsub.f32 %v1162, %v1218
        %v1227 = vsub.f32 %v1206, %v1221
        %v1228 = vsub.f32 %v1209, %v1224
        %v1229 = vmul.f32 %v1225, 1.442695
        %v1230 = vpow.pop %v1229
        %v1231 = vmul.f32 %v1226, 1.442695
        %v1232 = vpow.pop %v1231
        %v1233 = vmul.f32 %v1227, 1.442695
        %v1234 = vpow.pop %v1233
        %v1235 = vmul.f32 %v1228, 1.442695
        %v1236 = vpow.pop %v1235
        %v1237 = vsel %vm1212, %v1230, 0.0
        %1238 = vadd.xlane.f32.xlu0 %v1237
        %v1239 = vpop.xlane.xlu0 %1238
        %v1240 = vsel %vm1212, %v1232, 0.0
        %1241 = vadd.xlane.f32.xlu0 %v1240
        %v1242 = vpop.xlane.xlu0 %1241
        %v1243 = vsel %vm1212, %v1234, 0.0
        %1244 = vadd.xlane.f32.xlu0 %v1243
        %v1245 = vpop.xlane.xlu0 %1244
        %v1246 = vsel %vm1212, %v1236, 0.0
        %1247 = vadd.xlane.f32.xlu0 %v1246
        %v1248 = vpop.xlane.xlu0 %1247
        %v1249 = vrcp.pop %v1239
        %v1250 = vrcp.pop %v1242
        %v1251 = vrcp.pop %v1245
        %v1252 = vrcp.pop %v1248
        %v1253 = vmul.f32 %v1230, %v1249
        %v1254 = vmul.f32 %v1232, %v1250
        %v1255 = vmul.f32 %v1234, %v1251
        %v1256 = vmul.f32 %v1236, %v1252
        %v1257 = vpack.c.bf16 %v1254, %v1253
        %v1258 = vpack.c.bf16 %v1256, %v1255
        %v1260 = vsel %vm1212, %v1257, 0
        %1262 = vmatprep.subr.bf16.mxu0 0
        %1263 = vmatpush1.bf16.msra.mxu0 %v1097
        %1264 = vmatprep.subr.bf16.mxu0 0
        %1265 = vmatpush1.bf16.msra.mxu0 0
        %1266 = vmatprep.subr.bf16.mxu0 0
        %1267 = vmatpush1.bf16.msra.mxu0 0
        %1268 = vmatprep.subr.bf16.mxu0 0
        %1269 = vmatpush1.bf16.msra.mxu0 0
        %1270 = vmatprep.subr.bf16.mxu0 0
        %1271 = vmatpush1.bf16.msra.mxu0 0
        %1272 = vmatprep.subr.bf16.mxu0 0
        %1273 = vmatpush1.bf16.msra.mxu0 0
        %1274 = vmatprep.subr.bf16.mxu0 0
        %1275 = vmatpush1.bf16.msra.mxu0 0
        %1276 = vmatprep.subr.bf16.mxu0 0
        %1277 = vmatpush1.bf16.msra.mxu0 0
        %1278 = vmatprep.subr.bf16.mxu0 0
        %1279 = vmatpush1.bf16.msra.mxu0 0
        %1280 = vmatprep.subr.bf16.mxu0 0
        %1281 = vmatpush1.bf16.msra.mxu0 0
        %1282 = vmatprep.subr.bf16.mxu0 0
        %1283 = vmatpush1.bf16.msra.mxu0 0
        %1284 = vmatprep.subr.bf16.mxu0 0
        %1285 = vmatpush1.bf16.msra.mxu0 0
        %1286 = vmatprep.subr.bf16.mxu0 0
        %1287 = vmatpush1.bf16.msra.mxu0 0
        %1288 = vmatprep.subr.bf16.mxu0 0
        %1289 = vmatpush1.bf16.msra.mxu0 0
        %1290 = vmatprep.subr.bf16.mxu0 0
        %1291 = vmatpush1.bf16.msra.mxu0 0
        %1292 = vmatprep.subr.bf16.mxu0 0
        %1293 = vmatpush1.bf16.msra.mxu0 0
        %1294 = vmatprep.mubr.bf16.mxu0 0
        %1295 = vmatmul.mubr.bf16.gmra.mrb[0].mxu0 %v1260
        %v1296 = vpop.f32.mrb[0].mxu0
        %v1297 = vadd.f32 0.0, %v1296
        %v1298 = vpop.f32.mrb[0].mxu0
        %v1299 = vpop.f32.mrb[0].mxu0
        %v1300 = vadd.f32 0.0, %v1299
        %v1301 = vpop.f32.mrb[0].mxu0
        %1302 = vdwg.mxu0
        %v1304 = vsel %vm1212, %v1258, 0
        %1306 = vmatprep.subr.bf16.mxu0 0
        %1307 = vmatpush1.bf16.msra.mxu0 %v1100
        %1308 = vmatprep.subr.bf16.mxu0 0
        %1309 = vmatpush1.bf16.msra.mxu0 0
        %1310 = vmatprep.subr.bf16.mxu0 0
        %1311 = vmatpush1.bf16.msra.mxu0 0
        %1312 = vmatprep.subr.bf16.mxu0 0
        %1313 = vmatpush1.bf16.msra.mxu0 0
        %1314 = vmatprep.subr.bf16.mxu0 0
        %1315 = vmatpush1.bf16.msra.mxu0 0
        %1316 = vmatprep.subr.bf16.mxu0 0
        %1317 = vmatpush1.bf16.msra.mxu0 0
        %1318 = vmatprep.subr.bf16.mxu0 0
        %1319 = vmatpush1.bf16.msra.mxu0 0
        %1320 = vmatprep.subr.bf16.mxu0 0
        %1321 = vmatpush1.bf16.msra.mxu0 0
        %1322 = vmatprep.subr.bf16.mxu0 0
        %1323 = vmatpush1.bf16.msra.mxu0 0
        %1324 = vmatprep.subr.bf16.mxu0 0
        %1325 = vmatpush1.bf16.msra.mxu0 0
        %1326 = vmatprep.subr.bf16.mxu0 0
        %1327 = vmatpush1.bf16.msra.mxu0 0
        %1328 = vmatprep.subr.bf16.mxu0 0
        %1329 = vmatpush1.bf16.msra.mxu0 0
        %1330 = vmatprep.subr.bf16.mxu0 0
        %1331 = vmatpush1.bf16.msra.mxu0 0
        %1332 = vmatprep.subr.bf16.mxu0 0
        %1333 = vmatpush1.bf16.msra.mxu0 0
        %1334 = vmatprep.subr.bf16.mxu0 0
        %1335 = vmatpush1.bf16.msra.mxu0 0
        %1336 = vmatprep.subr.bf16.mxu0 0
        %1337 = vmatpush1.bf16.msra.mxu0 0
        %1338 = vmatprep.mubr.bf16.mxu0 0
        %1339 = vmatmul.mubr.bf16.gmra.mrb[0].mxu0 %v1304
        %v1340 = vpop.f32.mrb[0].mxu0
        %v1341 = vadd.f32 0.0, %v1340
        %v1342 = vpop.f32.mrb[0].mxu0
        %v1343 = vpop.f32.mrb[0].mxu0
        %v1344 = vadd.f32 0.0, %v1343
        %v1345 = vpop.f32.mrb[0].mxu0
        %1346 = vdwg.mxu0
        %v1347 = vpack.c.bf16 %v1300, %v1297
        %v1348 = vpack.c.bf16 %v1344, %v1341
        %1350 = vrot.lane.b32.xlu0 %v1095, 96
        %v1351 = vpop.permute.xlu0 %1350
        %1353 = vrot.lane.b32.xlu0 %v1096, 96
        %v1354 = vpop.permute.xlu0 %1353
        %v1356 = vsel %vm1117, %v1351, 0
        %v1359 = vsel %vm1117, %v1354, 0
        %1361 = vmatprep.subr.bf16.mxu0 0
        %1362 = vmatpush1.bf16.xpose.msra.mxu0 %v1359
        %1363 = vmatprep.subr.bf16.mxu0 0
        %1364 = vmatpush1.bf16.xpose.msra.mxu0 0
        %1365 = vmatprep.subr.bf16.mxu0 0
        %1366 = vmatpush1.bf16.xpose.msra.mxu0 0
        %1367 = vmatprep.subr.bf16.mxu0 0
        %1368 = vmatpush1.bf16.xpose.msra.mxu0 0
        %1369 = vmatprep.subr.bf16.mxu0 0
        %1370 = vmatpush1.bf16.xpose.msra.mxu0 0
        %1371 = vmatprep.subr.bf16.mxu0 0
        %1372 = vmatpush1.bf16.xpose.msra.mxu0 0
        %1373 = vmatprep.subr.bf16.mxu0 0
        %1374 = vmatpush1.bf16.xpose.msra.mxu0 0
        %1375 = vmatprep.subr.bf16.mxu0 0
        %1376 = vmatpush1.bf16.xpose.msra.mxu0 0
        %1377 = vmatprep.subr.bf16.mxu0 0
        %1378 = vmatpush1.bf16.xpose.msra.mxu0 0
        %1379 = vmatprep.subr.bf16.mxu0 0
        %1380 = vmatpush1.bf16.xpose.msra.mxu0 0
        %1381 = vmatprep.subr.bf16.mxu0 0
        %1382 = vmatpush1.bf16.xpose.msra.mxu0 0
        %1383 = vmatprep.subr.bf16.mxu0 0
        %1384 = vmatpush1.bf16.xpose.msra.mxu0 0
        %1385 = vmatprep.subr.bf16.mxu0 0
        %1386 = vmatpush1.bf16.xpose.msra.mxu0 0
        %1387 = vmatprep.subr.bf16.mxu0 0
        %1388 = vmatpush1.bf16.xpose.msra.mxu0 0
        %1389 = vmatprep.subr.bf16.mxu0 0
        %1390 = vmatpush1.bf16.xpose.msra.mxu0 0
        %1391 = vmatprep.subr.bf16.mxu0 0
        %1392 = vmatpush1.bf16.xpose.msra.mxu0 0
        %1393 = vmatprep.mubr.bf16.mxu0 0
        %1394 = vmatmul.mubr.bf16.gmra.mrb[0].mxu0 %v1356
        %v1395 = vpop.f32.mrb[0].mxu0
        %v1396 = vadd.f32 0.0, %v1395
        %v1397 = vpop.f32.mrb[0].mxu0
        %v1398 = vpop.f32.mrb[0].mxu0
        %v1399 = vadd.f32 0.0, %v1398
        %v1400 = vpop.f32.mrb[0].mxu0
        %1401 = vdwg.mxu0
        %1403 = vrot.lane.b32.xlu0 %v1098, 96
        %v1404 = vpop.permute.xlu0 %1403
        %1406 = vrot.lane.b32.xlu0 %v1099, 96
        %v1407 = vpop.permute.xlu0 %1406
        %v1409 = vsel %vm1117, %v1404, 0
        %v1412 = vsel %vm1117, %v1407, 0
        %1414 = vmatprep.subr.bf16.mxu0 0
        %1415 = vmatpush1.bf16.xpose.msra.mxu0 %v1412
        %1416 = vmatprep.subr.bf16.mxu0 0
        %1417 = vmatpush1.bf16.xpose.msra.mxu0 0
        %1418 = vmatprep.subr.bf16.mxu0 0
        %1419 = vmatpush1.bf16.xpose.msra.mxu0 0
        %1420 = vmatprep.subr.bf16.mxu0 0
        %1421 = vmatpush1.bf16.xpose.msra.mxu0 0
        %1422 = vmatprep.subr.bf16.mxu0 0
        %1423 = vmatpush1.bf16.xpose.msra.mxu0 0
        %1424 = vmatprep.subr.bf16.mxu0 0
        %1425 = vmatpush1.bf16.xpose.msra.mxu0 0
        %1426 = vmatprep.subr.bf16.mxu0 0
        %1427 = vmatpush1.bf16.xpose.msra.mxu0 0
        %1428 = vmatprep.subr.bf16.mxu0 0
        %1429 = vmatpush1.bf16.xpose.msra.mxu0 0
        %1430 = vmatprep.subr.bf16.mxu0 0
        %1431 = vmatpush1.bf16.xpose.msra.mxu0 0
        %1432 = vmatprep.subr.bf16.mxu0 0
        %1433 = vmatpush1.bf16.xpose.msra.mxu0 0
        %1434 = vmatprep.subr.bf16.mxu0 0
        %1435 = vmatpush1.bf16.xpose.msra.mxu0 0
        %1436 = vmatprep.subr.bf16.mxu0 0
        %1437 = vmatpush1.bf16.xpose.msra.mxu0 0
        %1438 = vmatprep.subr.bf16.mxu0 0
        %1439 = vmatpush1.bf16.xpose.msra.mxu0 0
        %1440 = vmatprep.subr.bf16.mxu0 0
        %1441 = vmatpush1.bf16.xpose.msra.mxu0 0
        %1442 = vmatprep.subr.bf16.mxu0 0
        %1443 = vmatpush1.bf16.xpose.msra.mxu0 0
        %1444 = vmatprep.subr.bf16.mxu0 0
        %1445 = vmatpush1.bf16.xpose.msra.mxu0 0
        %1446 = vmatprep.mubr.bf16.mxu0 0
        %1447 = vmatmul.mubr.bf16.gmra.mrb[0].mxu0 %v1409
        %v1448 = vpop.f32.mrb[0].mxu0
        %v1449 = vadd.f32 0.0, %v1448
        %v1450 = vpop.f32.mrb[0].mxu0
        %v1451 = vpop.f32.mrb[0].mxu0
        %v1452 = vadd.f32 0.0, %v1451
        %v1453 = vpop.f32.mrb[0].mxu0
        %1454 = vdwg.mxu0
        %v1455 = vsel %vm1212, %v1396, -inf
        %1456 = vmax.xlane.f32.xlu0 %v1455
        %v1457 = vpop.xlane.xlu0 %1456
        %v1458 = vsel %vm1212, %v1399, -inf
        %1459 = vmax.xlane.f32.xlu0 %v1458
        %v1460 = vpop.xlane.xlu0 %1459
        %v1461 = vsel %vm1212, %v1449, -inf
        %1462 = vmax.xlane.f32.xlu0 %v1461
        %v1463 = vpop.xlane.xlu0 %1462
        %v1464 = vsel %vm1212, %v1452, -inf
        %1465 = vmax.xlane.f32.xlu0 %v1464
        %v1466 = vpop.xlane.xlu0 %1465
        %v1467 = vsub.f32 %v1396, %v1457
        %v1468 = vsub.f32 %v1399, %v1460
        %v1469 = vsub.f32 %v1449, %v1463
        %v1470 = vsub.f32 %v1452, %v1466
        %v1471 = vmul.f32 %v1467, 1.442695
        %v1472 = vpow.pop %v1471
        %v1473 = vmul.f32 %v1468, 1.442695
        %v1474 = vpow.pop %v1473
        %v1475 = vmul.f32 %v1469, 1.442695
        %v1476 = vpow.pop %v1475
        %v1477 = vmul.f32 %v1470, 1.442695
        %v1478 = vpow.pop %v1477
        %v1479 = vsel %vm1212, %v1472, 0.0
        %1480 = vadd.xlane.f32.xlu0 %v1479
        %v1481 = vpop.xlane.xlu0 %1480
        %v1482 = vsel %vm1212, %v1474, 0.0
        %1483 = vadd.xlane.f32.xlu0 %v1482
        %v1484 = vpop.xlane.xlu0 %1483
        %v1485 = vsel %vm1212, %v1476, 0.0
        %1486 = vadd.xlane.f32.xlu0 %v1485
        %v1487 = vpop.xlane.xlu0 %1486
        %v1488 = vsel %vm1212, %v1478, 0.0
        %1489 = vadd.xlane.f32.xlu0 %v1488
        %v1490 = vpop.xlane.xlu0 %1489
        %v1491 = vrcp.pop %v1481
        %v1492 = vrcp.pop %v1484
        %v1493 = vrcp.pop %v1487
        %v1494 = vrcp.pop %v1490
        %v1495 = vmul.f32 %v1472, %v1491
        %v1496 = vmul.f32 %v1474, %v1492
        %v1497 = vmul.f32 %v1476, %v1493
        %v1498 = vmul.f32 %v1478, %v1494
        %v1499 = vpack.c.bf16 %v1496, %v1495
        %v1500 = vpack.c.bf16 %v1498, %v1497
        %1502 = vrot.lane.b32.xlu0 %v1097, 96
        %v1503 = vpop.permute.xlu0 %1502
        %v1506 = vsel %vm1212, %v1499, 0
        %1508 = vmatprep.subr.bf16.mxu0 0
        %1509 = vmatpush1.bf16.msra.mxu0 %v1503
        %1510 = vmatprep.subr.bf16.mxu0 0
        %1511 = vmatpush1.bf16.msra.mxu0 0
        %1512 = vmatprep.subr.bf16.mxu0 0
        %1513 = vmatpush1.bf16.msra.mxu0 0
        %1514 = vmatprep.subr.bf16.mxu0 0
        %1515 = vmatpush1.bf16.msra.mxu0 0
        %1516 = vmatprep.subr.bf16.mxu0 0
        %1517 = vmatpush1.bf16.msra.mxu0 0
        %1518 = vmatprep.subr.bf16.mxu0 0
        %1519 = vmatpush1.bf16.msra.mxu0 0
        %1520 = vmatprep.subr.bf16.mxu0 0
        %1521 = vmatpush1.bf16.msra.mxu0 0
        %1522 = vmatprep.subr.bf16.mxu0 0
        %1523 = vmatpush1.bf16.msra.mxu0 0
        %1524 = vmatprep.subr.bf16.mxu0 0
        %1525 = vmatpush1.bf16.msra.mxu0 0
        %1526 = vmatprep.subr.bf16.mxu0 0
        %1527 = vmatpush1.bf16.msra.mxu0 0
        %1528 = vmatprep.subr.bf16.mxu0 0
        %1529 = vmatpush1.bf16.msra.mxu0 0
        %1530 = vmatprep.subr.bf16.mxu0 0
        %1531 = vmatpush1.bf16.msra.mxu0 0
        %1532 = vmatprep.subr.bf16.mxu0 0
        %1533 = vmatpush1.bf16.msra.mxu0 0
        %1534 = vmatprep.subr.bf16.mxu0 0
        %1535 = vmatpush1.bf16.msra.mxu0 0
        %1536 = vmatprep.subr.bf16.mxu0 0
        %1537 = vmatpush1.bf16.msra.mxu0 0
        %1538 = vmatprep.subr.bf16.mxu0 0
        %1539 = vmatpush1.bf16.msra.mxu0 0
        %1540 = vmatprep.mubr.bf16.mxu0 0
        %1541 = vmatmul.mubr.bf16.gmra.mrb[0].mxu0 %v1506
        %v1542 = vpop.f32.mrb[0].mxu0
        %v1543 = vadd.f32 0.0, %v1542
        %v1544 = vpop.f32.mrb[0].mxu0
        %v1545 = vpop.f32.mrb[0].mxu0
        %v1546 = vadd.f32 0.0, %v1545
        %v1547 = vpop.f32.mrb[0].mxu0
        %1548 = vdwg.mxu0
        %1550 = vrot.lane.b32.xlu0 %v1100, 96
        %v1551 = vpop.permute.xlu0 %1550
        %v1554 = vsel %vm1212, %v1500, 0
        %1556 = vmatprep.subr.bf16.mxu0 0
        %1557 = vmatpush1.bf16.msra.mxu0 %v1551
        %1558 = vmatprep.subr.bf16.mxu0 0
        %1559 = vmatpush1.bf16.msra.mxu0 0
        %1560 = vmatprep.subr.bf16.mxu0 0
        %1561 = vmatpush1.bf16.msra.mxu0 0
        %1562 = vmatprep.subr.bf16.mxu0 0
        %1563 = vmatpush1.bf16.msra.mxu0 0
        %1564 = vmatprep.subr.bf16.mxu0 0
        %1565 = vmatpush1.bf16.msra.mxu0 0
        %1566 = vmatprep.subr.bf16.mxu0 0
        %1567 = vmatpush1.bf16.msra.mxu0 0
        %1568 = vmatprep.subr.bf16.mxu0 0
        %1569 = vmatpush1.bf16.msra.mxu0 0
        %1570 = vmatprep.subr.bf16.mxu0 0
        %1571 = vmatpush1.bf16.msra.mxu0 0
        %1572 = vmatprep.subr.bf16.mxu0 0
        %1573 = vmatpush1.bf16.msra.mxu0 0
        %1574 = vmatprep.subr.bf16.mxu0 0
        %1575 = vmatpush1.bf16.msra.mxu0 0
        %1576 = vmatprep.subr.bf16.mxu0 0
        %1577 = vmatpush1.bf16.msra.mxu0 0
        %1578 = vmatprep.subr.bf16.mxu0 0
        %1579 = vmatpush1.bf16.msra.mxu0 0
        %1580 = vmatprep.subr.bf16.mxu0 0
        %1581 = vmatpush1.bf16.msra.mxu0 0
        %1582 = vmatprep.subr.bf16.mxu0 0
        %1583 = vmatpush1.bf16.msra.mxu0 0
        %1584 = vmatprep.subr.bf16.mxu0 0
        %1585 = vmatpush1.bf16.msra.mxu0 0
        %1586 = vmatprep.subr.bf16.mxu0 0
        %1587 = vmatpush1.bf16.msra.mxu0 0
        %1588 = vmatprep.mubr.bf16.mxu0 0
        %1589 = vmatmul.mubr.bf16.gmra.mrb[0].mxu0 %v1554
        %v1590 = vpop.f32.mrb[0].mxu0
        %v1591 = vadd.f32 0.0, %v1590
        %v1592 = vpop.f32.mrb[0].mxu0
        %v1593 = vpop.f32.mrb[0].mxu0
        %v1594 = vadd.f32 0.0, %v1593
        %v1595 = vpop.f32.mrb[0].mxu0
        %1596 = vdwg.mxu0
        %v1597 = vpack.c.bf16 %v1546, %v1543
        %v1598 = vpack.c.bf16 %v1594, %v1591
        %v1603 = vunpack.c.l.b16 %v1105
        %v1604 = vunpack.c.l.b16 %v1106
        %v1605 = vunpack.c.l.b16 %v1107
        %v1606 = vunpack.c.l.b16 %v1108
        %v1607 = vpack.c.b16 %v1604, %v1603
        %v1608 = vpack.c.b16 %v1606, %v1605
        %v1612 = vsel %vm1117, %v1597, 0
        %v1615 = vsel %vm1117, %v1598, 0
        %1617 = vmatprep.subr.bf16.mxu0 0
        %1618 = vmatpush1.bf16.msra.mxu0 %v1607
        %1619 = vmatprep.subr.bf16.mxu0 0
        %1620 = vmatpush1.bf16.msra.mxu0 %v1608
        %1621 = vmatprep.subr.bf16.mxu0 0
        %1622 = vmatpush1.bf16.msra.mxu0 0
        %1623 = vmatprep.subr.bf16.mxu0 0
        %1624 = vmatpush1.bf16.msra.mxu0 0
        %1625 = vmatprep.subr.bf16.mxu0 0
        %1626 = vmatpush1.bf16.msra.mxu0 0
        %1627 = vmatprep.subr.bf16.mxu0 0
        %1628 = vmatpush1.bf16.msra.mxu0 0
        %1629 = vmatprep.subr.bf16.mxu0 0
        %1630 = vmatpush1.bf16.msra.mxu0 0
        %1631 = vmatprep.subr.bf16.mxu0 0
        %1632 = vmatpush1.bf16.msra.mxu0 0
        %1633 = vmatprep.subr.bf16.mxu0 0
        %1634 = vmatpush1.bf16.msra.mxu0 0
        %1635 = vmatprep.subr.bf16.mxu0 0
        %1636 = vmatpush1.bf16.msra.mxu0 0
        %1637 = vmatprep.subr.bf16.mxu0 0
        %1638 = vmatpush1.bf16.msra.mxu0 0
        %1639 = vmatprep.subr.bf16.mxu0 0
        %1640 = vmatpush1.bf16.msra.mxu0 0
        %1641 = vmatprep.subr.bf16.mxu0 0
        %1642 = vmatpush1.bf16.msra.mxu0 0
        %1643 = vmatprep.subr.bf16.mxu0 0
        %1644 = vmatpush1.bf16.msra.mxu0 0
        %1645 = vmatprep.subr.bf16.mxu0 0
        %1646 = vmatpush1.bf16.msra.mxu0 0
        %1647 = vmatprep.subr.bf16.mxu0 0
        %1648 = vmatpush1.bf16.msra.mxu0 0
        %1649 = vmatprep.mubr.bf16.mxu0 0
        %1650 = vmatmul.mubr.bf16.gmra.mrb[0].mxu0 %v1612
        %v1651 = vpop.f32.mrb[0].mxu0
        %v1652 = vadd.f32 0.0, %v1651
        %v1653 = vpop.f32.mrb[0].mxu0
        %v1654 = vpop.f32.mrb[0].mxu0
        %v1655 = vadd.f32 0.0, %v1654
        %v1656 = vpop.f32.mrb[0].mxu0
        %1657 = vmatprep.mubr.bf16.mxu0 0
        %1658 = vmatmul.mubr.bf16.gmra.mrb[0].mxu0 %v1615
        %v1659 = vpop.f32.mrb[0].mxu0
        %v1660 = vadd.f32 0.0, %v1659
        %v1661 = vpop.f32.mrb[0].mxu0
        %v1662 = vpop.f32.mrb[0].mxu0
        %v1663 = vadd.f32 0.0, %v1662
        %v1664 = vpop.f32.mrb[0].mxu0
        %1665 = vdwg.mxu0
        %v1670 = vunpack.c.l.b16 %v1101
        %v1671 = vunpack.c.l.b16 %v1102
        %v1672 = vunpack.c.l.b16 %v1103
        %v1673 = vunpack.c.l.b16 %v1104
        %v1674 = vpack.c.b16 %v1671, %v1670
        %v1675 = vpack.c.b16 %v1673, %v1672
        %v1679 = vsel %vm1117, %v1347, 0
        %v1682 = vsel %vm1117, %v1348, 0
        %1684 = vmatprep.subr.bf16.mxu0 0
        %1685 = vmatpush1.bf16.msra.mxu0 %v1674
        %1686 = vmatprep.subr.bf16.mxu0 0
        %1687 = vmatpush1.bf16.msra.mxu0 %v1675
        %1688 = vmatprep.subr.bf16.mxu0 0
        %1689 = vmatpush1.bf16.msra.mxu0 0
        %1690 = vmatprep.subr.bf16.mxu0 0
        %1691 = vmatpush1.bf16.msra.mxu0 0
        %1692 = vmatprep.subr.bf16.mxu0 0
        %1693 = vmatpush1.bf16.msra.mxu0 0
        %1694 = vmatprep.subr.bf16.mxu0 0
        %1695 = vmatpush1.bf16.msra.mxu0 0
        %1696 = vmatprep.subr.bf16.mxu0 0
        %1697 = vmatpush1.bf16.msra.mxu0 0
        %1698 = vmatprep.subr.bf16.mxu0 0
        %1699 = vmatpush1.bf16.msra.mxu0 0
        %1700 = vmatprep.subr.bf16.mxu0 0
        %1701 = vmatpush1.bf16.msra.mxu0 0
        %1702 = vmatprep.subr.bf16.mxu0 0
        %1703 = vmatpush1.bf16.msra.mxu0 0
        %1704 = vmatprep.subr.bf16.mxu0 0
        %1705 = vmatpush1.bf16.msra.mxu0 0
        %1706 = vmatprep.subr.bf16.mxu0 0
        %1707 = vmatpush1.bf16.msra.mxu0 0
        %1708 = vmatprep.subr.bf16.mxu0 0
        %1709 = vmatpush1.bf16.msra.mxu0 0
        %1710 = vmatprep.subr.bf16.mxu0 0
        %1711 = vmatpush1.bf16.msra.mxu0 0
        %1712 = vmatprep.subr.bf16.mxu0 0
        %1713 = vmatpush1.bf16.msra.mxu0 0
        %1714 = vmatprep.subr.bf16.mxu0 0
        %1715 = vmatpush1.bf16.msra.mxu0 0
        %1716 = vmatprep.mubr.bf16.mxu0 0
        %1717 = vmatmul.mubr.bf16.gmra.mrb[0].mxu0 %v1679
        %v1718 = vpop.f32.mrb[0].mxu0
        %v1719 = vadd.f32 %v1652, %v1718
        %v1720 = vpop.f32.mrb[0].mxu0
        %v1721 = vpop.f32.mrb[0].mxu0
        %v1722 = vadd.f32 %v1655, %v1721
        %v1723 = vpop.f32.mrb[0].mxu0
        %1724 = vmatprep.mubr.bf16.mxu0 0
        %1725 = vmatmul.mubr.bf16.gmra.mrb[0].mxu0 %v1682
        %v1726 = vpop.f32.mrb[0].mxu0
        %v1727 = vadd.f32 %v1660, %v1726
        %v1728 = vpop.f32.mrb[0].mxu0
        %v1729 = vpop.f32.mrb[0].mxu0
        %v1730 = vadd.f32 %v1663, %v1729
        %v1731 = vpop.f32.mrb[0].mxu0
        %1732 = vdwg.mxu0
        %1733 = vrot.lane.b32.xlu0 %v1095, 64
        %v1734 = vpop.permute.xlu0 %1733
        %1735 = vrot.lane.b32.xlu0 %v1096, 64
        %v1736 = vpop.permute.xlu0 %1735
        %v1738 = vsel %vm1117, %v1734, 0
        %v1741 = vsel %vm1117, %v1736, 0
        %1743 = vmatprep.subr.bf16.mxu0 0
        %1744 = vmatpush1.bf16.xpose.msra.mxu0 %v1741
        %1745 = vmatprep.subr.bf16.mxu0 0
        %1746 = vmatpush1.bf16.xpose.msra.mxu0 0
        %1747 = vmatprep.subr.bf16.mxu0 0
        %1748 = vmatpush1.bf16.xpose.msra.mxu0 0
        %1749 = vmatprep.subr.bf16.mxu0 0
        %1750 = vmatpush1.bf16.xpose.msra.mxu0 0
        %1751 = vmatprep.subr.bf16.mxu0 0
        %1752 = vmatpush1.bf16.xpose.msra.mxu0 0
        %1753 = vmatprep.subr.bf16.mxu0 0
        %1754 = vmatpush1.bf16.xpose.msra.mxu0 0
        %1755 = vmatprep.subr.bf16.mxu0 0
        %1756 = vmatpush1.bf16.xpose.msra.mxu0 0
        %1757 = vmatprep.subr.bf16.mxu0 0
        %1758 = vmatpush1.bf16.xpose.msra.mxu0 0
        %1759 = vmatprep.subr.bf16.mxu0 0
        %1760 = vmatpush1.bf16.xpose.msra.mxu0 0
        %1761 = vmatprep.subr.bf16.mxu0 0
        %1762 = vmatpush1.bf16.xpose.msra.mxu0 0
        %1763 = vmatprep.subr.bf16.mxu0 0
        %1764 = vmatpush1.bf16.xpose.msra.mxu0 0
        %1765 = vmatprep.subr.bf16.mxu0 0
        %1766 = vmatpush1.bf16.xpose.msra.mxu0 0
        %1767 = vmatprep.subr.bf16.mxu0 0
        %1768 = vmatpush1.bf16.xpose.msra.mxu0 0
        %1769 = vmatprep.subr.bf16.mxu0 0
        %1770 = vmatpush1.bf16.xpose.msra.mxu0 0
        %1771 = vmatprep.subr.bf16.mxu0 0
        %1772 = vmatpush1.bf16.xpose.msra.mxu0 0
        %1773 = vmatprep.subr.bf16.mxu0 0
        %1774 = vmatpush1.bf16.xpose.msra.mxu0 0
        %1775 = vmatprep.mubr.bf16.mxu0 0
        %1776 = vmatmul.mubr.bf16.gmra.mrb[0].mxu0 %v1738
        %v1777 = vpop.f32.mrb[0].mxu0
        %v1778 = vadd.f32 0.0, %v1777
        %v1779 = vpop.f32.mrb[0].mxu0
        %v1780 = vpop.f32.mrb[0].mxu0
        %v1781 = vadd.f32 0.0, %v1780
        %v1782 = vpop.f32.mrb[0].mxu0
        %1783 = vdwg.mxu0
        %1784 = vrot.lane.b32.xlu0 %v1098, 64
        %v1785 = vpop.permute.xlu0 %1784
        %1786 = vrot.lane.b32.xlu0 %v1099, 64
        %v1787 = vpop.permute.xlu0 %1786
        %v1789 = vsel %vm1117, %v1785, 0
        %v1792 = vsel %vm1117, %v1787, 0
        %1794 = vmatprep.subr.bf16.mxu0 0
        %1795 = vmatpush1.bf16.xpose.msra.mxu0 %v1792
        %1796 = vmatprep.subr.bf16.mxu0 0
        %1797 = vmatpush1.bf16.xpose.msra.mxu0 0
        %1798 = vmatprep.subr.bf16.mxu0 0
        %1799 = vmatpush1.bf16.xpose.msra.mxu0 0
        %1800 = vmatprep.subr.bf16.mxu0 0
        %1801 = vmatpush1.bf16.xpose.msra.mxu0 0
        %1802 = vmatprep.subr.bf16.mxu0 0
        %1803 = vmatpush1.bf16.xpose.msra.mxu0 0
        %1804 = vmatprep.subr.bf16.mxu0 0
        %1805 = vmatpush1.bf16.xpose.msra.mxu0 0
        %1806 = vmatprep.subr.bf16.mxu0 0
        %1807 = vmatpush1.bf16.xpose.msra.mxu0 0
        %1808 = vmatprep.subr.bf16.mxu0 0
        %1809 = vmatpush1.bf16.xpose.msra.mxu0 0
        %1810 = vmatprep.subr.bf16.mxu0 0
        %1811 = vmatpush1.bf16.xpose.msra.mxu0 0
        %1812 = vmatprep.subr.bf16.mxu0 0
        %1813 = vmatpush1.bf16.xpose.msra.mxu0 0
        %1814 = vmatprep.subr.bf16.mxu0 0
        %1815 = vmatpush1.bf16.xpose.msra.mxu0 0
        %1816 = vmatprep.subr.bf16.mxu0 0
        %1817 = vmatpush1.bf16.xpose.msra.mxu0 0
        %1818 = vmatprep.subr.bf16.mxu0 0
        %1819 = vmatpush1.bf16.xpose.msra.mxu0 0
        %1820 = vmatprep.subr.bf16.mxu0 0
        %1821 = vmatpush1.bf16.xpose.msra.mxu0 0
        %1822 = vmatprep.subr.bf16.mxu0 0
        %1823 = vmatpush1.bf16.xpose.msra.mxu0 0
        %1824 = vmatprep.subr.bf16.mxu0 0
        %1825 = vmatpush1.bf16.xpose.msra.mxu0 0
        %1826 = vmatprep.mubr.bf16.mxu0 0
        %1827 = vmatmul.mubr.bf16.gmra.mrb[0].mxu0 %v1789
        %v1828 = vpop.f32.mrb[0].mxu0
        %v1829 = vadd.f32 0.0, %v1828
        %v1830 = vpop.f32.mrb[0].mxu0
        %v1831 = vpop.f32.mrb[0].mxu0
        %v1832 = vadd.f32 0.0, %v1831
        %v1833 = vpop.f32.mrb[0].mxu0
        %1834 = vdwg.mxu0
        %v1835 = vsel %vm1212, %v1778, -inf
        %1836 = vmax.xlane.f32.xlu0 %v1835
        %v1837 = vpop.xlane.xlu0 %1836
        %v1838 = vsel %vm1212, %v1781, -inf
        %1839 = vmax.xlane.f32.xlu0 %v1838
        %v1840 = vpop.xlane.xlu0 %1839
        %v1841 = vsel %vm1212, %v1829, -inf
        %1842 = vmax.xlane.f32.xlu0 %v1841
        %v1843 = vpop.xlane.xlu0 %1842
        %v1844 = vsel %vm1212, %v1832, -inf
        %1845 = vmax.xlane.f32.xlu0 %v1844
        %v1846 = vpop.xlane.xlu0 %1845
        %v1847 = vsub.f32 %v1778, %v1837
        %v1848 = vsub.f32 %v1781, %v1840
        %v1849 = vsub.f32 %v1829, %v1843
        %v1850 = vsub.f32 %v1832, %v1846
        %v1851 = vmul.f32 %v1847, 1.442695
        %v1852 = vpow.pop %v1851
        %v1853 = vmul.f32 %v1848, 1.442695
        %v1854 = vpow.pop %v1853
        %v1855 = vmul.f32 %v1849, 1.442695
        %v1856 = vpow.pop %v1855
        %v1857 = vmul.f32 %v1850, 1.442695
        %v1858 = vpow.pop %v1857
        %v1859 = vsel %vm1212, %v1852, 0.0
        %1860 = vadd.xlane.f32.xlu0 %v1859
        %v1861 = vpop.xlane.xlu0 %1860
        %v1862 = vsel %vm1212, %v1854, 0.0
        %1863 = vadd.xlane.f32.xlu0 %v1862
        %v1864 = vpop.xlane.xlu0 %1863
        %v1865 = vsel %vm1212, %v1856, 0.0
        %1866 = vadd.xlane.f32.xlu0 %v1865
        %v1867 = vpop.xlane.xlu0 %1866
        %v1868 = vsel %vm1212, %v1858, 0.0
        %1869 = vadd.xlane.f32.xlu0 %v1868
        %v1870 = vpop.xlane.xlu0 %1869
        %v1871 = vrcp.pop %v1861
        %v1872 = vrcp.pop %v1864
        %v1873 = vrcp.pop %v1867
        %v1874 = vrcp.pop %v1870
        %v1875 = vmul.f32 %v1852, %v1871
        %v1876 = vmul.f32 %v1854, %v1872
        %v1877 = vmul.f32 %v1856, %v1873
        %v1878 = vmul.f32 %v1858, %v1874
        %v1879 = vpack.c.bf16 %v1876, %v1875
        %v1880 = vpack.c.bf16 %v1878, %v1877
        %1881 = vrot.lane.b32.xlu0 %v1097, 64
        %v1882 = vpop.permute.xlu0 %1881
        %v1885 = vsel %vm1212, %v1879, 0
        %1887 = vmatprep.subr.bf16.mxu0 0
        %1888 = vmatpush1.bf16.msra.mxu0 %v1882
        %1889 = vmatprep.subr.bf16.mxu0 0
        %1890 = vmatpush1.bf16.msra.mxu0 0
        %1891 = vmatprep.subr.bf16.mxu0 0
        %1892 = vmatpush1.bf16.msra.mxu0 0
        %1893 = vmatprep.subr.bf16.mxu0 0
        %1894 = vmatpush1.bf16.msra.mxu0 0
        %1895 = vmatprep.subr.bf16.mxu0 0
        %1896 = vmatpush1.bf16.msra.mxu0 0
        %1897 = vmatprep.subr.bf16.mxu0 0
        %1898 = vmatpush1.bf16.msra.mxu0 0
        %1899 = vmatprep.subr.bf16.mxu0 0
        %1900 = vmatpush1.bf16.msra.mxu0 0
        %1901 = vmatprep.subr.bf16.mxu0 0
        %1902 = vmatpush1.bf16.msra.mxu0 0
        %1903 = vmatprep.subr.bf16.mxu0 0
        %1904 = vmatpush1.bf16.msra.mxu0 0
        %1905 = vmatprep.subr.bf16.mxu0 0
        %1906 = vmatpush1.bf16.msra.mxu0 0
        %1907 = vmatprep.subr.bf16.mxu0 0
        %1908 = vmatpush1.bf16.msra.mxu0 0
        %1909 = vmatprep.subr.bf16.mxu0 0
        %1910 = vmatpush1.bf16.msra.mxu0 0
        %1911 = vmatprep.subr.bf16.mxu0 0
        %1912 = vmatpush1.bf16.msra.mxu0 0
        %1913 = vmatprep.subr.bf16.mxu0 0
        %1914 = vmatpush1.bf16.msra.mxu0 0
        %1915 = vmatprep.subr.bf16.mxu0 0
        %1916 = vmatpush1.bf16.msra.mxu0 0
        %1917 = vmatprep.subr.bf16.mxu0 0
        %1918 = vmatpush1.bf16.msra.mxu0 0
        %1919 = vmatprep.mubr.bf16.mxu0 0
        %1920 = vmatmul.mubr.bf16.gmra.mrb[0].mxu0 %v1885
        %v1921 = vpop.f32.mrb[0].mxu0
        %v1922 = vadd.f32 0.0, %v1921
        %v1923 = vpop.f32.mrb[0].mxu0
        %v1924 = vpop.f32.mrb[0].mxu0
        %v1925 = vadd.f32 0.0, %v1924
        %v1926 = vpop.f32.mrb[0].mxu0
        %1927 = vdwg.mxu0
        %1928 = vrot.lane.b32.xlu0 %v1100, 64
        %v1929 = vpop.permute.xlu0 %1928
        %v1932 = vsel %vm1212, %v1880, 0
        %1934 = vmatprep.subr.bf16.mxu0 0
        %1935 = vmatpush1.bf16.msra.mxu0 %v1929
        %1936 = vmatprep.subr.bf16.mxu0 0
        %1937 = vmatpush1.bf16.msra.mxu0 0
        %1938 = vmatprep.subr.bf16.mxu0 0
        %1939 = vmatpush1.bf16.msra.mxu0 0
        %1940 = vmatprep.subr.bf16.mxu0 0
        %1941 = vmatpush1.bf16.msra.mxu0 0
        %1942 = vmatprep.subr.bf16.mxu0 0
        %1943 = vmatpush1.bf16.msra.mxu0 0
        %1944 = vmatprep.subr.bf16.mxu0 0
        %1945 = vmatpush1.bf16.msra.mxu0 0
        %1946 = vmatprep.subr.bf16.mxu0 0
        %1947 = vmatpush1.bf16.msra.mxu0 0
        %1948 = vmatprep.subr.bf16.mxu0 0
        %1949 = vmatpush1.bf16.msra.mxu0 0
        %1950 = vmatprep.subr.bf16.mxu0 0
        %1951 = vmatpush1.bf16.msra.mxu0 0
        %1952 = vmatprep.subr.bf16.mxu0 0
        %1953 = vmatpush1.bf16.msra.mxu0 0
        %1954 = vmatprep.subr.bf16.mxu0 0
        %1955 = vmatpush1.bf16.msra.mxu0 0
        %1956 = vmatprep.subr.bf16.mxu0 0
        %1957 = vmatpush1.bf16.msra.mxu0 0
        %1958 = vmatprep.subr.bf16.mxu0 0
        %1959 = vmatpush1.bf16.msra.mxu0 0
        %1960 = vmatprep.subr.bf16.mxu0 0
        %1961 = vmatpush1.bf16.msra.mxu0 0
        %1962 = vmatprep.subr.bf16.mxu0 0
        %1963 = vmatpush1.bf16.msra.mxu0 0
        %1964 = vmatprep.subr.bf16.mxu0 0
        %1965 = vmatpush1.bf16.msra.mxu0 0
        %1966 = vmatprep.mubr.bf16.mxu0 0
        %1967 = vmatmul.mubr.bf16.gmra.mrb[0].mxu0 %v1932
        %v1968 = vpop.f32.mrb[0].mxu0
        %v1969 = vadd.f32 0.0, %v1968
        %v1970 = vpop.f32.mrb[0].mxu0
        %v1971 = vpop.f32.mrb[0].mxu0
        %v1972 = vadd.f32 0.0, %v1971
        %v1973 = vpop.f32.mrb[0].mxu0
        %1974 = vdwg.mxu0
        %v1975 = vpack.c.bf16 %v1925, %v1922
        %v1976 = vpack.c.bf16 %v1972, %v1969
        %v1981 = vunpack.c.l.b16 %v1109
        %v1982 = vunpack.c.l.b16 %v1110
        %v1983 = vunpack.c.l.b16 %v1111
        %v1984 = vunpack.c.l.b16 %v1112
        %v1985 = vpack.c.b16 %v1982, %v1981
        %v1986 = vpack.c.b16 %v1984, %v1983
        %v1990 = vsel %vm1117, %v1975, 0
        %v1993 = vsel %vm1117, %v1976, 0
        %1995 = vmatprep.subr.bf16.mxu0 0
        %1996 = vmatpush1.bf16.msra.mxu0 %v1985
        %1997 = vmatprep.subr.bf16.mxu0 0
        %1998 = vmatpush1.bf16.msra.mxu0 %v1986
        %1999 = vmatprep.subr.bf16.mxu0 0
        %2000 = vmatpush1.bf16.msra.mxu0 0
        %2001 = vmatprep.subr.bf16.mxu0 0
        %2002 = vmatpush1.bf16.msra.mxu0 0
        %2003 = vmatprep.subr.bf16.mxu0 0
        %2004 = vmatpush1.bf16.msra.mxu0 0
        %2005 = vmatprep.subr.bf16.mxu0 0
        %2006 = vmatpush1.bf16.msra.mxu0 0
        %2007 = vmatprep.subr.bf16.mxu0 0
        %2008 = vmatpush1.bf16.msra.mxu0 0
        %2009 = vmatprep.subr.bf16.mxu0 0
        %2010 = vmatpush1.bf16.msra.mxu0 0
        %2011 = vmatprep.subr.bf16.mxu0 0
        %2012 = vmatpush1.bf16.msra.mxu0 0
        %2013 = vmatprep.subr.bf16.mxu0 0
        %2014 = vmatpush1.bf16.msra.mxu0 0
        %2015 = vmatprep.subr.bf16.mxu0 0
        %2016 = vmatpush1.bf16.msra.mxu0 0
        %2017 = vmatprep.subr.bf16.mxu0 0
        %2018 = vmatpush1.bf16.msra.mxu0 0
        %2019 = vmatprep.subr.bf16.mxu0 0
        %2020 = vmatpush1.bf16.msra.mxu0 0
        %2021 = vmatprep.subr.bf16.mxu0 0
        %2022 = vmatpush1.bf16.msra.mxu0 0
        %2023 = vmatprep.subr.bf16.mxu0 0
        %2024 = vmatpush1.bf16.msra.mxu0 0
        %2025 = vmatprep.subr.bf16.mxu0 0
        %2026 = vmatpush1.bf16.msra.mxu0 0
        %2027 = vmatprep.mubr.bf16.mxu0 0
        %2028 = vmatmul.mubr.bf16.gmra.mrb[0].mxu0 %v1990
        %v2029 = vpop.f32.mrb[0].mxu0
        %v2030 = vadd.f32 0.0, %v2029
        %v2031 = vpop.f32.mrb[0].mxu0
        %v2032 = vpop.f32.mrb[0].mxu0
        %v2033 = vadd.f32 0.0, %v2032
        %v2034 = vpop.f32.mrb[0].mxu0
        %2035 = vmatprep.mubr.bf16.mxu0 0
        %2036 = vmatmul.mubr.bf16.gmra.mrb[0].mxu0 %v1993
        %v2037 = vpop.f32.mrb[0].mxu0
        %v2038 = vadd.f32 0.0, %v2037
        %v2039 = vpop.f32.mrb[0].mxu0
        %v2040 = vpop.f32.mrb[0].mxu0
        %v2041 = vadd.f32 0.0, %v2040
        %v2042 = vpop.f32.mrb[0].mxu0
        %2043 = vdwg.mxu0
        %v2044 = vadd.f32 %v1719, %v2030
        %v2045 = vadd.f32 %v1722, %v2033
        %v2046 = vadd.f32 %v1727, %v2038
        %v2047 = vadd.f32 %v1730, %v2041
        %2048 = vrot.lane.b32.xlu0 %v1095, 32
        %v2049 = vpop.permute.xlu0 %2048
        %2050 = vrot.lane.b32.xlu0 %v1096, 32
        %v2051 = vpop.permute.xlu0 %2050
        %v2053 = vsel %vm1117, %v2049, 0
        %v2056 = vsel %vm1117, %v2051, 0
        %2058 = vmatprep.subr.bf16.mxu0 0
        %2059 = vmatpush1.bf16.xpose.msra.mxu0 %v2056
        %2060 = vmatprep.subr.bf16.mxu0 0
        %2061 = vmatpush1.bf16.xpose.msra.mxu0 0
        %2062 = vmatprep.subr.bf16.mxu0 0
        %2063 = vmatpush1.bf16.xpose.msra.mxu0 0
        %2064 = vmatprep.subr.bf16.mxu0 0
        %2065 = vmatpush1.bf16.xpose.msra.mxu0 0
        %2066 = vmatprep.subr.bf16.mxu0 0
        %2067 = vmatpush1.bf16.xpose.msra.mxu0 0
        %2068 = vmatprep.subr.bf16.mxu0 0
        %2069 = vmatpush1.bf16.xpose.msra.mxu0 0
        %2070 = vmatprep.subr.bf16.mxu0 0
        %2071 = vmatpush1.bf16.xpose.msra.mxu0 0
        %2072 = vmatprep.subr.bf16.mxu0 0
        %2073 = vmatpush1.bf16.xpose.msra.mxu0 0
        %2074 = vmatprep.subr.bf16.mxu0 0
        %2075 = vmatpush1.bf16.xpose.msra.mxu0 0
        %2076 = vmatprep.subr.bf16.mxu0 0
        %2077 = vmatpush1.bf16.xpose.msra.mxu0 0
        %2078 = vmatprep.subr.bf16.mxu0 0
        %2079 = vmatpush1.bf16.xpose.msra.mxu0 0
        %2080 = vmatprep.subr.bf16.mxu0 0
        %2081 = vmatpush1.bf16.xpose.msra.mxu0 0
        %2082 = vmatprep.subr.bf16.mxu0 0
        %2083 = vmatpush1.bf16.xpose.msra.mxu0 0
        %2084 = vmatprep.subr.bf16.mxu0 0
        %2085 = vmatpush1.bf16.xpose.msra.mxu0 0
        %2086 = vmatprep.subr.bf16.mxu0 0
        %2087 = vmatpush1.bf16.xpose.msra.mxu0 0
        %2088 = vmatprep.subr.bf16.mxu0 0
        %2089 = vmatpush1.bf16.xpose.msra.mxu0 0
        %2090 = vmatprep.mubr.bf16.mxu0 0
        %2091 = vmatmul.mubr.bf16.gmra.mrb[0].mxu0 %v2053
        %v2092 = vpop.f32.mrb[0].mxu0
        %v2093 = vadd.f32 0.0, %v2092
        %v2094 = vpop.f32.mrb[0].mxu0
        %v2095 = vpop.f32.mrb[0].mxu0
        %v2096 = vadd.f32 0.0, %v2095
        %v2097 = vpop.f32.mrb[0].mxu0
        %2098 = vdwg.mxu0
        %2099 = vrot.lane.b32.xlu0 %v1098, 32
        %v2100 = vpop.permute.xlu0 %2099
        %2101 = vrot.lane.b32.xlu0 %v1099, 32
        %v2102 = vpop.permute.xlu0 %2101
        %v2104 = vsel %vm1117, %v2100, 0
        %v2107 = vsel %vm1117, %v2102, 0
        %2109 = vmatprep.subr.bf16.mxu0 0
        %2110 = vmatpush1.bf16.xpose.msra.mxu0 %v2107
        %2111 = vmatprep.subr.bf16.mxu0 0
        %2112 = vmatpush1.bf16.xpose.msra.mxu0 0
        %2113 = vmatprep.subr.bf16.mxu0 0
        %2114 = vmatpush1.bf16.xpose.msra.mxu0 0
        %2115 = vmatprep.subr.bf16.mxu0 0
        %2116 = vmatpush1.bf16.xpose.msra.mxu0 0
        %2117 = vmatprep.subr.bf16.mxu0 0
        %2118 = vmatpush1.bf16.xpose.msra.mxu0 0
        %2119 = vmatprep.subr.bf16.mxu0 0
        %2120 = vmatpush1.bf16.xpose.msra.mxu0 0
        %2121 = vmatprep.subr.bf16.mxu0 0
        %2122 = vmatpush1.bf16.xpose.msra.mxu0 0
        %2123 = vmatprep.subr.bf16.mxu0 0
        %2124 = vmatpush1.bf16.xpose.msra.mxu0 0
        %2125 = vmatprep.subr.bf16.mxu0 0
        %2126 = vmatpush1.bf16.xpose.msra.mxu0 0
        %2127 = vmatprep.subr.bf16.mxu0 0
        %2128 = vmatpush1.bf16.xpose.msra.mxu0 0
        %2129 = vmatprep.subr.bf16.mxu0 0
        %2130 = vmatpush1.bf16.xpose.msra.mxu0 0
        %2131 = vmatprep.subr.bf16.mxu0 0
        %2132 = vmatpush1.bf16.xpose.msra.mxu0 0
        %2133 = vmatprep.subr.bf16.mxu0 0
        %2134 = vmatpush1.bf16.xpose.msra.mxu0 0
        %2135 = vmatprep.subr.bf16.mxu0 0
        %2136 = vmatpush1.bf16.xpose.msra.mxu0 0
        %2137 = vmatprep.subr.bf16.mxu0 0
        %2138 = vmatpush1.bf16.xpose.msra.mxu0 0
        %2139 = vmatprep.subr.bf16.mxu0 0
        %2140 = vmatpush1.bf16.xpose.msra.mxu0 0
        %2141 = vmatprep.mubr.bf16.mxu0 0
        %2142 = vmatmul.mubr.bf16.gmra.mrb[0].mxu0 %v2104
        %v2143 = vpop.f32.mrb[0].mxu0
        %v2144 = vadd.f32 0.0, %v2143
        %v2145 = vpop.f32.mrb[0].mxu0
        %v2146 = vpop.f32.mrb[0].mxu0
        %v2147 = vadd.f32 0.0, %v2146
        %v2148 = vpop.f32.mrb[0].mxu0
        %2149 = vdwg.mxu0
        %v2150 = vsel %vm1212, %v2093, -inf
        %2151 = vmax.xlane.f32.xlu0 %v2150
        %v2152 = vpop.xlane.xlu0 %2151
        %v2153 = vsel %vm1212, %v2096, -inf
        %2154 = vmax.xlane.f32.xlu0 %v2153
        %v2155 = vpop.xlane.xlu0 %2154
        %v2156 = vsel %vm1212, %v2144, -inf
        %2157 = vmax.xlane.f32.xlu0 %v2156
        %v2158 = vpop.xlane.xlu0 %2157
        %v2159 = vsel %vm1212, %v2147, -inf
        %2160 = vmax.xlane.f32.xlu0 %v2159
        %v2161 = vpop.xlane.xlu0 %2160
        %v2162 = vsub.f32 %v2093, %v2152
        %v2163 = vsub.f32 %v2096, %v2155
        %v2164 = vsub.f32 %v2144, %v2158
        %v2165 = vsub.f32 %v2147, %v2161
        %v2166 = vmul.f32 %v2162, 1.442695
        %v2167 = vpow.pop %v2166
        %v2168 = vmul.f32 %v2163, 1.442695
        %v2169 = vpow.pop %v2168
        %v2170 = vmul.f32 %v2164, 1.442695
        %v2171 = vpow.pop %v2170
        %v2172 = vmul.f32 %v2165, 1.442695
        %v2173 = vpow.pop %v2172
        %v2174 = vsel %vm1212, %v2167, 0.0
        %2175 = vadd.xlane.f32.xlu0 %v2174
        %v2176 = vpop.xlane.xlu0 %2175
        %v2177 = vsel %vm1212, %v2169, 0.0
        %2178 = vadd.xlane.f32.xlu0 %v2177
        %v2179 = vpop.xlane.xlu0 %2178
        %v2180 = vsel %vm1212, %v2171, 0.0
        %2181 = vadd.xlane.f32.xlu0 %v2180
        %v2182 = vpop.xlane.xlu0 %2181
        %v2183 = vsel %vm1212, %v2173, 0.0
        %2184 = vadd.xlane.f32.xlu0 %v2183
        %v2185 = vpop.xlane.xlu0 %2184
        %v2186 = vrcp.pop %v2176
        %v2187 = vrcp.pop %v2179
        %v2188 = vrcp.pop %v2182
        %v2189 = vrcp.pop %v2185
        %v2190 = vmul.f32 %v2167, %v2186
        %v2191 = vmul.f32 %v2169, %v2187
        %v2192 = vmul.f32 %v2171, %v2188
        %v2193 = vmul.f32 %v2173, %v2189
        %v2194 = vpack.c.bf16 %v2191, %v2190
        %v2195 = vpack.c.bf16 %v2193, %v2192
        %2196 = vrot.lane.b32.xlu0 %v1097, 32
        %v2197 = vpop.permute.xlu0 %2196
        %v2200 = vsel %vm1212, %v2194, 0
        %2202 = vmatprep.subr.bf16.mxu0 0
        %2203 = vmatpush1.bf16.msra.mxu0 %v2197
        %2204 = vmatprep.subr.bf16.mxu0 0
        %2205 = vmatpush1.bf16.msra.mxu0 0
        %2206 = vmatprep.subr.bf16.mxu0 0
        %2207 = vmatpush1.bf16.msra.mxu0 0
        %2208 = vmatprep.subr.bf16.mxu0 0
        %2209 = vmatpush1.bf16.msra.mxu0 0
        %2210 = vmatprep.subr.bf16.mxu0 0
        %2211 = vmatpush1.bf16.msra.mxu0 0
        %2212 = vmatprep.subr.bf16.mxu0 0
        %2213 = vmatpush1.bf16.msra.mxu0 0
        %2214 = vmatprep.subr.bf16.mxu0 0
        %2215 = vmatpush1.bf16.msra.mxu0 0
        %2216 = vmatprep.subr.bf16.mxu0 0
        %2217 = vmatpush1.bf16.msra.mxu0 0
        %2218 = vmatprep.subr.bf16.mxu0 0
        %2219 = vmatpush1.bf16.msra.mxu0 0
        %2220 = vmatprep.subr.bf16.mxu0 0
        %2221 = vmatpush1.bf16.msra.mxu0 0
        %2222 = vmatprep.subr.bf16.mxu0 0
        %2223 = vmatpush1.bf16.msra.mxu0 0
        %2224 = vmatprep.subr.bf16.mxu0 0
        %2225 = vmatpush1.bf16.msra.mxu0 0
        %2226 = vmatprep.subr.bf16.mxu0 0
        %2227 = vmatpush1.bf16.msra.mxu0 0
        %2228 = vmatprep.subr.bf16.mxu0 0
        %2229 = vmatpush1.bf16.msra.mxu0 0
        %2230 = vmatprep.subr.bf16.mxu0 0
        %2231 = vmatpush1.bf16.msra.mxu0 0
        %2232 = vmatprep.subr.bf16.mxu0 0
        %2233 = vmatpush1.bf16.msra.mxu0 0
        %2234 = vmatprep.mubr.bf16.mxu0 0
        %2235 = vmatmul.mubr.bf16.gmra.mrb[0].mxu0 %v2200
        %v2236 = vpop.f32.mrb[0].mxu0
        %v2237 = vadd.f32 0.0, %v2236
        %v2238 = vpop.f32.mrb[0].mxu0
        %v2239 = vpop.f32.mrb[0].mxu0
        %v2240 = vadd.f32 0.0, %v2239
        %v2241 = vpop.f32.mrb[0].mxu0
        %2242 = vdwg.mxu0
        %2243 = vrot.lane.b32.xlu0 %v1100, 32
        %v2244 = vpop.permute.xlu0 %2243
        %v2247 = vsel %vm1212, %v2195, 0
        %2249 = vmatprep.subr.bf16.mxu0 0
        %2250 = vmatpush1.bf16.msra.mxu0 %v2244
        %2251 = vmatprep.subr.bf16.mxu0 0
        %2252 = vmatpush1.bf16.msra.mxu0 0
        %2253 = vmatprep.subr.bf16.mxu0 0
        %2254 = vmatpush1.bf16.msra.mxu0 0
        %2255 = vmatprep.subr.bf16.mxu0 0
        %2256 = vmatpush1.bf16.msra.mxu0 0
        %2257 = vmatprep.subr.bf16.mxu0 0
        %2258 = vmatpush1.bf16.msra.mxu0 0
        %2259 = vmatprep.subr.bf16.mxu0 0
        %2260 = vmatpush1.bf16.msra.mxu0 0
        %2261 = vmatprep.subr.bf16.mxu0 0
        %2262 = vmatpush1.bf16.msra.mxu0 0
        %2263 = vmatprep.subr.bf16.mxu0 0
        %2264 = vmatpush1.bf16.msra.mxu0 0
        %2265 = vmatprep.subr.bf16.mxu0 0
        %2266 = vmatpush1.bf16.msra.mxu0 0
        %2267 = vmatprep.subr.bf16.mxu0 0
        %2268 = vmatpush1.bf16.msra.mxu0 0
        %2269 = vmatprep.subr.bf16.mxu0 0
        %2270 = vmatpush1.bf16.msra.mxu0 0
        %2271 = vmatprep.subr.bf16.mxu0 0
        %2272 = vmatpush1.bf16.msra.mxu0 0
        %2273 = vmatprep.subr.bf16.mxu0 0
        %2274 = vmatpush1.bf16.msra.mxu0 0
        %2275 = vmatprep.subr.bf16.mxu0 0
        %2276 = vmatpush1.bf16.msra.mxu0 0
        %2277 = vmatprep.subr.bf16.mxu0 0
        %2278 = vmatpush1.bf16.msra.mxu0 0
        %2279 = vmatprep.subr.bf16.mxu0 0
        %2280 = vmatpush1.bf16.msra.mxu0 0
        %2281 = vmatprep.mubr.bf16.mxu0 0
        %2282 = vmatmul.mubr.bf16.gmra.mrb[0].mxu0 %v2247
        %v2283 = vpop.f32.mrb[0].mxu0
        %v2284 = vadd.f32 0.0, %v2283
        %v2285 = vpop.f32.mrb[0].mxu0
        %v2286 = vpop.f32.mrb[0].mxu0
        %v2287 = vadd.f32 0.0, %v2286
        %v2288 = vpop.f32.mrb[0].mxu0
        %2289 = vdwg.mxu0
        %v2290 = vpack.c.bf16 %v2240, %v2237
        %v2291 = vpack.c.bf16 %v2287, %v2284
        %v2296 = vunpack.c.l.b16 %v1113
        %v2297 = vunpack.c.l.b16 %v1114
        %v2298 = vunpack.c.l.b16 %v1115
        %v2299 = vunpack.c.l.b16 %v1116
        %v2300 = vpack.c.b16 %v2297, %v2296
        %v2301 = vpack.c.b16 %v2299, %v2298
        %v2305 = vsel %vm1117, %v2290, 0
        %v2308 = vsel %vm1117, %v2291, 0
        %2310 = vmatprep.subr.bf16.mxu0 0
        %2311 = vmatpush1.bf16.msra.mxu0 %v2300
        %2312 = vmatprep.subr.bf16.mxu0 0
        %2313 = vmatpush1.bf16.msra.mxu0 %v2301
        %2314 = vmatprep.subr.bf16.mxu0 0
        %2315 = vmatpush1.bf16.msra.mxu0 0
        %2316 = vmatprep.subr.bf16.mxu0 0
        %2317 = vmatpush1.bf16.msra.mxu0 0
        %2318 = vmatprep.subr.bf16.mxu0 0
        %2319 = vmatpush1.bf16.msra.mxu0 0
        %2320 = vmatprep.subr.bf16.mxu0 0
        %2321 = vmatpush1.bf16.msra.mxu0 0
        %2322 = vmatprep.subr.bf16.mxu0 0
        %2323 = vmatpush1.bf16.msra.mxu0 0
        %2324 = vmatprep.subr.bf16.mxu0 0
        %2325 = vmatpush1.bf16.msra.mxu0 0
        %2326 = vmatprep.subr.bf16.mxu0 0
        %2327 = vmatpush1.bf16.msra.mxu0 0
        %2328 = vmatprep.subr.bf16.mxu0 0
        %2329 = vmatpush1.bf16.msra.mxu0 0
        %2330 = vmatprep.subr.bf16.mxu0 0
        %2331 = vmatpush1.bf16.msra.mxu0 0
        %2332 = vmatprep.subr.bf16.mxu0 0
        %2333 = vmatpush1.bf16.msra.mxu0 0
        %2334 = vmatprep.subr.bf16.mxu0 0
        %2335 = vmatpush1.bf16.msra.mxu0 0
        %2336 = vmatprep.subr.bf16.mxu0 0
        %2337 = vmatpush1.bf16.msra.mxu0 0
        %2338 = vmatprep.subr.bf16.mxu0 0
        %2339 = vmatpush1.bf16.msra.mxu0 0
        %2340 = vmatprep.subr.bf16.mxu0 0
        %2341 = vmatpush1.bf16.msra.mxu0 0
        %2342 = vmatprep.mubr.bf16.mxu0 0
        %2343 = vmatmul.mubr.bf16.gmra.mrb[0].mxu0 %v2305
        %v2344 = vpop.f32.mrb[0].mxu0
        %v2345 = vadd.f32 0.0, %v2344
        %v2346 = vpop.f32.mrb[0].mxu0
        %v2347 = vpop.f32.mrb[0].mxu0
        %v2348 = vadd.f32 0.0, %v2347
        %v2349 = vpop.f32.mrb[0].mxu0
        %2350 = vmatprep.mubr.bf16.mxu0 0
        %2351 = vmatmul.mubr.bf16.gmra.mrb[0].mxu0 %v2308
        %v2352 = vpop.f32.mrb[0].mxu0
        %v2353 = vadd.f32 0.0, %v2352
        %v2354 = vpop.f32.mrb[0].mxu0
        %v2355 = vpop.f32.mrb[0].mxu0
        %v2356 = vadd.f32 0.0, %v2355
        %v2357 = vpop.f32.mrb[0].mxu0
        %2358 = vdwg.mxu0
        %v2359 = vadd.f32 %v2044, %v2345
        %v2360 = vadd.f32 %v2045, %v2348
        %v2361 = vadd.f32 %v2046, %v2353
        %v2362 = vadd.f32 %v2047, %v2356
        %v2363 = vadd.f32 %v752, %v2359
        %v2364 = vadd.f32 %v753, %v2360
        %v2365 = vadd.f32 %v754, %v2361
        %v2366 = vadd.f32 %v755, %v2362
        %v2367 = vld [vmem:[%s6] sm:$0x1]
        %v2368 = vld [vmem:[%s7] sm:$0x1]
        %2369 = vadd.xlane.f32.xlu0 %v2363
        %v2370 = vpop.xlane.xlu0 %2369
        %2371 = vadd.xlane.f32.xlu0 %v2364
        %v2372 = vpop.xlane.xlu0 %2371
        %2373 = vadd.xlane.f32.xlu0 %v2365
        %v2374 = vpop.xlane.xlu0 %2373
        %2375 = vadd.xlane.f32.xlu0 %v2366
        %v2376 = vpop.xlane.xlu0 %2375
        %v2377 = vmul.f32 %v2370, %v774
        %v2378 = vmul.f32 %v2372, %v774
        %v2379 = vmul.f32 %v2374, %v774
        %v2380 = vmul.f32 %v2376, %v774
        %v2381 = vsub.f32 %v2363, %v2377
        %v2382 = vsub.f32 %v2364, %v2378
        %v2383 = vsub.f32 %v2365, %v2379
        %v2384 = vsub.f32 %v2366, %v2380
        %v2385 = vmul.f32 %v2381, %v2381
        %v2386 = vmul.f32 %v2382, %v2382
        %v2387 = vmul.f32 %v2383, %v2383
        %v2388 = vmul.f32 %v2384, %v2384
        %2389 = vadd.xlane.f32.xlu0 %v2385
        %v2390 = vpop.xlane.xlu0 %2389
        %2391 = vadd.xlane.f32.xlu0 %v2386
        %v2392 = vpop.xlane.xlu0 %2391
        %2393 = vadd.xlane.f32.xlu0 %v2387
        %v2394 = vpop.xlane.xlu0 %2393
        %2395 = vadd.xlane.f32.xlu0 %v2388
        %v2396 = vpop.xlane.xlu0 %2395
        %v2397 = vmul.f32 %v2390, %v774
        %v2398 = vmul.f32 %v2392, %v774
        %v2399 = vmul.f32 %v2394, %v774
        %v2400 = vmul.f32 %v2396, %v774
        %v2401 = vadd.f32 %v2397, 1e-05
        %v2402 = vadd.f32 %v2398, 1e-05
        %v2403 = vadd.f32 %v2399, 1e-05
        %v2404 = vadd.f32 %v2400, 1e-05
        %v2405 = vrsqrt.pop %v2401
        %v2406 = vrsqrt.pop %v2402
        %v2407 = vrsqrt.pop %v2403
        %v2408 = vrsqrt.pop %v2404
        %v2409 = vmul.f32 %v2381, %v2405
        %v2410 = vmul.f32 %v2382, %v2406
        %v2411 = vmul.f32 %v2383, %v2407
        %v2412 = vmul.f32 %v2384, %v2408
        %v2414 = vlaneseq
        %v2415 = vshrl.u32 %v2414, 7
        %v2416 = vsub.s32 0, %v2415
        %v2417 = vrot.slane %v2367, %v2416
        %v2419 = vmul.f32 %v2409, %v2417
        %v2420 = vmul.f32 %v2410, %v2417
        %v2421 = vmul.f32 %v2411, %v2417
        %v2422 = vmul.f32 %v2412, %v2417
        %v2424 = vlaneseq
        %v2425 = vshrl.u32 %v2424, 7
        %v2426 = vsub.s32 0, %v2425
        %v2427 = vrot.slane %v2368, %v2426
        %v2429 = vadd.f32 %v2419, %v2427
        %v2430 = vadd.f32 %v2420, %v2427
        %v2431 = vadd.f32 %v2421, %v2427
        %v2432 = vadd.f32 %v2422, %v2427
        %v2433 = vpack.c.bf16 %v2430, %v2429
        %v2434 = vpack.c.bf16 %v2432, %v2431
        %v2435 = vld [vmem:[%s8] sm:$0x1]
        %v2436 = vld [vmem:[%s9] sm:$0x1]
        %2437 = vadd.xlane.f32.xlu0 %v756
        %v2438 = vpop.xlane.xlu0 %2437
        %2439 = vadd.xlane.f32.xlu0 %v757
        %v2440 = vpop.xlane.xlu0 %2439
        %2441 = vadd.xlane.f32.xlu0 %v758
        %v2442 = vpop.xlane.xlu0 %2441
        %2443 = vadd.xlane.f32.xlu0 %v759
        %v2444 = vpop.xlane.xlu0 %2443
        %2445 = vadd.xlane.f32.xlu0 %v760
        %v2446 = vpop.xlane.xlu0 %2445
        %2447 = vadd.xlane.f32.xlu0 %v761
        %v2448 = vpop.xlane.xlu0 %2447
        %2449 = vadd.xlane.f32.xlu0 %v762
        %v2450 = vpop.xlane.xlu0 %2449
        %2451 = vadd.xlane.f32.xlu0 %v763
        %v2452 = vpop.xlane.xlu0 %2451
        %v2453 = vmul.f32 %v2438, %v774
        %v2454 = vmul.f32 %v2440, %v774
        %v2455 = vmul.f32 %v2442, %v774
        %v2456 = vmul.f32 %v2444, %v774
        %v2457 = vmul.f32 %v2446, %v774
        %v2458 = vmul.f32 %v2448, %v774
        %v2459 = vmul.f32 %v2450, %v774
        %v2460 = vmul.f32 %v2452, %v774
        %v2461 = vsub.f32 %v756, %v2453
        %v2462 = vsub.f32 %v757, %v2454
        %v2463 = vsub.f32 %v758, %v2455
        %v2464 = vsub.f32 %v759, %v2456
        %v2465 = vsub.f32 %v760, %v2457
        %v2466 = vsub.f32 %v761, %v2458
        %v2467 = vsub.f32 %v762, %v2459
        %v2468 = vsub.f32 %v763, %v2460
        %v2469 = vmul.f32 %v2461, %v2461
        %v2470 = vmul.f32 %v2462, %v2462
        %v2471 = vmul.f32 %v2463, %v2463
        %v2472 = vmul.f32 %v2464, %v2464
        %v2473 = vmul.f32 %v2465, %v2465
        %v2474 = vmul.f32 %v2466, %v2466
        %v2475 = vmul.f32 %v2467, %v2467
        %v2476 = vmul.f32 %v2468, %v2468
        %2477 = vadd.xlane.f32.xlu0 %v2469
        %v2478 = vpop.xlane.xlu0 %2477
        %2479 = vadd.xlane.f32.xlu0 %v2470
        %v2480 = vpop.xlane.xlu0 %2479
        %2481 = vadd.xlane.f32.xlu0 %v2471
        %v2482 = vpop.xlane.xlu0 %2481
        %2483 = vadd.xlane.f32.xlu0 %v2472
        %v2484 = vpop.xlane.xlu0 %2483
        %2485 = vadd.xlane.f32.xlu0 %v2473
        %v2486 = vpop.xlane.xlu0 %2485
        %2487 = vadd.xlane.f32.xlu0 %v2474
        %v2488 = vpop.xlane.xlu0 %2487
        %2489 = vadd.xlane.f32.xlu0 %v2475
        %v2490 = vpop.xlane.xlu0 %2489
        %2491 = vadd.xlane.f32.xlu0 %v2476
        %v2492 = vpop.xlane.xlu0 %2491
        %v2493 = vmul.f32 %v2478, %v774
        %v2494 = vmul.f32 %v2480, %v774
        %v2495 = vmul.f32 %v2482, %v774
        %v2496 = vmul.f32 %v2484, %v774
        %v2497 = vmul.f32 %v2486, %v774
        %v2498 = vmul.f32 %v2488, %v774
        %v2499 = vmul.f32 %v2490, %v774
        %v2500 = vmul.f32 %v2492, %v774
        %v2501 = vadd.f32 %v2493, 1e-05
        %v2502 = vadd.f32 %v2494, 1e-05
        %v2503 = vadd.f32 %v2495, 1e-05
        %v2504 = vadd.f32 %v2496, 1e-05
        %v2505 = vadd.f32 %v2497, 1e-05
        %v2506 = vadd.f32 %v2498, 1e-05
        %v2507 = vadd.f32 %v2499, 1e-05
        %v2508 = vadd.f32 %v2500, 1e-05
        %v2509 = vrsqrt.pop %v2501
        %v2510 = vrsqrt.pop %v2502
        %v2511 = vrsqrt.pop %v2503
        %v2512 = vrsqrt.pop %v2504
        %v2513 = vrsqrt.pop %v2505
        %v2514 = vrsqrt.pop %v2506
        %v2515 = vrsqrt.pop %v2507
        %v2516 = vrsqrt.pop %v2508
        %v2517 = vmul.f32 %v2461, %v2509
        %v2518 = vmul.f32 %v2462, %v2510
        %v2519 = vmul.f32 %v2463, %v2511
        %v2520 = vmul.f32 %v2464, %v2512
        %v2521 = vmul.f32 %v2465, %v2513
        %v2522 = vmul.f32 %v2466, %v2514
        %v2523 = vmul.f32 %v2467, %v2515
        %v2524 = vmul.f32 %v2468, %v2516
        %v2526 = vlaneseq
        %v2527 = vshrl.u32 %v2526, 7
        %v2528 = vsub.s32 0, %v2527
        %v2529 = vrot.slane %v2435, %v2528
        %v2531 = vmul.f32 %v2517, %v2529
        %v2532 = vmul.f32 %v2518, %v2529
        %v2533 = vmul.f32 %v2519, %v2529
        %v2534 = vmul.f32 %v2520, %v2529
        %v2535 = vmul.f32 %v2521, %v2529
        %v2536 = vmul.f32 %v2522, %v2529
        %v2537 = vmul.f32 %v2523, %v2529
        %v2538 = vmul.f32 %v2524, %v2529
        %v2540 = vlaneseq
        %v2541 = vshrl.u32 %v2540, 7
        %v2542 = vsub.s32 0, %v2541
        %v2543 = vrot.slane %v2436, %v2542
        %v2545 = vadd.f32 %v2531, %v2543
        %v2546 = vadd.f32 %v2532, %v2543
        %v2547 = vadd.f32 %v2533, %v2543
        %v2548 = vadd.f32 %v2534, %v2543
        %v2549 = vadd.f32 %v2535, %v2543
        %v2550 = vadd.f32 %v2536, %v2543
        %v2551 = vadd.f32 %v2537, %v2543
        %v2552 = vadd.f32 %v2538, %v2543
        %v2553 = vpack.c.bf16 %v2546, %v2545
        %v2554 = vpack.c.bf16 %v2548, %v2547
        %v2555 = vpack.c.bf16 %v2550, %v2549
        %v2556 = vpack.c.bf16 %v2552, %v2551
        %v2557 = vld [vmem:[#allocation8] sm:$0xf]
        %v2558 = vld [vmem:[#allocation8 + $0x4] sm:$0xf]
        %v2559 = vld [vmem:[#allocation8 + $0x8] sm:$0xf]
        %v2560 = vld [vmem:[#allocation8 + $0xc] sm:$0xf]
        %v2561 = vld [vmem:[#allocation8 + $0x10] sm:$0xf]
        %v2562 = vld [vmem:[#allocation8 + $0x14] sm:$0xf]
        %v2563 = vld [vmem:[#allocation8 + $0x18] sm:$0xf]
        %v2564 = vld [vmem:[#allocation8 + $0x1c] sm:$0xf]
        %v2565 = vld [vmem:[#allocation8 + $0x20] sm:$0xf]
        %v2566 = vld [vmem:[#allocation8 + $0x24] sm:$0xf]
        %v2567 = vld [vmem:[#allocation8 + $0x28] sm:$0xf]
        %v2568 = vld [vmem:[#allocation8 + $0x2c] sm:$0xf]
        %v2569 = vld [vmem:[#allocation8 + $0x30] sm:$0xf]
        %v2570 = vld [vmem:[#allocation8 + $0x34] sm:$0xf]
        %v2571 = vld [vmem:[#allocation8 + $0x38] sm:$0xf]
        %v2572 = vld [vmem:[#allocation8 + $0x3c] sm:$0xf]
        %v2589 = vunpack.c.l.b16 %v2557
        %v2590 = vunpack.c.l.b16 %v2558
        %v2591 = vunpack.c.l.b16 %v2559
        %v2592 = vunpack.c.l.b16 %v2560
        %v2593 = vunpack.c.l.b16 %v2561
        %v2594 = vunpack.c.l.b16 %v2562
        %v2595 = vunpack.c.l.b16 %v2563
        %v2596 = vunpack.c.l.b16 %v2564
        %v2597 = vunpack.c.l.b16 %v2565
        %v2598 = vunpack.c.l.b16 %v2566
        %v2599 = vunpack.c.l.b16 %v2567
        %v2600 = vunpack.c.l.b16 %v2568
        %v2601 = vunpack.c.l.b16 %v2569
        %v2602 = vunpack.c.l.b16 %v2570
        %v2603 = vunpack.c.l.b16 %v2571
        %v2604 = vunpack.c.l.b16 %v2572
        %v2605 = vpack.c.b16 %v2590, %v2589
        %v2606 = vpack.c.b16 %v2592, %v2591
        %v2607 = vpack.c.b16 %v2594, %v2593
        %v2608 = vpack.c.b16 %v2596, %v2595
        %v2609 = vpack.c.b16 %v2598, %v2597
        %v2610 = vpack.c.b16 %v2600, %v2599
        %v2611 = vpack.c.b16 %v2602, %v2601
        %v2612 = vpack.c.b16 %v2604, %v2603
        %2621 = vmatprep.subr.bf16.mxu0 0
        %2622 = vmatpush1.bf16.msra.mxu0 %v2605
        %2623 = vmatprep.subr.bf16.mxu0 0
        %2624 = vmatpush1.bf16.msra.mxu0 %v2606
        %2625 = vmatprep.subr.bf16.mxu0 0
        %2626 = vmatpush1.bf16.msra.mxu0 %v2607
        %2627 = vmatprep.subr.bf16.mxu0 0
        %2628 = vmatpush1.bf16.msra.mxu0 %v2608
        %2629 = vmatprep.subr.bf16.mxu0 0
        %2630 = vmatpush1.bf16.msra.mxu0 %v2609
        %2631 = vmatprep.subr.bf16.mxu0 0
        %2632 = vmatpush1.bf16.msra.mxu0 %v2610
        %2633 = vmatprep.subr.bf16.mxu0 0
        %2634 = vmatpush1.bf16.msra.mxu0 %v2611
        %2635 = vmatprep.subr.bf16.mxu0 0
        %2636 = vmatpush1.bf16.msra.mxu0 %v2612
        %2637 = vmatprep.subr.bf16.mxu0 0
        %2638 = vmatpush1.bf16.msra.mxu0 0
        %2639 = vmatprep.subr.bf16.mxu0 0
        %2640 = vmatpush1.bf16.msra.mxu0 0
        %2641 = vmatprep.subr.bf16.mxu0 0
        %2642 = vmatpush1.bf16.msra.mxu0 0
        %2643 = vmatprep.subr.bf16.mxu0 0
        %2644 = vmatpush1.bf16.msra.mxu0 0
        %2645 = vmatprep.subr.bf16.mxu0 0
        %2646 = vmatpush1.bf16.msra.mxu0 0
        %2647 = vmatprep.subr.bf16.mxu0 0
        %2648 = vmatpush1.bf16.msra.mxu0 0
        %2649 = vmatprep.subr.bf16.mxu0 0
        %2650 = vmatpush1.bf16.msra.mxu0 0
        %2651 = vmatprep.subr.bf16.mxu0 0
        %2652 = vmatpush1.bf16.msra.mxu0 0
        %2653 = vmatprep.mubr.bf16.mxu0 0
        %2654 = vmatmul.mubr.bf16.gmra.mrb[0].mxu0 %v2433
        %v2655 = vpop.f32.mrb[0].mxu0
        %v2656 = vadd.f32 0.0, %v2655
        %v2657 = vpop.f32.mrb[0].mxu0
        %v2658 = vpop.f32.mrb[0].mxu0
        %v2659 = vadd.f32 0.0, %v2658
        %v2660 = vpop.f32.mrb[0].mxu0
        %2661 = vmatprep.mubr.bf16.mxu0 0
        %2662 = vmatmul.mubr.bf16.gmra.mrb[0].mxu0 %v2434
        %v2663 = vpop.f32.mrb[0].mxu0
        %v2664 = vadd.f32 0.0, %v2663
        %v2665 = vpop.f32.mrb[0].mxu0
        %v2666 = vpop.f32.mrb[0].mxu0
        %v2667 = vadd.f32 0.0, %v2666
        %v2668 = vpop.f32.mrb[0].mxu0
        %2669 = vdwg.mxu0
        %v2670 = vld [vmem:[#allocation10] sm:$0xff]
        %v2671 = vld [vmem:[#allocation10 + $0x8] sm:$0xff]
        %v2672 = vld [vmem:[#allocation10 + $0x10] sm:$0xff]
        %v2673 = vld [vmem:[#allocation10 + $0x18] sm:$0xff]
        %v2674 = vld [vmem:[#allocation10 + $0x20] sm:$0xff]
        %v2675 = vld [vmem:[#allocation10 + $0x28] sm:$0xff]
        %v2676 = vld [vmem:[#allocation10 + $0x30] sm:$0xff]
        %v2677 = vld [vmem:[#allocation10 + $0x38] sm:$0xff]
        %v2678 = vld [vmem:[#allocation10 + $0x40] sm:$0xff]
        %v2679 = vld [vmem:[#allocation10 + $0x48] sm:$0xff]
        %v2680 = vld [vmem:[#allocation10 + $0x50] sm:$0xff]
        %v2681 = vld [vmem:[#allocation10 + $0x58] sm:$0xff]
        %v2682 = vld [vmem:[#allocation10 + $0x60] sm:$0xff]
        %v2683 = vld [vmem:[#allocation10 + $0x68] sm:$0xff]
        %v2684 = vld [vmem:[#allocation10 + $0x70] sm:$0xff]
        %v2685 = vld [vmem:[#allocation10 + $0x78] sm:$0xff]
        %v2702 = vunpack.c.l.b16 %v2670
        %v2703 = vunpack.c.h.b16 %v2670
        %v2704 = vunpack.c.l.b16 %v2671
        %v2705 = vunpack.c.h.b16 %v2671
        %v2706 = vunpack.c.l.b16 %v2672
        %v2707 = vunpack.c.h.b16 %v2672
        %v2708 = vunpack.c.l.b16 %v2673
        %v2709 = vunpack.c.h.b16 %v2673
        %v2710 = vunpack.c.l.b16 %v2674
        %v2711 = vunpack.c.h.b16 %v2674
        %v2712 = vunpack.c.l.b16 %v2675
        %v2713 = vunpack.c.h.b16 %v2675
        %v2714 = vunpack.c.l.b16 %v2676
        %v2715 = vunpack.c.h.b16 %v2676
        %v2716 = vunpack.c.l.b16 %v2677
        %v2717 = vunpack.c.h.b16 %v2677
        %v2718 = vunpack.c.l.b16 %v2678
        %v2719 = vunpack.c.h.b16 %v2678
        %v2720 = vunpack.c.l.b16 %v2679
        %v2721 = vunpack.c.h.b16 %v2679
        %v2722 = vunpack.c.l.b16 %v2680
        %v2723 = vunpack.c.h.b16 %v2680
        %v2724 = vunpack.c.l.b16 %v2681
        %v2725 = vunpack.c.h.b16 %v2681
        %v2726 = vunpack.c.l.b16 %v2682
        %v2727 = vunpack.c.h.b16 %v2682
        %v2728 = vunpack.c.l.b16 %v2683
        %v2729 = vunpack.c.h.b16 %v2683
        %v2730 = vunpack.c.l.b16 %v2684
        %v2731 = vunpack.c.h.b16 %v2684
        %v2732 = vunpack.c.l.b16 %v2685
        %v2733 = vunpack.c.h.b16 %v2685
        %v2734 = vpack.c.b16 %v2704, %v2702
        %v2735 = vpack.c.b16 %v2705, %v2703
        %v2736 = vpack.c.b16 %v2708, %v2706
        %v2737 = vpack.c.b16 %v2709, %v2707
        %v2738 = vpack.c.b16 %v2712, %v2710
        %v2739 = vpack.c.b16 %v2713, %v2711
        %v2740 = vpack.c.b16 %v2716, %v2714
        %v2741 = vpack.c.b16 %v2717, %v2715
        %v2742 = vpack.c.b16 %v2720, %v2718
        %v2743 = vpack.c.b16 %v2721, %v2719
        %v2744 = vpack.c.b16 %v2724, %v2722
        %v2745 = vpack.c.b16 %v2725, %v2723
        %v2746 = vpack.c.b16 %v2728, %v2726
        %v2747 = vpack.c.b16 %v2729, %v2727
        %v2748 = vpack.c.b16 %v2732, %v2730
        %v2749 = vpack.c.b16 %v2733, %v2731
        %2766 = vmatprep.subr.bf16.mxu0 %v2735
        %2767 = vmatpush1.bf16.msra.mxu0 %v2734
        %2768 = vmatprep.subr.bf16.mxu0 %v2737
        %2769 = vmatpush1.bf16.msra.mxu0 %v2736
        %2770 = vmatprep.subr.bf16.mxu0 %v2739
        %2771 = vmatpush1.bf16.msra.mxu0 %v2738
        %2772 = vmatprep.subr.bf16.mxu0 %v2741
        %2773 = vmatpush1.bf16.msra.mxu0 %v2740
        %2774 = vmatprep.subr.bf16.mxu0 %v2743
        %2775 = vmatpush1.bf16.msra.mxu0 %v2742
        %2776 = vmatprep.subr.bf16.mxu0 %v2745
        %2777 = vmatpush1.bf16.msra.mxu0 %v2744
        %2778 = vmatprep.subr.bf16.mxu0 %v2747
        %2779 = vmatpush1.bf16.msra.mxu0 %v2746
        %2780 = vmatprep.subr.bf16.mxu0 %v2749
        %2781 = vmatpush1.bf16.msra.mxu0 %v2748
        %2782 = vmatprep.subr.bf16.mxu0 0
        %2783 = vmatpush1.bf16.msra.mxu0 0
        %2784 = vmatprep.subr.bf16.mxu0 0
        %2785 = vmatpush1.bf16.msra.mxu0 0
        %2786 = vmatprep.subr.bf16.mxu0 0
        %2787 = vmatpush1.bf16.msra.mxu0 0
        %2788 = vmatprep.subr.bf16.mxu0 0
        %2789 = vmatpush1.bf16.msra.mxu0 0
        %2790 = vmatprep.subr.bf16.mxu0 0
        %2791 = vmatpush1.bf16.msra.mxu0 0
        %2792 = vmatprep.subr.bf16.mxu0 0
        %2793 = vmatpush1.bf16.msra.mxu0 0
        %2794 = vmatprep.subr.bf16.mxu0 0
        %2795 = vmatpush1.bf16.msra.mxu0 0
        %2796 = vmatprep.subr.bf16.mxu0 0
        %2797 = vmatpush1.bf16.msra.mxu0 0
        %2798 = vmatprep.mubr.bf16.mxu0 0
        %2799 = vmatmul.mubr.bf16.gmra.mrb[0].mxu0 %v2553
        %v2800 = vpop.f32.mrb[0].mxu0
        %v2801 = vadd.f32 0.0, %v2800
        %v2802 = vpop.f32.mrb[0].mxu0
        %v2803 = vadd.f32 0.0, %v2802
        %v2804 = vpop.f32.mrb[0].mxu0
        %v2805 = vadd.f32 0.0, %v2804
        %v2806 = vpop.f32.mrb[0].mxu0
        %v2807 = vadd.f32 0.0, %v2806
        %2808 = vmatprep.mubr.bf16.mxu0 0
        %2809 = vmatmul.mubr.bf16.gmra.mrb[0].mxu0 %v2554
        %v2810 = vpop.f32.mrb[0].mxu0
        %v2811 = vadd.f32 0.0, %v2810
        %v2812 = vpop.f32.mrb[0].mxu0
        %v2813 = vadd.f32 0.0, %v2812
        %v2814 = vpop.f32.mrb[0].mxu0
        %v2815 = vadd.f32 0.0, %v2814
        %v2816 = vpop.f32.mrb[0].mxu0
        %v2817 = vadd.f32 0.0, %v2816
        %2818 = vmatprep.mubr.bf16.mxu0 0
        %2819 = vmatmul.mubr.bf16.gmra.mrb[0].mxu0 %v2555
        %v2820 = vpop.f32.mrb[0].mxu0
        %v2821 = vadd.f32 0.0, %v2820
        %v2822 = vpop.f32.mrb[0].mxu0
        %v2823 = vadd.f32 0.0, %v2822
        %v2824 = vpop.f32.mrb[0].mxu0
        %v2825 = vadd.f32 0.0, %v2824
        %v2826 = vpop.f32.mrb[0].mxu0
        %v2827 = vadd.f32 0.0, %v2826
        %2828 = vmatprep.mubr.bf16.mxu0 0
        %2829 = vmatmul.mubr.bf16.gmra.mrb[0].mxu0 %v2556
        %v2830 = vpop.f32.mrb[0].mxu0
        %v2831 = vadd.f32 0.0, %v2830
        %v2832 = vpop.f32.mrb[0].mxu0
        %v2833 = vadd.f32 0.0, %v2832
        %v2834 = vpop.f32.mrb[0].mxu0
        %v2835 = vadd.f32 0.0, %v2834
        %v2836 = vpop.f32.mrb[0].mxu0
        %v2837 = vadd.f32 0.0, %v2836
        %2838 = vdwg.mxu0
        %v2839 = vpack.c.bf16 %v2659, %v2656
        %v2840 = vpack.c.bf16 %v2667, %v2664
        %v2841 = vpack.c.bf16 %v2805, %v2801
        %v2842 = vpack.c.bf16 %v2807, %v2803
        %v2843 = vpack.c.bf16 %v2815, %v2811
        %v2844 = vpack.c.bf16 %v2817, %v2813
        %v2845 = vpack.c.bf16 %v2825, %v2821
        %v2846 = vpack.c.bf16 %v2827, %v2823
        %v2847 = vpack.c.bf16 %v2835, %v2831
        %v2848 = vpack.c.bf16 %v2837, %v2833
        %v2849 = vld [vmem:[#allocation11] sm:$0xf]
        %v2850 = vld [vmem:[#allocation11 + $0x4] sm:$0xf]
        %v2851 = vld [vmem:[#allocation11 + $0x8] sm:$0xf]
        %v2852 = vld [vmem:[#allocation11 + $0xc] sm:$0xf]
        %v2853 = vld [vmem:[#allocation11 + $0x10] sm:$0xf]
        %v2854 = vld [vmem:[#allocation11 + $0x14] sm:$0xf]
        %v2855 = vld [vmem:[#allocation11 + $0x18] sm:$0xf]
        %v2856 = vld [vmem:[#allocation11 + $0x1c] sm:$0xf]
        %v2857 = vld [vmem:[#allocation11 + $0x20] sm:$0xf]
        %v2858 = vld [vmem:[#allocation11 + $0x24] sm:$0xf]
        %v2859 = vld [vmem:[#allocation11 + $0x28] sm:$0xf]
        %v2860 = vld [vmem:[#allocation11 + $0x2c] sm:$0xf]
        %v2861 = vld [vmem:[#allocation11 + $0x30] sm:$0xf]
        %v2862 = vld [vmem:[#allocation11 + $0x34] sm:$0xf]
        %v2863 = vld [vmem:[#allocation11 + $0x38] sm:$0xf]
        %v2864 = vld [vmem:[#allocation11 + $0x3c] sm:$0xf]
        %v2866 = vsel %vm1117, %v2839, 0
        %v2869 = vsel %vm1117, %v2841, 0
        %v2872 = vsel %vm1117, %v2843, 0
        %2874 = vmatprep.subr.bf16.mxu0 0
        %2875 = vmatpush1.bf16.xpose.msra.mxu0 %v2869
        %2876 = vmatprep.subr.bf16.mxu0 0
        %2877 = vmatpush1.bf16.xpose.msra.mxu0 %v2872
        %2878 = vmatprep.subr.bf16.mxu0 0
        %2879 = vmatpush1.bf16.xpose.msra.mxu0 0
        %2880 = vmatprep.subr.bf16.mxu0 0
        %2881 = vmatpush1.bf16.xpose.msra.mxu0 0
        %2882 = vmatprep.subr.bf16.mxu0 0
        %2883 = vmatpush1.bf16.xpose.msra.mxu0 0
        %2884 = vmatprep.subr.bf16.mxu0 0
        %2885 = vmatpush1.bf16.xpose.msra.mxu0 0
        %2886 = vmatprep.subr.bf16.mxu0 0
        %2887 = vmatpush1.bf16.xpose.msra.mxu0 0
        %2888 = vmatprep.subr.bf16.mxu0 0
        %2889 = vmatpush1.bf16.xpose.msra.mxu0 0
        %2890 = vmatprep.subr.bf16.mxu0 0
        %2891 = vmatpush1.bf16.xpose.msra.mxu0 0
        %2892 = vmatprep.subr.bf16.mxu0 0
        %2893 = vmatpush1.bf16.xpose.msra.mxu0 0
        %2894 = vmatprep.subr.bf16.mxu0 0
        %2895 = vmatpush1.bf16.xpose.msra.mxu0 0
        %2896 = vmatprep.subr.bf16.mxu0 0
        %2897 = vmatpush1.bf16.xpose.msra.mxu0 0
        %2898 = vmatprep.subr.bf16.mxu0 0
        %2899 = vmatpush1.bf16.xpose.msra.mxu0 0
        %2900 = vmatprep.subr.bf16.mxu0 0
        %2901 = vmatpush1.bf16.xpose.msra.mxu0 0
        %2902 = vmatprep.subr.bf16.mxu0 0
        %2903 = vmatpush1.bf16.xpose.msra.mxu0 0
        %2904 = vmatprep.subr.bf16.mxu0 0
        %2905 = vmatpush1.bf16.xpose.msra.mxu0 0
        %2906 = vmatprep.mubr.bf16.mxu0 0
        %2907 = vmatmul.mubr.bf16.gmra.mrb[0].mxu0 %v2866
        %v2908 = vpop.f32.mrb[0].mxu0
        %v2909 = vadd.f32 0.0, %v2908
        %v2910 = vpop.f32.mrb[0].mxu0
        %v2911 = vpop.f32.mrb[0].mxu0
        %v2912 = vadd.f32 0.0, %v2911
        %v2913 = vpop.f32.mrb[0].mxu0
        %2914 = vdwg.mxu0
        %v2916 = vsel %vm1117, %v2840, 0
        %v2919 = vsel %vm1117, %v2845, 0
        %v2922 = vsel %vm1117, %v2847, 0
        %2924 = vmatprep.subr.bf16.mxu0 0
        %2925 = vmatpush1.bf16.xpose.msra.mxu0 %v2919
        %2926 = vmatprep.subr.bf16.mxu0 0
        %2927 = vmatpush1.bf16.xpose.msra.mxu0 %v2922
        %2928 = vmatprep.subr.bf16.mxu0 0
        %2929 = vmatpush1.bf16.xpose.msra.mxu0 0
        %2930 = vmatprep.subr.bf16.mxu0 0
        %2931 = vmatpush1.bf16.xpose.msra.mxu0 0
        %2932 = vmatprep.subr.bf16.mxu0 0
        %2933 = vmatpush1.bf16.xpose.msra.mxu0 0
        %2934 = vmatprep.subr.bf16.mxu0 0
        %2935 = vmatpush1.bf16.xpose.msra.mxu0 0
        %2936 = vmatprep.subr.bf16.mxu0 0
        %2937 = vmatpush1.bf16.xpose.msra.mxu0 0
        %2938 = vmatprep.subr.bf16.mxu0 0
        %2939 = vmatpush1.bf16.xpose.msra.mxu0 0
        %2940 = vmatprep.subr.bf16.mxu0 0
        %2941 = vmatpush1.bf16.xpose.msra.mxu0 0
        %2942 = vmatprep.subr.bf16.mxu0 0
        %2943 = vmatpush1.bf16.xpose.msra.mxu0 0
        %2944 = vmatprep.subr.bf16.mxu0 0
        %2945 = vmatpush1.bf16.xpose.msra.mxu0 0
        %2946 = vmatprep.subr.bf16.mxu0 0
        %2947 = vmatpush1.bf16.xpose.msra.mxu0 0
        %2948 = vmatprep.subr.bf16.mxu0 0
        %2949 = vmatpush1.bf16.xpose.msra.mxu0 0
        %2950 = vmatprep.subr.bf16.mxu0 0
        %2951 = vmatpush1.bf16.xpose.msra.mxu0 0
        %2952 = vmatprep.subr.bf16.mxu0 0
        %2953 = vmatpush1.bf16.xpose.msra.mxu0 0
        %2954 = vmatprep.subr.bf16.mxu0 0
        %2955 = vmatpush1.bf16.xpose.msra.mxu0 0
        %2956 = vmatprep.mubr.bf16.mxu0 0
        %2957 = vmatmul.mubr.bf16.gmra.mrb[0].mxu0 %v2916
        %v2958 = vpop.f32.mrb[0].mxu0
        %v2959 = vadd.f32 0.0, %v2958
        %v2960 = vpop.f32.mrb[0].mxu0
        %v2961 = vpop.f32.mrb[0].mxu0
        %v2962 = vadd.f32 0.0, %v2961
        %v2963 = vpop.f32.mrb[0].mxu0
        %2964 = vdwg.mxu0
        %v2965 = vsel %vm1117, %v2909, -inf
        %2966 = vmax.xlane.f32.xlu0 %v2965
        %v2967 = vpop.xlane.xlu0 %2966
        %v2968 = vsel %vm1117, %v2912, -inf
        %2969 = vmax.xlane.f32.xlu0 %v2968
        %v2970 = vpop.xlane.xlu0 %2969
        %v2971 = vsel %vm1117, %v2959, -inf
        %2972 = vmax.xlane.f32.xlu0 %v2971
        %v2973 = vpop.xlane.xlu0 %2972
        %v2974 = vsel %vm1117, %v2962, -inf
        %2975 = vmax.xlane.f32.xlu0 %v2974
        %v2976 = vpop.xlane.xlu0 %2975
        %v2977 = vsub.f32 %v2909, %v2967
        %v2978 = vsub.f32 %v2912, %v2970
        %v2979 = vsub.f32 %v2959, %v2973
        %v2980 = vsub.f32 %v2962, %v2976
        %v2981 = vmul.f32 %v2977, 1.442695
        %v2982 = vpow.pop %v2981
        %v2983 = vmul.f32 %v2978, 1.442695
        %v2984 = vpow.pop %v2983
        %v2985 = vmul.f32 %v2979, 1.442695
        %v2986 = vpow.pop %v2985
        %v2987 = vmul.f32 %v2980, 1.442695
        %v2988 = vpow.pop %v2987
        %v2989 = vsel %vm1117, %v2982, 0.0
        %2990 = vadd.xlane.f32.xlu0 %v2989
        %v2991 = vpop.xlane.xlu0 %2990
        %v2992 = vsel %vm1117, %v2984, 0.0
        %2993 = vadd.xlane.f32.xlu0 %v2992
        %v2994 = vpop.xlane.xlu0 %2993
        %v2995 = vsel %vm1117, %v2986, 0.0
        %2996 = vadd.xlane.f32.xlu0 %v2995
        %v2997 = vpop.xlane.xlu0 %2996
        %v2998 = vsel %vm1117, %v2988, 0.0
        %2999 = vadd.xlane.f32.xlu0 %v2998
        %v3000 = vpop.xlane.xlu0 %2999
        %v3001 = vrcp.pop %v2991
        %v3002 = vrcp.pop %v2994
        %v3003 = vrcp.pop %v2997
        %v3004 = vrcp.pop %v3000
        %v3005 = vmul.f32 %v2982, %v3001
        %v3006 = vmul.f32 %v2984, %v3002
        %v3007 = vmul.f32 %v2986, %v3003
        %v3008 = vmul.f32 %v2988, %v3004
        %v3009 = vpack.c.bf16 %v3006, %v3005
        %v3010 = vpack.c.bf16 %v3008, %v3007
        %v3012 = vsel %vm1117, %v3009, 0
        %3014 = vmatprep.subr.bf16.mxu0 0
        %3015 = vmatpush1.bf16.msra.mxu0 %v2842
        %3016 = vmatprep.subr.bf16.mxu0 0
        %3017 = vmatpush1.bf16.msra.mxu0 %v2844
        %3018 = vmatprep.subr.bf16.mxu0 0
        %3019 = vmatpush1.bf16.msra.mxu0 0
        %3020 = vmatprep.subr.bf16.mxu0 0
        %3021 = vmatpush1.bf16.msra.mxu0 0
        %3022 = vmatprep.subr.bf16.mxu0 0
        %3023 = vmatpush1.bf16.msra.mxu0 0
        %3024 = vmatprep.subr.bf16.mxu0 0
        %3025 = vmatpush1.bf16.msra.mxu0 0
        %3026 = vmatprep.subr.bf16.mxu0 0
        %3027 = vmatpush1.bf16.msra.mxu0 0
        %3028 = vmatprep.subr.bf16.mxu0 0
        %3029 = vmatpush1.bf16.msra.mxu0 0
        %3030 = vmatprep.subr.bf16.mxu0 0
        %3031 = vmatpush1.bf16.msra.mxu0 0
        %3032 = vmatprep.subr.bf16.mxu0 0
        %3033 = vmatpush1.bf16.msra.mxu0 0
        %3034 = vmatprep.subr.bf16.mxu0 0
        %3035 = vmatpush1.bf16.msra.mxu0 0
        %3036 = vmatprep.subr.bf16.mxu0 0
        %3037 = vmatpush1.bf16.msra.mxu0 0
        %3038 = vmatprep.subr.bf16.mxu0 0
        %3039 = vmatpush1.bf16.msra.mxu0 0
        %3040 = vmatprep.subr.bf16.mxu0 0
        %3041 = vmatpush1.bf16.msra.mxu0 0
        %3042 = vmatprep.subr.bf16.mxu0 0
        %3043 = vmatpush1.bf16.msra.mxu0 0
        %3044 = vmatprep.subr.bf16.mxu0 0
        %3045 = vmatpush1.bf16.msra.mxu0 0
        %3046 = vmatprep.mubr.bf16.mxu0 0
        %3047 = vmatmul.mubr.bf16.gmra.mrb[0].mxu0 %v3012
        %v3048 = vpop.f32.mrb[0].mxu0
        %v3049 = vadd.f32 0.0, %v3048
        %v3050 = vpop.f32.mrb[0].mxu0
        %v3051 = vpop.f32.mrb[0].mxu0
        %v3052 = vadd.f32 0.0, %v3051
        %v3053 = vpop.f32.mrb[0].mxu0
        %3054 = vdwg.mxu0
        %v3056 = vsel %vm1117, %v3010, 0
        %3058 = vmatprep.subr.bf16.mxu0 0
        %3059 = vmatpush1.bf16.msra.mxu0 %v2846
        %3060 = vmatprep.subr.bf16.mxu0 0
        %3061 = vmatpush1.bf16.msra.mxu0 %v2848
        %3062 = vmatprep.subr.bf16.mxu0 0
        %3063 = vmatpush1.bf16.msra.mxu0 0
        %3064 = vmatprep.subr.bf16.mxu0 0
        %3065 = vmatpush1.bf16.msra.mxu0 0
        %3066 = vmatprep.subr.bf16.mxu0 0
        %3067 = vmatpush1.bf16.msra.mxu0 0
        %3068 = vmatprep.subr.bf16.mxu0 0
        %3069 = vmatpush1.bf16.msra.mxu0 0
        %3070 = vmatprep.subr.bf16.mxu0 0
        %3071 = vmatpush1.bf16.msra.mxu0 0
        %3072 = vmatprep.subr.bf16.mxu0 0
        %3073 = vmatpush1.bf16.msra.mxu0 0
        %3074 = vmatprep.subr.bf16.mxu0 0
        %3075 = vmatpush1.bf16.msra.mxu0 0
        %3076 = vmatprep.subr.bf16.mxu0 0
        %3077 = vmatpush1.bf16.msra.mxu0 0
        %3078 = vmatprep.subr.bf16.mxu0 0
        %3079 = vmatpush1.bf16.msra.mxu0 0
        %3080 = vmatprep.subr.bf16.mxu0 0
        %3081 = vmatpush1.bf16.msra.mxu0 0
        %3082 = vmatprep.subr.bf16.mxu0 0
        %3083 = vmatpush1.bf16.msra.mxu0 0
        %3084 = vmatprep.subr.bf16.mxu0 0
        %3085 = vmatpush1.bf16.msra.mxu0 0
        %3086 = vmatprep.subr.bf16.mxu0 0
        %3087 = vmatpush1.bf16.msra.mxu0 0
        %3088 = vmatprep.subr.bf16.mxu0 0
        %3089 = vmatpush1.bf16.msra.mxu0 0
        %3090 = vmatprep.mubr.bf16.mxu0 0
        %3091 = vmatmul.mubr.bf16.gmra.mrb[0].mxu0 %v3056
        %v3092 = vpop.f32.mrb[0].mxu0
        %v3093 = vadd.f32 0.0, %v3092
        %v3094 = vpop.f32.mrb[0].mxu0
        %v3095 = vpop.f32.mrb[0].mxu0
        %v3096 = vadd.f32 0.0, %v3095
        %v3097 = vpop.f32.mrb[0].mxu0
        %3098 = vdwg.mxu0
        %v3099 = vpack.c.bf16 %v3052, %v3049
        %v3100 = vpack.c.bf16 %v3096, %v3093
        %3102 = vrot.lane.b32.xlu0 %v2839, 96
        %v3103 = vpop.permute.xlu0 %3102
        %3106 = vrot.lane.b32.xlu0 %v2841, 96
        %v3107 = vpop.permute.xlu0 %3106
        %3108 = vrot.lane.b32.xlu0 %v2843, 96
        %v3109 = vpop.permute.xlu0 %3108
        %v3111 = vsel %vm1117, %v3103, 0
        %v3114 = vsel %vm1117, %v3107, 0
        %v3117 = vsel %vm1117, %v3109, 0
        %3119 = vmatprep.subr.bf16.mxu0 0
        %3120 = vmatpush1.bf16.xpose.msra.mxu0 %v3114
        %3121 = vmatprep.subr.bf16.mxu0 0
        %3122 = vmatpush1.bf16.xpose.msra.mxu0 %v3117
        %3123 = vmatprep.subr.bf16.mxu0 0
        %3124 = vmatpush1.bf16.xpose.msra.mxu0 0
        %3125 = vmatprep.subr.bf16.mxu0 0
        %3126 = vmatpush1.bf16.xpose.msra.mxu0 0
        %3127 = vmatprep.subr.bf16.mxu0 0
        %3128 = vmatpush1.bf16.xpose.msra.mxu0 0
        %3129 = vmatprep.subr.bf16.mxu0 0
        %3130 = vmatpush1.bf16.xpose.msra.mxu0 0
        %3131 = vmatprep.subr.bf16.mxu0 0
        %3132 = vmatpush1.bf16.xpose.msra.mxu0 0
        %3133 = vmatprep.subr.bf16.mxu0 0
        %3134 = vmatpush1.bf16.xpose.msra.mxu0 0
        %3135 = vmatprep.subr.bf16.mxu0 0
        %3136 = vmatpush1.bf16.xpose.msra.mxu0 0
        %3137 = vmatprep.subr.bf16.mxu0 0
        %3138 = vmatpush1.bf16.xpose.msra.mxu0 0
        %3139 = vmatprep.subr.bf16.mxu0 0
        %3140 = vmatpush1.bf16.xpose.msra.mxu0 0
        %3141 = vmatprep.subr.bf16.mxu0 0
        %3142 = vmatpush1.bf16.xpose.msra.mxu0 0
        %3143 = vmatprep.subr.bf16.mxu0 0
        %3144 = vmatpush1.bf16.xpose.msra.mxu0 0
        %3145 = vmatprep.subr.bf16.mxu0 0
        %3146 = vmatpush1.bf16.xpose.msra.mxu0 0
        %3147 = vmatprep.subr.bf16.mxu0 0
        %3148 = vmatpush1.bf16.xpose.msra.mxu0 0
        %3149 = vmatprep.subr.bf16.mxu0 0
        %3150 = vmatpush1.bf16.xpose.msra.mxu0 0
        %3151 = vmatprep.mubr.bf16.mxu0 0
        %3152 = vmatmul.mubr.bf16.gmra.mrb[0].mxu0 %v3111
        %v3153 = vpop.f32.mrb[0].mxu0
        %v3154 = vadd.f32 0.0, %v3153
        %v3155 = vpop.f32.mrb[0].mxu0
        %v3156 = vpop.f32.mrb[0].mxu0
        %v3157 = vadd.f32 0.0, %v3156
        %v3158 = vpop.f32.mrb[0].mxu0
        %3159 = vdwg.mxu0
        %3161 = vrot.lane.b32.xlu0 %v2840, 96
        %v3162 = vpop.permute.xlu0 %3161
        %3165 = vrot.lane.b32.xlu0 %v2845, 96
        %v3166 = vpop.permute.xlu0 %3165
        %3167 = vrot.lane.b32.xlu0 %v2847, 96
        %v3168 = vpop.permute.xlu0 %3167
        %v3170 = vsel %vm1117, %v3162, 0
        %v3173 = vsel %vm1117, %v3166, 0
        %v3176 = vsel %vm1117, %v3168, 0
        %3178 = vmatprep.subr.bf16.mxu0 0
        %3179 = vmatpush1.bf16.xpose.msra.mxu0 %v3173
        %3180 = vmatprep.subr.bf16.mxu0 0
        %3181 = vmatpush1.bf16.xpose.msra.mxu0 %v3176
        %3182 = vmatprep.subr.bf16.mxu0 0
        %3183 = vmatpush1.bf16.xpose.msra.mxu0 0
        %3184 = vmatprep.subr.bf16.mxu0 0
        %3185 = vmatpush1.bf16.xpose.msra.mxu0 0
        %3186 = vmatprep.subr.bf16.mxu0 0
        %3187 = vmatpush1.bf16.xpose.msra.mxu0 0
        %3188 = vmatprep.subr.bf16.mxu0 0
        %3189 = vmatpush1.bf16.xpose.msra.mxu0 0
        %3190 = vmatprep.subr.bf16.mxu0 0
        %3191 = vmatpush1.bf16.xpose.msra.mxu0 0
        %3192 = vmatprep.subr.bf16.mxu0 0
        %3193 = vmatpush1.bf16.xpose.msra.mxu0 0
        %3194 = vmatprep.subr.bf16.mxu0 0
        %3195 = vmatpush1.bf16.xpose.msra.mxu0 0
        %3196 = vmatprep.subr.bf16.mxu0 0
        %3197 = vmatpush1.bf16.xpose.msra.mxu0 0
        %3198 = vmatprep.subr.bf16.mxu0 0
        %3199 = vmatpush1.bf16.xpose.msra.mxu0 0
        %3200 = vmatprep.subr.bf16.mxu0 0
        %3201 = vmatpush1.bf16.xpose.msra.mxu0 0
        %3202 = vmatprep.subr.bf16.mxu0 0
        %3203 = vmatpush1.bf16.xpose.msra.mxu0 0
        %3204 = vmatprep.subr.bf16.mxu0 0
        %3205 = vmatpush1.bf16.xpose.msra.mxu0 0
        %3206 = vmatprep.subr.bf16.mxu0 0
        %3207 = vmatpush1.bf16.xpose.msra.mxu0 0
        %3208 = vmatprep.subr.bf16.mxu0 0
        %3209 = vmatpush1.bf16.xpose.msra.mxu0 0
        %3210 = vmatprep.mubr.bf16.mxu0 0
        %3211 = vmatmul.mubr.bf16.gmra.mrb[0].mxu0 %v3170
        %v3212 = vpop.f32.mrb[0].mxu0
        %v3213 = vadd.f32 0.0, %v3212
        %v3214 = vpop.f32.mrb[0].mxu0
        %v3215 = vpop.f32.mrb[0].mxu0
        %v3216 = vadd.f32 0.0, %v3215
        %v3217 = vpop.f32.mrb[0].mxu0
        %3218 = vdwg.mxu0
        %v3219 = vsel %vm1117, %v3154, -inf
        %3220 = vmax.xlane.f32.xlu0 %v3219
        %v3221 = vpop.xlane.xlu0 %3220
        %v3222 = vsel %vm1117, %v3157, -inf
        %3223 = vmax.xlane.f32.xlu0 %v3222
        %v3224 = vpop.xlane.xlu0 %3223
        %v3225 = vsel %vm1117, %v3213, -inf
        %3226 = vmax.xlane.f32.xlu0 %v3225
        %v3227 = vpop.xlane.xlu0 %3226
        %v3228 = vsel %vm1117, %v3216, -inf
        %3229 = vmax.xlane.f32.xlu0 %v3228
        %v3230 = vpop.xlane.xlu0 %3229
        %v3231 = vsub.f32 %v3154, %v3221
        %v3232 = vsub.f32 %v3157, %v3224
        %v3233 = vsub.f32 %v3213, %v3227
        %v3234 = vsub.f32 %v3216, %v3230
        %v3235 = vmul.f32 %v3231, 1.442695
        %v3236 = vpow.pop %v3235
        %v3237 = vmul.f32 %v3232, 1.442695
        %v3238 = vpow.pop %v3237
        %v3239 = vmul.f32 %v3233, 1.442695
        %v3240 = vpow.pop %v3239
        %v3241 = vmul.f32 %v3234, 1.442695
        %v3242 = vpow.pop %v3241
        %v3243 = vsel %vm1117, %v3236, 0.0
        %3244 = vadd.xlane.f32.xlu0 %v3243
        %v3245 = vpop.xlane.xlu0 %3244
        %v3246 = vsel %vm1117, %v3238, 0.0
        %3247 = vadd.xlane.f32.xlu0 %v3246
        %v3248 = vpop.xlane.xlu0 %3247
        %v3249 = vsel %vm1117, %v3240, 0.0
        %3250 = vadd.xlane.f32.xlu0 %v3249
        %v3251 = vpop.xlane.xlu0 %3250
        %v3252 = vsel %vm1117, %v3242, 0.0
        %3253 = vadd.xlane.f32.xlu0 %v3252
        %v3254 = vpop.xlane.xlu0 %3253
        %v3255 = vrcp.pop %v3245
        %v3256 = vrcp.pop %v3248
        %v3257 = vrcp.pop %v3251
        %v3258 = vrcp.pop %v3254
        %v3259 = vmul.f32 %v3236, %v3255
        %v3260 = vmul.f32 %v3238, %v3256
        %v3261 = vmul.f32 %v3240, %v3257
        %v3262 = vmul.f32 %v3242, %v3258
        %v3263 = vpack.c.bf16 %v3260, %v3259
        %v3264 = vpack.c.bf16 %v3262, %v3261
        %3267 = vrot.lane.b32.xlu0 %v2842, 96
        %v3268 = vpop.permute.xlu0 %3267
        %3269 = vrot.lane.b32.xlu0 %v2844, 96
        %v3270 = vpop.permute.xlu0 %3269
        %v3274 = vsel %vm1117, %v3263, 0
        %3276 = vmatprep.subr.bf16.mxu0 0
        %3277 = vmatpush1.bf16.msra.mxu0 %v3268
        %3278 = vmatprep.subr.bf16.mxu0 0
        %3279 = vmatpush1.bf16.msra.mxu0 %v3270
        %3280 = vmatprep.subr.bf16.mxu0 0
        %3281 = vmatpush1.bf16.msra.mxu0 0
        %3282 = vmatprep.subr.bf16.mxu0 0
        %3283 = vmatpush1.bf16.msra.mxu0 0
        %3284 = vmatprep.subr.bf16.mxu0 0
        %3285 = vmatpush1.bf16.msra.mxu0 0
        %3286 = vmatprep.subr.bf16.mxu0 0
        %3287 = vmatpush1.bf16.msra.mxu0 0
        %3288 = vmatprep.subr.bf16.mxu0 0
        %3289 = vmatpush1.bf16.msra.mxu0 0
        %3290 = vmatprep.subr.bf16.mxu0 0
        %3291 = vmatpush1.bf16.msra.mxu0 0
        %3292 = vmatprep.subr.bf16.mxu0 0
        %3293 = vmatpush1.bf16.msra.mxu0 0
        %3294 = vmatprep.subr.bf16.mxu0 0
        %3295 = vmatpush1.bf16.msra.mxu0 0
        %3296 = vmatprep.subr.bf16.mxu0 0
        %3297 = vmatpush1.bf16.msra.mxu0 0
        %3298 = vmatprep.subr.bf16.mxu0 0
        %3299 = vmatpush1.bf16.msra.mxu0 0
        %3300 = vmatprep.subr.bf16.mxu0 0
        %3301 = vmatpush1.bf16.msra.mxu0 0
        %3302 = vmatprep.subr.bf16.mxu0 0
        %3303 = vmatpush1.bf16.msra.mxu0 0
        %3304 = vmatprep.subr.bf16.mxu0 0
        %3305 = vmatpush1.bf16.msra.mxu0 0
        %3306 = vmatprep.subr.bf16.mxu0 0
        %3307 = vmatpush1.bf16.msra.mxu0 0
        %3308 = vmatprep.mubr.bf16.mxu0 0
        %3309 = vmatmul.mubr.bf16.gmra.mrb[0].mxu0 %v3274
        %v3310 = vpop.f32.mrb[0].mxu0
        %v3311 = vadd.f32 0.0, %v3310
        %v3312 = vpop.f32.mrb[0].mxu0
        %v3313 = vpop.f32.mrb[0].mxu0
        %v3314 = vadd.f32 0.0, %v3313
        %v3315 = vpop.f32.mrb[0].mxu0
        %3316 = vdwg.mxu0
        %3319 = vrot.lane.b32.xlu0 %v2846, 96
        %v3320 = vpop.permute.xlu0 %3319
        %3321 = vrot.lane.b32.xlu0 %v2848, 96
        %v3322 = vpop.permute.xlu0 %3321
        %v3326 = vsel %vm1117, %v3264, 0
        %3328 = vmatprep.subr.bf16.mxu0 0
        %3329 = vmatpush1.bf16.msra.mxu0 %v3320
        %3330 = vmatprep.subr.bf16.mxu0 0
        %3331 = vmatpush1.bf16.msra.mxu0 %v3322
        %3332 = vmatprep.subr.bf16.mxu0 0
        %3333 = vmatpush1.bf16.msra.mxu0 0
        %3334 = vmatprep.subr.bf16.mxu0 0
        %3335 = vmatpush1.bf16.msra.mxu0 0
        %3336 = vmatprep.subr.bf16.mxu0 0
        %3337 = vmatpush1.bf16.msra.mxu0 0
        %3338 = vmatprep.subr.bf16.mxu0 0
        %3339 = vmatpush1.bf16.msra.mxu0 0
        %3340 = vmatprep.subr.bf16.mxu0 0
        %3341 = vmatpush1.bf16.msra.mxu0 0
        %3342 = vmatprep.subr.bf16.mxu0 0
        %3343 = vmatpush1.bf16.msra.mxu0 0
        %3344 = vmatprep.subr.bf16.mxu0 0
        %3345 = vmatpush1.bf16.msra.mxu0 0
        %3346 = vmatprep.subr.bf16.mxu0 0
        %3347 = vmatpush1.bf16.msra.mxu0 0
        %3348 = vmatprep.subr.bf16.mxu0 0
        %3349 = vmatpush1.bf16.msra.mxu0 0
        %3350 = vmatprep.subr.bf16.mxu0 0
        %3351 = vmatpush1.bf16.msra.mxu0 0
        %3352 = vmatprep.subr.bf16.mxu0 0
        %3353 = vmatpush1.bf16.msra.mxu0 0
        %3354 = vmatprep.subr.bf16.mxu0 0
        %3355 = vmatpush1.bf16.msra.mxu0 0
        %3356 = vmatprep.subr.bf16.mxu0 0
        %3357 = vmatpush1.bf16.msra.mxu0 0
        %3358 = vmatprep.subr.bf16.mxu0 0
        %3359 = vmatpush1.bf16.msra.mxu0 0
        %3360 = vmatprep.mubr.bf16.mxu0 0
        %3361 = vmatmul.mubr.bf16.gmra.mrb[0].mxu0 %v3326
        %v3362 = vpop.f32.mrb[0].mxu0
        %v3363 = vadd.f32 0.0, %v3362
        %v3364 = vpop.f32.mrb[0].mxu0
        %v3365 = vpop.f32.mrb[0].mxu0
        %v3366 = vadd.f32 0.0, %v3365
        %v3367 = vpop.f32.mrb[0].mxu0
        %3368 = vdwg.mxu0
        %v3369 = vpack.c.bf16 %v3314, %v3311
        %v3370 = vpack.c.bf16 %v3366, %v3363
        %v3375 = vunpack.c.l.b16 %v2853
        %v3376 = vunpack.c.l.b16 %v2854
        %v3377 = vunpack.c.l.b16 %v2855
        %v3378 = vunpack.c.l.b16 %v2856
        %v3379 = vpack.c.b16 %v3376, %v3375
        %v3380 = vpack.c.b16 %v3378, %v3377
        %v3384 = vsel %vm1117, %v3369, 0
        %v3387 = vsel %vm1117, %v3370, 0
        %3389 = vmatprep.subr.bf16.mxu0 0
        %3390 = vmatpush1.bf16.msra.mxu0 %v3379
        %3391 = vmatprep.subr.bf16.mxu0 0
        %3392 = vmatpush1.bf16.msra.mxu0 %v3380
        %3393 = vmatprep.subr.bf16.mxu0 0
        %3394 = vmatpush1.bf16.msra.mxu0 0
        %3395 = vmatprep.subr.bf16.mxu0 0
        %3396 = vmatpush1.bf16.msra.mxu0 0
        %3397 = vmatprep.subr.bf16.mxu0 0
        %3398 = vmatpush1.bf16.msra.mxu0 0
        %3399 = vmatprep.subr.bf16.mxu0 0
        %3400 = vmatpush1.bf16.msra.mxu0 0
        %3401 = vmatprep.subr.bf16.mxu0 0
        %3402 = vmatpush1.bf16.msra.mxu0 0
        %3403 = vmatprep.subr.bf16.mxu0 0
        %3404 = vmatpush1.bf16.msra.mxu0 0
        %3405 = vmatprep.subr.bf16.mxu0 0
        %3406 = vmatpush1.bf16.msra.mxu0 0
        %3407 = vmatprep.subr.bf16.mxu0 0
        %3408 = vmatpush1.bf16.msra.mxu0 0
        %3409 = vmatprep.subr.bf16.mxu0 0
        %3410 = vmatpush1.bf16.msra.mxu0 0
        %3411 = vmatprep.subr.bf16.mxu0 0
        %3412 = vmatpush1.bf16.msra.mxu0 0
        %3413 = vmatprep.subr.bf16.mxu0 0
        %3414 = vmatpush1.bf16.msra.mxu0 0
        %3415 = vmatprep.subr.bf16.mxu0 0
        %3416 = vmatpush1.bf16.msra.mxu0 0
        %3417 = vmatprep.subr.bf16.mxu0 0
        %3418 = vmatpush1.bf16.msra.mxu0 0
        %3419 = vmatprep.subr.bf16.mxu0 0
        %3420 = vmatpush1.bf16.msra.mxu0 0
        %3421 = vmatprep.mubr.bf16.mxu0 0
        %3422 = vmatmul.mubr.bf16.gmra.mrb[0].mxu0 %v3384
        %v3423 = vpop.f32.mrb[0].mxu0
        %v3424 = vadd.f32 0.0, %v3423
        %v3425 = vpop.f32.mrb[0].mxu0
        %v3426 = vpop.f32.mrb[0].mxu0
        %v3427 = vadd.f32 0.0, %v3426
        %v3428 = vpop.f32.mrb[0].mxu0
        %3429 = vmatprep.mubr.bf16.mxu0 0
        %3430 = vmatmul.mubr.bf16.gmra.mrb[0].mxu0 %v3387
        %v3431 = vpop.f32.mrb[0].mxu0
        %v3432 = vadd.f32 0.0, %v3431
        %v3433 = vpop.f32.mrb[0].mxu0
        %v3434 = vpop.f32.mrb[0].mxu0
        %v3435 = vadd.f32 0.0, %v3434
        %v3436 = vpop.f32.mrb[0].mxu0
        %3437 = vdwg.mxu0
        %v3442 = vunpack.c.l.b16 %v2849
        %v3443 = vunpack.c.l.b16 %v2850
        %v3444 = vunpack.c.l.b16 %v2851
        %v3445 = vunpack.c.l.b16 %v2852
        %v3446 = vpack.c.b16 %v3443, %v3442
        %v3447 = vpack.c.b16 %v3445, %v3444
        %v3451 = vsel %vm1117, %v3099, 0
        %v3454 = vsel %vm1117, %v3100, 0
        %3456 = vmatprep.subr.bf16.mxu0 0
        %3457 = vmatpush1.bf16.msra.mxu0 %v3446
        %3458 = vmatprep.subr.bf16.mxu0 0
        %3459 = vmatpush1.bf16.msra.mxu0 %v3447
        %3460 = vmatprep.subr.bf16.mxu0 0
        %3461 = vmatpush1.bf16.msra.mxu0 0
        %3462 = vmatprep.subr.bf16.mxu0 0
        %3463 = vmatpush1.bf16.msra.mxu0 0
        %3464 = vmatprep.subr.bf16.mxu0 0
        %3465 = vmatpush1.bf16.msra.mxu0 0
        %3466 = vmatprep.subr.bf16.mxu0 0
        %3467 = vmatpush1.bf16.msra.mxu0 0
        %3468 = vmatprep.subr.bf16.mxu0 0
        %3469 = vmatpush1.bf16.msra.mxu0 0
        %3470 = vmatprep.subr.bf16.mxu0 0
        %3471 = vmatpush1.bf16.msra.mxu0 0
        %3472 = vmatprep.subr.bf16.mxu0 0
        %3473 = vmatpush1.bf16.msra.mxu0 0
        %3474 = vmatprep.subr.bf16.mxu0 0
        %3475 = vmatpush1.bf16.msra.mxu0 0
        %3476 = vmatprep.subr.bf16.mxu0 0
        %3477 = vmatpush1.bf16.msra.mxu0 0
        %3478 = vmatprep.subr.bf16.mxu0 0
        %3479 = vmatpush1.bf16.msra.mxu0 0
        %3480 = vmatprep.subr.bf16.mxu0 0
        %3481 = vmatpush1.bf16.msra.mxu0 0
        %3482 = vmatprep.subr.bf16.mxu0 0
        %3483 = vmatpush1.bf16.msra.mxu0 0
        %3484 = vmatprep.subr.bf16.mxu0 0
        %3485 = vmatpush1.bf16.msra.mxu0 0
        %3486 = vmatprep.subr.bf16.mxu0 0
        %3487 = vmatpush1.bf16.msra.mxu0 0
        %3488 = vmatprep.mubr.bf16.mxu0 0
        %3489 = vmatmul.mubr.bf16.gmra.mrb[0].mxu0 %v3451
        %v3490 = vpop.f32.mrb[0].mxu0
        %v3491 = vadd.f32 %v3424, %v3490
        %v3492 = vpop.f32.mrb[0].mxu0
        %v3493 = vpop.f32.mrb[0].mxu0
        %v3494 = vadd.f32 %v3427, %v3493
        %v3495 = vpop.f32.mrb[0].mxu0
        %3496 = vmatprep.mubr.bf16.mxu0 0
        %3497 = vmatmul.mubr.bf16.gmra.mrb[0].mxu0 %v3454
        %v3498 = vpop.f32.mrb[0].mxu0
        %v3499 = vadd.f32 %v3432, %v3498
        %v3500 = vpop.f32.mrb[0].mxu0
        %v3501 = vpop.f32.mrb[0].mxu0
        %v3502 = vadd.f32 %v3435, %v3501
        %v3503 = vpop.f32.mrb[0].mxu0
        %3504 = vdwg.mxu0
        %3505 = vrot.lane.b32.xlu0 %v2839, 64
        %v3506 = vpop.permute.xlu0 %3505
        %3507 = vrot.lane.b32.xlu0 %v2841, 64
        %v3508 = vpop.permute.xlu0 %3507
        %3509 = vrot.lane.b32.xlu0 %v2843, 64
        %v3510 = vpop.permute.xlu0 %3509
        %v3512 = vsel %vm1117, %v3506, 0
        %v3515 = vsel %vm1117, %v3508, 0
        %v3518 = vsel %vm1117, %v3510, 0
        %3520 = vmatprep.subr.bf16.mxu0 0
        %3521 = vmatpush1.bf16.xpose.msra.mxu0 %v3515
        %3522 = vmatprep.subr.bf16.mxu0 0
        %3523 = vmatpush1.bf16.xpose.msra.mxu0 %v3518
        %3524 = vmatprep.subr.bf16.mxu0 0
        %3525 = vmatpush1.bf16.xpose.msra.mxu0 0
        %3526 = vmatprep.subr.bf16.mxu0 0
        %3527 = vmatpush1.bf16.xpose.msra.mxu0 0
        %3528 = vmatprep.subr.bf16.mxu0 0
        %3529 = vmatpush1.bf16.xpose.msra.mxu0 0
        %3530 = vmatprep.subr.bf16.mxu0 0
        %3531 = vmatpush1.bf16.xpose.msra.mxu0 0
        %3532 = vmatprep.subr.bf16.mxu0 0
        %3533 = vmatpush1.bf16.xpose.msra.mxu0 0
        %3534 = vmatprep.subr.bf16.mxu0 0
        %3535 = vmatpush1.bf16.xpose.msra.mxu0 0
        %3536 = vmatprep.subr.bf16.mxu0 0
        %3537 = vmatpush1.bf16.xpose.msra.mxu0 0
        %3538 = vmatprep.subr.bf16.mxu0 0
        %3539 = vmatpush1.bf16.xpose.msra.mxu0 0
        %3540 = vmatprep.subr.bf16.mxu0 0
        %3541 = vmatpush1.bf16.xpose.msra.mxu0 0
        %3542 = vmatprep.subr.bf16.mxu0 0
        %3543 = vmatpush1.bf16.xpose.msra.mxu0 0
        %3544 = vmatprep.subr.bf16.mxu0 0
        %3545 = vmatpush1.bf16.xpose.msra.mxu0 0
        %3546 = vmatprep.subr.bf16.mxu0 0
        %3547 = vmatpush1.bf16.xpose.msra.mxu0 0
        %3548 = vmatprep.subr.bf16.mxu0 0
        %3549 = vmatpush1.bf16.xpose.msra.mxu0 0
        %3550 = vmatprep.subr.bf16.mxu0 0
        %3551 = vmatpush1.bf16.xpose.msra.mxu0 0
        %3552 = vmatprep.mubr.bf16.mxu0 0
        %3553 = vmatmul.mubr.bf16.gmra.mrb[0].mxu0 %v3512
        %v3554 = vpop.f32.mrb[0].mxu0
        %v3555 = vadd.f32 0.0, %v3554
        %v3556 = vpop.f32.mrb[0].mxu0
        %v3557 = vpop.f32.mrb[0].mxu0
        %v3558 = vadd.f32 0.0, %v3557
        %v3559 = vpop.f32.mrb[0].mxu0
        %3560 = vdwg.mxu0
        %3561 = vrot.lane.b32.xlu0 %v2840, 64
        %v3562 = vpop.permute.xlu0 %3561
        %3563 = vrot.lane.b32.xlu0 %v2845, 64
        %v3564 = vpop.permute.xlu0 %3563
        %3565 = vrot.lane.b32.xlu0 %v2847, 64
        %v3566 = vpop.permute.xlu0 %3565
        %v3568 = vsel %vm1117, %v3562, 0
        %v3571 = vsel %vm1117, %v3564, 0
        %v3574 = vsel %vm1117, %v3566, 0
        %3576 = vmatprep.subr.bf16.mxu0 0
        %3577 = vmatpush1.bf16.xpose.msra.mxu0 %v3571
        %3578 = vmatprep.subr.bf16.mxu0 0
        %3579 = vmatpush1.bf16.xpose.msra.mxu0 %v3574
        %3580 = vmatprep.subr.bf16.mxu0 0
        %3581 = vmatpush1.bf16.xpose.msra.mxu0 0
        %3582 = vmatprep.subr.bf16.mxu0 0
        %3583 = vmatpush1.bf16.xpose.msra.mxu0 0
        %3584 = vmatprep.subr.bf16.mxu0 0
        %3585 = vmatpush1.bf16.xpose.msra.mxu0 0
        %3586 = vmatprep.subr.bf16.mxu0 0
        %3587 = vmatpush1.bf16.xpose.msra.mxu0 0
        %3588 = vmatprep.subr.bf16.mxu0 0
        %3589 = vmatpush1.bf16.xpose.msra.mxu0 0
        %3590 = vmatprep.subr.bf16.mxu0 0
        %3591 = vmatpush1.bf16.xpose.msra.mxu0 0
        %3592 = vmatprep.subr.bf16.mxu0 0
        %3593 = vmatpush1.bf16.xpose.msra.mxu0 0
        %3594 = vmatprep.subr.bf16.mxu0 0
        %3595 = vmatpush1.bf16.xpose.msra.mxu0 0
        %3596 = vmatprep.subr.bf16.mxu0 0
        %3597 = vmatpush1.bf16.xpose.msra.mxu0 0
        %3598 = vmatprep.subr.bf16.mxu0 0
        %3599 = vmatpush1.bf16.xpose.msra.mxu0 0
        %3600 = vmatprep.subr.bf16.mxu0 0
        %3601 = vmatpush1.bf16.xpose.msra.mxu0 0
        %3602 = vmatprep.subr.bf16.mxu0 0
        %3603 = vmatpush1.bf16.xpose.msra.mxu0 0
        %3604 = vmatprep.subr.bf16.mxu0 0
        %3605 = vmatpush1.bf16.xpose.msra.mxu0 0
        %3606 = vmatprep.subr.bf16.mxu0 0
        %3607 = vmatpush1.bf16.xpose.msra.mxu0 0
        %3608 = vmatprep.mubr.bf16.mxu0 0
        %3609 = vmatmul.mubr.bf16.gmra.mrb[0].mxu0 %v3568
        %v3610 = vpop.f32.mrb[0].mxu0
        %v3611 = vadd.f32 0.0, %v3610
        %v3612 = vpop.f32.mrb[0].mxu0
        %v3613 = vpop.f32.mrb[0].mxu0
        %v3614 = vadd.f32 0.0, %v3613
        %v3615 = vpop.f32.mrb[0].mxu0
        %3616 = vdwg.mxu0
        %v3617 = vsel %vm1117, %v3555, -inf
        %3618 = vmax.xlane.f32.xlu0 %v3617
        %v3619 = vpop.xlane.xlu0 %3618
        %v3620 = vsel %vm1117, %v3558, -inf
        %3621 = vmax.xlane.f32.xlu0 %v3620
        %v3622 = vpop.xlane.xlu0 %3621
        %v3623 = vsel %vm1117, %v3611, -inf
        %3624 = vmax.xlane.f32.xlu0 %v3623
        %v3625 = vpop.xlane.xlu0 %3624
        %v3626 = vsel %vm1117, %v3614, -inf
        %3627 = vmax.xlane.f32.xlu0 %v3626
        %v3628 = vpop.xlane.xlu0 %3627
        %v3629 = vsub.f32 %v3555, %v3619
        %v3630 = vsub.f32 %v3558, %v3622
        %v3631 = vsub.f32 %v3611, %v3625
        %v3632 = vsub.f32 %v3614, %v3628
        %v3633 = vmul.f32 %v3629, 1.442695
        %v3634 = vpow.pop %v3633
        %v3635 = vmul.f32 %v3630, 1.442695
        %v3636 = vpow.pop %v3635
        %v3637 = vmul.f32 %v3631, 1.442695
        %v3638 = vpow.pop %v3637
        %v3639 = vmul.f32 %v3632, 1.442695
        %v3640 = vpow.pop %v3639
        %v3641 = vsel %vm1117, %v3634, 0.0
        %3642 = vadd.xlane.f32.xlu0 %v3641
        %v3643 = vpop.xlane.xlu0 %3642
        %v3644 = vsel %vm1117, %v3636, 0.0
        %3645 = vadd.xlane.f32.xlu0 %v3644
        %v3646 = vpop.xlane.xlu0 %3645
        %v3647 = vsel %vm1117, %v3638, 0.0
        %3648 = vadd.xlane.f32.xlu0 %v3647
        %v3649 = vpop.xlane.xlu0 %3648
        %v3650 = vsel %vm1117, %v3640, 0.0
        %3651 = vadd.xlane.f32.xlu0 %v3650
        %v3652 = vpop.xlane.xlu0 %3651
        %v3653 = vrcp.pop %v3643
        %v3654 = vrcp.pop %v3646
        %v3655 = vrcp.pop %v3649
        %v3656 = vrcp.pop %v3652
        %v3657 = vmul.f32 %v3634, %v3653
        %v3658 = vmul.f32 %v3636, %v3654
        %v3659 = vmul.f32 %v3638, %v3655
        %v3660 = vmul.f32 %v3640, %v3656
        %v3661 = vpack.c.bf16 %v3658, %v3657
        %v3662 = vpack.c.bf16 %v3660, %v3659
        %3663 = vrot.lane.b32.xlu0 %v2842, 64
        %v3664 = vpop.permute.xlu0 %3663
        %3665 = vrot.lane.b32.xlu0 %v2844, 64
        %v3666 = vpop.permute.xlu0 %3665
        %v3670 = vsel %vm1117, %v3661, 0
        %3672 = vmatprep.subr.bf16.mxu0 0
        %3673 = vmatpush1.bf16.msra.mxu0 %v3664
        %3674 = vmatprep.subr.bf16.mxu0 0
        %3675 = vmatpush1.bf16.msra.mxu0 %v3666
        %3676 = vmatprep.subr.bf16.mxu0 0
        %3677 = vmatpush1.bf16.msra.mxu0 0
        %3678 = vmatprep.subr.bf16.mxu0 0
        %3679 = vmatpush1.bf16.msra.mxu0 0
        %3680 = vmatprep.subr.bf16.mxu0 0
        %3681 = vmatpush1.bf16.msra.mxu0 0
        %3682 = vmatprep.subr.bf16.mxu0 0
        %3683 = vmatpush1.bf16.msra.mxu0 0
        %3684 = vmatprep.subr.bf16.mxu0 0
        %3685 = vmatpush1.bf16.msra.mxu0 0
        %3686 = vmatprep.subr.bf16.mxu0 0
        %3687 = vmatpush1.bf16.msra.mxu0 0
        %3688 = vmatprep.subr.bf16.mxu0 0
        %3689 = vmatpush1.bf16.msra.mxu0 0
        %3690 = vmatprep.subr.bf16.mxu0 0
        %3691 = vmatpush1.bf16.msra.mxu0 0
        %3692 = vmatprep.subr.bf16.mxu0 0
        %3693 = vmatpush1.bf16.msra.mxu0 0
        %3694 = vmatprep.subr.bf16.mxu0 0
        %3695 = vmatpush1.bf16.msra.mxu0 0
        %3696 = vmatprep.subr.bf16.mxu0 0
        %3697 = vmatpush1.bf16.msra.mxu0 0
        %3698 = vmatprep.subr.bf16.mxu0 0
        %3699 = vmatpush1.bf16.msra.mxu0 0
        %3700 = vmatprep.subr.bf16.mxu0 0
        %3701 = vmatpush1.bf16.msra.mxu0 0
        %3702 = vmatprep.subr.bf16.mxu0 0
        %3703 = vmatpush1.bf16.msra.mxu0 0
        %3704 = vmatprep.mubr.bf16.mxu0 0
        %3705 = vmatmul.mubr.bf16.gmra.mrb[0].mxu0 %v3670
        %v3706 = vpop.f32.mrb[0].mxu0
        %v3707 = vadd.f32 0.0, %v3706
        %v3708 = vpop.f32.mrb[0].mxu0
        %v3709 = vpop.f32.mrb[0].mxu0
        %v3710 = vadd.f32 0.0, %v3709
        %v3711 = vpop.f32.mrb[0].mxu0
        %3712 = vdwg.mxu0
        %3713 = vrot.lane.b32.xlu0 %v2846, 64
        %v3714 = vpop.permute.xlu0 %3713
        %3715 = vrot.lane.b32.xlu0 %v2848, 64
        %v3716 = vpop.permute.xlu0 %3715
        %v3720 = vsel %vm1117, %v3662, 0
        %3722 = vmatprep.subr.bf16.mxu0 0
        %3723 = vmatpush1.bf16.msra.mxu0 %v3714
        %3724 = vmatprep.subr.bf16.mxu0 0
        %3725 = vmatpush1.bf16.msra.mxu0 %v3716
        %3726 = vmatprep.subr.bf16.mxu0 0
        %3727 = vmatpush1.bf16.msra.mxu0 0
        %3728 = vmatprep.subr.bf16.mxu0 0
        %3729 = vmatpush1.bf16.msra.mxu0 0
        %3730 = vmatprep.subr.bf16.mxu0 0
        %3731 = vmatpush1.bf16.msra.mxu0 0
        %3732 = vmatprep.subr.bf16.mxu0 0
        %3733 = vmatpush1.bf16.msra.mxu0 0
        %3734 = vmatprep.subr.bf16.mxu0 0
        %3735 = vmatpush1.bf16.msra.mxu0 0
        %3736 = vmatprep.subr.bf16.mxu0 0
        %3737 = vmatpush1.bf16.msra.mxu0 0
        %3738 = vmatprep.subr.bf16.mxu0 0
        %3739 = vmatpush1.bf16.msra.mxu0 0
        %3740 = vmatprep.subr.bf16.mxu0 0
        %3741 = vmatpush1.bf16.msra.mxu0 0
        %3742 = vmatprep.subr.bf16.mxu0 0
        %3743 = vmatpush1.bf16.msra.mxu0 0
        %3744 = vmatprep.subr.bf16.mxu0 0
        %3745 = vmatpush1.bf16.msra.mxu0 0
        %3746 = vmatprep.subr.bf16.mxu0 0
        %3747 = vmatpush1.bf16.msra.mxu0 0
        %3748 = vmatprep.subr.bf16.mxu0 0
        %3749 = vmatpush1.bf16.msra.mxu0 0
        %3750 = vmatprep.subr.bf16.mxu0 0
        %3751 = vmatpush1.bf16.msra.mxu0 0
        %3752 = vmatprep.subr.bf16.mxu0 0
        %3753 = vmatpush1.bf16.msra.mxu0 0
        %3754 = vmatprep.mubr.bf16.mxu0 0
        %3755 = vmatmul.mubr.bf16.gmra.mrb[0].mxu0 %v3720
        %v3756 = vpop.f32.mrb[0].mxu0
        %v3757 = vadd.f32 0.0, %v3756
        %v3758 = vpop.f32.mrb[0].mxu0
        %v3759 = vpop.f32.mrb[0].mxu0
        %v3760 = vadd.f32 0.0, %v3759
        %v3761 = vpop.f32.mrb[0].mxu0
        %3762 = vdwg.mxu0
        %v3763 = vpack.c.bf16 %v3710, %v3707
        %v3764 = vpack.c.bf16 %v3760, %v3757
        %v3769 = vunpack.c.l.b16 %v2857
        %v3770 = vunpack.c.l.b16 %v2858
        %v3771 = vunpack.c.l.b16 %v2859
        %v3772 = vunpack.c.l.b16 %v2860
        %v3773 = vpack.c.b16 %v3770, %v3769
        %v3774 = vpack.c.b16 %v3772, %v3771
        %v3778 = vsel %vm1117, %v3763, 0
        %v3781 = vsel %vm1117, %v3764, 0
        %3783 = vmatprep.subr.bf16.mxu0 0
        %3784 = vmatpush1.bf16.msra.mxu0 %v3773
        %3785 = vmatprep.subr.bf16.mxu0 0
        %3786 = vmatpush1.bf16.msra.mxu0 %v3774
        %3787 = vmatprep.subr.bf16.mxu0 0
        %3788 = vmatpush1.bf16.msra.mxu0 0
        %3789 = vmatprep.subr.bf16.mxu0 0
        %3790 = vmatpush1.bf16.msra.mxu0 0
        %3791 = vmatprep.subr.bf16.mxu0 0
        %3792 = vmatpush1.bf16.msra.mxu0 0
        %3793 = vmatprep.subr.bf16.mxu0 0
        %3794 = vmatpush1.bf16.msra.mxu0 0
        %3795 = vmatprep.subr.bf16.mxu0 0
        %3796 = vmatpush1.bf16.msra.mxu0 0
        %3797 = vmatprep.subr.bf16.mxu0 0
        %3798 = vmatpush1.bf16.msra.mxu0 0
        %3799 = vmatprep.subr.bf16.mxu0 0
        %3800 = vmatpush1.bf16.msra.mxu0 0
        %3801 = vmatprep.subr.bf16.mxu0 0
        %3802 = vmatpush1.bf16.msra.mxu0 0
        %3803 = vmatprep.subr.bf16.mxu0 0
        %3804 = vmatpush1.bf16.msra.mxu0 0
        %3805 = vmatprep.subr.bf16.mxu0 0
        %3806 = vmatpush1.bf16.msra.mxu0 0
        %3807 = vmatprep.subr.bf16.mxu0 0
        %3808 = vmatpush1.bf16.msra.mxu0 0
        %3809 = vmatprep.subr.bf16.mxu0 0
        %3810 = vmatpush1.bf16.msra.mxu0 0
        %3811 = vmatprep.subr.bf16.mxu0 0
        %3812 = vmatpush1.bf16.msra.mxu0 0
        %3813 = vmatprep.subr.bf16.mxu0 0
        %3814 = vmatpush1.bf16.msra.mxu0 0
        %3815 = vmatprep.mubr.bf16.mxu0 0
        %3816 = vmatmul.mubr.bf16.gmra.mrb[0].mxu0 %v3778
        %v3817 = vpop.f32.mrb[0].mxu0
        %v3818 = vadd.f32 0.0, %v3817
        %v3819 = vpop.f32.mrb[0].mxu0
        %v3820 = vpop.f32.mrb[0].mxu0
        %v3821 = vadd.f32 0.0, %v3820
        %v3822 = vpop.f32.mrb[0].mxu0
        %3823 = vmatprep.mubr.bf16.mxu0 0
        %3824 = vmatmul.mubr.bf16.gmra.mrb[0].mxu0 %v3781
        %v3825 = vpop.f32.mrb[0].mxu0
        %v3826 = vadd.f32 0.0, %v3825
        %v3827 = vpop.f32.mrb[0].mxu0
        %v3828 = vpop.f32.mrb[0].mxu0
        %v3829 = vadd.f32 0.0, %v3828
        %v3830 = vpop.f32.mrb[0].mxu0
        %3831 = vdwg.mxu0
        %v3832 = vadd.f32 %v3491, %v3818
        %v3833 = vadd.f32 %v3494, %v3821
        %v3834 = vadd.f32 %v3499, %v3826
        %v3835 = vadd.f32 %v3502, %v3829
        %3836 = vrot.lane.b32.xlu0 %v2839, 32
        %v3837 = vpop.permute.xlu0 %3836
        %3838 = vrot.lane.b32.xlu0 %v2841, 32
        %v3839 = vpop.permute.xlu0 %3838
        %3840 = vrot.lane.b32.xlu0 %v2843, 32
        %v3841 = vpop.permute.xlu0 %3840
        %v3843 = vsel %vm1117, %v3837, 0
        %v3846 = vsel %vm1117, %v3839, 0
        %v3849 = vsel %vm1117, %v3841, 0
        %3851 = vmatprep.subr.bf16.mxu0 0
        %3852 = vmatpush1.bf16.xpose.msra.mxu0 %v3846
        %3853 = vmatprep.subr.bf16.mxu0 0
        %3854 = vmatpush1.bf16.xpose.msra.mxu0 %v3849
        %3855 = vmatprep.subr.bf16.mxu0 0
        %3856 = vmatpush1.bf16.xpose.msra.mxu0 0
        %3857 = vmatprep.subr.bf16.mxu0 0
        %3858 = vmatpush1.bf16.xpose.msra.mxu0 0
        %3859 = vmatprep.subr.bf16.mxu0 0
        %3860 = vmatpush1.bf16.xpose.msra.mxu0 0
        %3861 = vmatprep.subr.bf16.mxu0 0
        %3862 = vmatpush1.bf16.xpose.msra.mxu0 0
        %3863 = vmatprep.subr.bf16.mxu0 0
        %3864 = vmatpush1.bf16.xpose.msra.mxu0 0
        %3865 = vmatprep.subr.bf16.mxu0 0
        %3866 = vmatpush1.bf16.xpose.msra.mxu0 0
        %3867 = vmatprep.subr.bf16.mxu0 0
        %3868 = vmatpush1.bf16.xpose.msra.mxu0 0
        %3869 = vmatprep.subr.bf16.mxu0 0
        %3870 = vmatpush1.bf16.xpose.msra.mxu0 0
        %3871 = vmatprep.subr.bf16.mxu0 0
        %3872 = vmatpush1.bf16.xpose.msra.mxu0 0
        %3873 = vmatprep.subr.bf16.mxu0 0
        %3874 = vmatpush1.bf16.xpose.msra.mxu0 0
        %3875 = vmatprep.subr.bf16.mxu0 0
        %3876 = vmatpush1.bf16.xpose.msra.mxu0 0
        %3877 = vmatprep.subr.bf16.mxu0 0
        %3878 = vmatpush1.bf16.xpose.msra.mxu0 0
        %3879 = vmatprep.subr.bf16.mxu0 0
        %3880 = vmatpush1.bf16.xpose.msra.mxu0 0
        %3881 = vmatprep.subr.bf16.mxu0 0
        %3882 = vmatpush1.bf16.xpose.msra.mxu0 0
        %3883 = vmatprep.mubr.bf16.mxu0 0
        %3884 = vmatmul.mubr.bf16.gmra.mrb[0].mxu0 %v3843
        %v3885 = vpop.f32.mrb[0].mxu0
        %v3886 = vadd.f32 0.0, %v3885
        %v3887 = vpop.f32.mrb[0].mxu0
        %v3888 = vpop.f32.mrb[0].mxu0
        %v3889 = vadd.f32 0.0, %v3888
        %v3890 = vpop.f32.mrb[0].mxu0
        %3891 = vdwg.mxu0
        %3892 = vrot.lane.b32.xlu0 %v2840, 32
        %v3893 = vpop.permute.xlu0 %3892
        %3894 = vrot.lane.b32.xlu0 %v2845, 32
        %v3895 = vpop.permute.xlu0 %3894
        %3896 = vrot.lane.b32.xlu0 %v2847, 32
        %v3897 = vpop.permute.xlu0 %3896
        %v3899 = vsel %vm1117, %v3893, 0
        %v3902 = vsel %vm1117, %v3895, 0
        %v3905 = vsel %vm1117, %v3897, 0
        %3907 = vmatprep.subr.bf16.mxu0 0
        %3908 = vmatpush1.bf16.xpose.msra.mxu0 %v3902
        %3909 = vmatprep.subr.bf16.mxu0 0
        %3910 = vmatpush1.bf16.xpose.msra.mxu0 %v3905
        %3911 = vmatprep.subr.bf16.mxu0 0
        %3912 = vmatpush1.bf16.xpose.msra.mxu0 0
        %3913 = vmatprep.subr.bf16.mxu0 0
        %3914 = vmatpush1.bf16.xpose.msra.mxu0 0
        %3915 = vmatprep.subr.bf16.mxu0 0
        %3916 = vmatpush1.bf16.xpose.msra.mxu0 0
        %3917 = vmatprep.subr.bf16.mxu0 0
        %3918 = vmatpush1.bf16.xpose.msra.mxu0 0
        %3919 = vmatprep.subr.bf16.mxu0 0
        %3920 = vmatpush1.bf16.xpose.msra.mxu0 0
        %3921 = vmatprep.subr.bf16.mxu0 0
        %3922 = vmatpush1.bf16.xpose.msra.mxu0 0
        %3923 = vmatprep.subr.bf16.mxu0 0
        %3924 = vmatpush1.bf16.xpose.msra.mxu0 0
        %3925 = vmatprep.subr.bf16.mxu0 0
        %3926 = vmatpush1.bf16.xpose.msra.mxu0 0
        %3927 = vmatprep.subr.bf16.mxu0 0
        %3928 = vmatpush1.bf16.xpose.msra.mxu0 0
        %3929 = vmatprep.subr.bf16.mxu0 0
        %3930 = vmatpush1.bf16.xpose.msra.mxu0 0
        %3931 = vmatprep.subr.bf16.mxu0 0
        %3932 = vmatpush1.bf16.xpose.msra.mxu0 0
        %3933 = vmatprep.subr.bf16.mxu0 0
        %3934 = vmatpush1.bf16.xpose.msra.mxu0 0
        %3935 = vmatprep.subr.bf16.mxu0 0
        %3936 = vmatpush1.bf16.xpose.msra.mxu0 0
        %3937 = vmatprep.subr.bf16.mxu0 0
        %3938 = vmatpush1.bf16.xpose.msra.mxu0 0
        %3939 = vmatprep.mubr.bf16.mxu0 0
        %3940 = vmatmul.mubr.bf16.gmra.mrb[0].mxu0 %v3899
        %v3941 = vpop.f32.mrb[0].mxu0
        %v3942 = vadd.f32 0.0, %v3941
        %v3943 = vpop.f32.mrb[0].mxu0
        %v3944 = vpop.f32.mrb[0].mxu0
        %v3945 = vadd.f32 0.0, %v3944
        %v3946 = vpop.f32.mrb[0].mxu0
        %3947 = vdwg.mxu0
        %v3948 = vsel %vm1117, %v3886, -inf
        %3949 = vmax.xlane.f32.xlu0 %v3948
        %v3950 = vpop.xlane.xlu0 %3949
        %v3951 = vsel %vm1117, %v3889, -inf
        %3952 = vmax.xlane.f32.xlu0 %v3951
        %v3953 = vpop.xlane.xlu0 %3952
        %v3954 = vsel %vm1117, %v3942, -inf
        %3955 = vmax.xlane.f32.xlu0 %v3954
        %v3956 = vpop.xlane.xlu0 %3955
        %v3957 = vsel %vm1117, %v3945, -inf
        %3958 = vmax.xlane.f32.xlu0 %v3957
        %v3959 = vpop.xlane.xlu0 %3958
        %v3960 = vsub.f32 %v3886, %v3950
        %v3961 = vsub.f32 %v3889, %v3953
        %v3962 = vsub.f32 %v3942, %v3956
        %v3963 = vsub.f32 %v3945, %v3959
        %v3964 = vmul.f32 %v3960, 1.442695
        %v3965 = vpow.pop %v3964
        %v3966 = vmul.f32 %v3961, 1.442695
        %v3967 = vpow.pop %v3966
        %v3968 = vmul.f32 %v3962, 1.442695
        %v3969 = vpow.pop %v3968
        %v3970 = vmul.f32 %v3963, 1.442695
        %v3971 = vpow.pop %v3970
        %v3972 = vsel %vm1117, %v3965, 0.0
        %3973 = vadd.xlane.f32.xlu0 %v3972
        %v3974 = vpop.xlane.xlu0 %3973
        %v3975 = vsel %vm1117, %v3967, 0.0
        %3976 = vadd.xlane.f32.xlu0 %v3975
        %v3977 = vpop.xlane.xlu0 %3976
        %v3978 = vsel %vm1117, %v3969, 0.0
        %3979 = vadd.xlane.f32.xlu0 %v3978
        %v3980 = vpop.xlane.xlu0 %3979
        %v3981 = vsel %vm1117, %v3971, 0.0
        %3982 = vadd.xlane.f32.xlu0 %v3981
        %v3983 = vpop.xlane.xlu0 %3982
        %v3984 = vrcp.pop %v3974
        %v3985 = vrcp.pop %v3977
        %v3986 = vrcp.pop %v3980
        %v3987 = vrcp.pop %v3983
        %v3988 = vmul.f32 %v3965, %v3984
        %v3989 = vmul.f32 %v3967, %v3985
        %v3990 = vmul.f32 %v3969, %v3986
        %v3991 = vmul.f32 %v3971, %v3987
        %v3992 = vpack.c.bf16 %v3989, %v3988
        %v3993 = vpack.c.bf16 %v3991, %v3990
        %3994 = vrot.lane.b32.xlu0 %v2842, 32
        %v3995 = vpop.permute.xlu0 %3994
        %3996 = vrot.lane.b32.xlu0 %v2844, 32
        %v3997 = vpop.permute.xlu0 %3996
        %v4001 = vsel %vm1117, %v3992, 0
        %4003 = vmatprep.subr.bf16.mxu0 0
        %4004 = vmatpush1.bf16.msra.mxu0 %v3995
        %4005 = vmatprep.subr.bf16.mxu0 0
        %4006 = vmatpush1.bf16.msra.mxu0 %v3997
        %4007 = vmatprep.subr.bf16.mxu0 0
        %4008 = vmatpush1.bf16.msra.mxu0 0
        %4009 = vmatprep.subr.bf16.mxu0 0
        %4010 = vmatpush1.bf16.msra.mxu0 0
        %4011 = vmatprep.subr.bf16.mxu0 0
        %4012 = vmatpush1.bf16.msra.mxu0 0
        %4013 = vmatprep.subr.bf16.mxu0 0
        %4014 = vmatpush1.bf16.msra.mxu0 0
        %4015 = vmatprep.subr.bf16.mxu0 0
        %4016 = vmatpush1.bf16.msra.mxu0 0
        %4017 = vmatprep.subr.bf16.mxu0 0
        %4018 = vmatpush1.bf16.msra.mxu0 0
        %4019 = vmatprep.subr.bf16.mxu0 0
        %4020 = vmatpush1.bf16.msra.mxu0 0
        %4021 = vmatprep.subr.bf16.mxu0 0
        %4022 = vmatpush1.bf16.msra.mxu0 0
        %4023 = vmatprep.subr.bf16.mxu0 0
        %4024 = vmatpush1.bf16.msra.mxu0 0
        %4025 = vmatprep.subr.bf16.mxu0 0
        %4026 = vmatpush1.bf16.msra.mxu0 0
        %4027 = vmatprep.subr.bf16.mxu0 0
        %4028 = vmatpush1.bf16.msra.mxu0 0
        %4029 = vmatprep.subr.bf16.mxu0 0
        %4030 = vmatpush1.bf16.msra.mxu0 0
        %4031 = vmatprep.subr.bf16.mxu0 0
        %4032 = vmatpush1.bf16.msra.mxu0 0
        %4033 = vmatprep.subr.bf16.mxu0 0
        %4034 = vmatpush1.bf16.msra.mxu0 0
        %4035 = vmatprep.mubr.bf16.mxu0 0
        %4036 = vmatmul.mubr.bf16.gmra.mrb[0].mxu0 %v4001
        %v4037 = vpop.f32.mrb[0].mxu0
        %v4038 = vadd.f32 0.0, %v4037
        %v4039 = vpop.f32.mrb[0].mxu0
        %v4040 = vpop.f32.mrb[0].mxu0
        %v4041 = vadd.f32 0.0, %v4040
        %v4042 = vpop.f32.mrb[0].mxu0
        %4043 = vdwg.mxu0
        %4044 = vrot.lane.b32.xlu0 %v2846, 32
        %v4045 = vpop.permute.xlu0 %4044
        %4046 = vrot.lane.b32.xlu0 %v2848, 32
        %v4047 = vpop.permute.xlu0 %4046
        %v4051 = vsel %vm1117, %v3993, 0
        %4053 = vmatprep.subr.bf16.mxu0 0
        %4054 = vmatpush1.bf16.msra.mxu0 %v4045
        %4055 = vmatprep.subr.bf16.mxu0 0
        %4056 = vmatpush1.bf16.msra.mxu0 %v4047
        %4057 = vmatprep.subr.bf16.mxu0 0
        %4058 = vmatpush1.bf16.msra.mxu0 0
        %4059 = vmatprep.subr.bf16.mxu0 0
        %4060 = vmatpush1.bf16.msra.mxu0 0
        %4061 = vmatprep.subr.bf16.mxu0 0
        %4062 = vmatpush1.bf16.msra.mxu0 0
        %4063 = vmatprep.subr.bf16.mxu0 0
        %4064 = vmatpush1.bf16.msra.mxu0 0
        %4065 = vmatprep.subr.bf16.mxu0 0
        %4066 = vmatpush1.bf16.msra.mxu0 0
        %4067 = vmatprep.subr.bf16.mxu0 0
        %4068 = vmatpush1.bf16.msra.mxu0 0
        %4069 = vmatprep.subr.bf16.mxu0 0
        %4070 = vmatpush1.bf16.msra.mxu0 0
        %4071 = vmatprep.subr.bf16.mxu0 0
        %4072 = vmatpush1.bf16.msra.mxu0 0
        %4073 = vmatprep.subr.bf16.mxu0 0
        %4074 = vmatpush1.bf16.msra.mxu0 0
        %4075 = vmatprep.subr.bf16.mxu0 0
        %4076 = vmatpush1.bf16.msra.mxu0 0
        %4077 = vmatprep.subr.bf16.mxu0 0
        %4078 = vmatpush1.bf16.msra.mxu0 0
        %4079 = vmatprep.subr.bf16.mxu0 0
        %4080 = vmatpush1.bf16.msra.mxu0 0
        %4081 = vmatprep.subr.bf16.mxu0 0
        %4082 = vmatpush1.bf16.msra.mxu0 0
        %4083 = vmatprep.subr.bf16.mxu0 0
        %4084 = vmatpush1.bf16.msra.mxu0 0
        %4085 = vmatprep.mubr.bf16.mxu0 0
        %4086 = vmatmul.mubr.bf16.gmra.mrb[0].mxu0 %v4051
        %v4087 = vpop.f32.mrb[0].mxu0
        %v4088 = vadd.f32 0.0, %v4087
        %v4089 = vpop.f32.mrb[0].mxu0
        %v4090 = vpop.f32.mrb[0].mxu0
        %v4091 = vadd.f32 0.0, %v4090
        %v4092 = vpop.f32.mrb[0].mxu0
        %4093 = vdwg.mxu0
        %v4094 = vpack.c.bf16 %v4041, %v4038
        %v4095 = vpack.c.bf16 %v4091, %v4088
        %v4100 = vunpack.c.l.b16 %v2861
        %v4101 = vunpack.c.l.b16 %v2862
        %v4102 = vunpack.c.l.b16 %v2863
        %v4103 = vunpack.c.l.b16 %v2864
        %v4104 = vpack.c.b16 %v4101, %v4100
        %v4105 = vpack.c.b16 %v4103, %v4102
        %v4109 = vsel %vm1117, %v4094, 0
        %v4112 = vsel %vm1117, %v4095, 0
        %4114 = vmatprep.subr.bf16.mxu0 0
        %4115 = vmatpush1.bf16.msra.mxu0 %v4104
        %4116 = vmatprep.subr.bf16.mxu0 0
        %4117 = vmatpush1.bf16.msra.mxu0 %v4105
        %4118 = vmatprep.subr.bf16.mxu0 0
        %4119 = vmatpush1.bf16.msra.mxu0 0
        %4120 = vmatprep.subr.bf16.mxu0 0
        %4121 = vmatpush1.bf16.msra.mxu0 0
        %4122 = vmatprep.subr.bf16.mxu0 0
        %4123 = vmatpush1.bf16.msra.mxu0 0
        %4124 = vmatprep.subr.bf16.mxu0 0
        %4125 = vmatpush1.bf16.msra.mxu0 0
        %4126 = vmatprep.subr.bf16.mxu0 0
        %4127 = vmatpush1.bf16.msra.mxu0 0
        %4128 = vmatprep.subr.bf16.mxu0 0
        %4129 = vmatpush1.bf16.msra.mxu0 0
        %4130 = vmatprep.subr.bf16.mxu0 0
        %4131 = vmatpush1.bf16.msra.mxu0 0
        %4132 = vmatprep.subr.bf16.mxu0 0
        %4133 = vmatpush1.bf16.msra.mxu0 0
        %4134 = vmatprep.subr.bf16.mxu0 0
        %4135 = vmatpush1.bf16.msra.mxu0 0
        %4136 = vmatprep.subr.bf16.mxu0 0
        %4137 = vmatpush1.bf16.msra.mxu0 0
        %4138 = vmatprep.subr.bf16.mxu0 0
        %4139 = vmatpush1.bf16.msra.mxu0 0
        %4140 = vmatprep.subr.bf16.mxu0 0
        %4141 = vmatpush1.bf16.msra.mxu0 0
        %4142 = vmatprep.subr.bf16.mxu0 0
        %4143 = vmatpush1.bf16.msra.mxu0 0
        %4144 = vmatprep.subr.bf16.mxu0 0
        %4145 = vmatpush1.bf16.msra.mxu0 0
        %4146 = vmatprep.mubr.bf16.mxu0 0
        %4147 = vmatmul.mubr.bf16.gmra.mrb[0].mxu0 %v4109
        %v4148 = vpop.f32.mrb[0].mxu0
        %v4149 = vadd.f32 0.0, %v4148
        %v4150 = vpop.f32.mrb[0].mxu0
        %v4151 = vpop.f32.mrb[0].mxu0
        %v4152 = vadd.f32 0.0, %v4151
        %v4153 = vpop.f32.mrb[0].mxu0
        %4154 = vmatprep.mubr.bf16.mxu0 0
        %4155 = vmatmul.mubr.bf16.gmra.mrb[0].mxu0 %v4112
        %v4156 = vpop.f32.mrb[0].mxu0
        %v4157 = vadd.f32 0.0, %v4156
        %v4158 = vpop.f32.mrb[0].mxu0
        %v4159 = vpop.f32.mrb[0].mxu0
        %v4160 = vadd.f32 0.0, %v4159
        %v4161 = vpop.f32.mrb[0].mxu0
        %4162 = vdwg.mxu0
        %v4163 = vadd.f32 %v3832, %v4149
        %v4164 = vadd.f32 %v3833, %v4152
        %v4165 = vadd.f32 %v3834, %v4157
        %v4166 = vadd.f32 %v3835, %v4160
        %v4167 = vadd.f32 %v2363, %v4163
        %v4168 = vadd.f32 %v2364, %v4164
        %v4169 = vadd.f32 %v2365, %v4165
        %v4170 = vadd.f32 %v2366, %v4166
        %v4171 = vld [vmem:[%s13] sm:$0x1]
        %v4172 = vld [vmem:[%s14] sm:$0x1]
        %4173 = vadd.xlane.f32.xlu0 %v4167
        %v4174 = vpop.xlane.xlu0 %4173
        %4175 = vadd.xlane.f32.xlu0 %v4168
        %v4176 = vpop.xlane.xlu0 %4175
        %4177 = vadd.xlane.f32.xlu0 %v4169
        %v4178 = vpop.xlane.xlu0 %4177
        %4179 = vadd.xlane.f32.xlu0 %v4170
        %v4180 = vpop.xlane.xlu0 %4179
        %v4181 = vmul.f32 %v4174, %v774
        %v4182 = vmul.f32 %v4176, %v774
        %v4183 = vmul.f32 %v4178, %v774
        %v4184 = vmul.f32 %v4180, %v774
        %v4185 = vsub.f32 %v4167, %v4181
        %v4186 = vsub.f32 %v4168, %v4182
        %v4187 = vsub.f32 %v4169, %v4183
        %v4188 = vsub.f32 %v4170, %v4184
        %v4189 = vmul.f32 %v4185, %v4185
        %v4190 = vmul.f32 %v4186, %v4186
        %v4191 = vmul.f32 %v4187, %v4187
        %v4192 = vmul.f32 %v4188, %v4188
        %4193 = vadd.xlane.f32.xlu0 %v4189
        %v4194 = vpop.xlane.xlu0 %4193
        %4195 = vadd.xlane.f32.xlu0 %v4190
        %v4196 = vpop.xlane.xlu0 %4195
        %4197 = vadd.xlane.f32.xlu0 %v4191
        %v4198 = vpop.xlane.xlu0 %4197
        %4199 = vadd.xlane.f32.xlu0 %v4192
        %v4200 = vpop.xlane.xlu0 %4199
        %v4201 = vmul.f32 %v4194, %v774
        %v4202 = vmul.f32 %v4196, %v774
        %v4203 = vmul.f32 %v4198, %v774
        %v4204 = vmul.f32 %v4200, %v774
        %v4205 = vadd.f32 %v4201, 1e-05
        %v4206 = vadd.f32 %v4202, 1e-05
        %v4207 = vadd.f32 %v4203, 1e-05
        %v4208 = vadd.f32 %v4204, 1e-05
        %v4209 = vrsqrt.pop %v4205
        %v4210 = vrsqrt.pop %v4206
        %v4211 = vrsqrt.pop %v4207
        %v4212 = vrsqrt.pop %v4208
        %v4213 = vmul.f32 %v4185, %v4209
        %v4214 = vmul.f32 %v4186, %v4210
        %v4215 = vmul.f32 %v4187, %v4211
        %v4216 = vmul.f32 %v4188, %v4212
        %v4218 = vlaneseq
        %v4219 = vshrl.u32 %v4218, 7
        %v4220 = vsub.s32 0, %v4219
        %v4221 = vrot.slane %v4171, %v4220
        %v4223 = vmul.f32 %v4213, %v4221
        %v4224 = vmul.f32 %v4214, %v4221
        %v4225 = vmul.f32 %v4215, %v4221
        %v4226 = vmul.f32 %v4216, %v4221
        %v4228 = vlaneseq
        %v4229 = vshrl.u32 %v4228, 7
        %v4230 = vsub.s32 0, %v4229
        %v4231 = vrot.slane %v4172, %v4230
        %v4233 = vadd.f32 %v4223, %v4231
        %v4234 = vadd.f32 %v4224, %v4231
        %v4235 = vadd.f32 %v4225, %v4231
        %v4236 = vadd.f32 %v4226, %v4231
        %v4237 = vpack.c.bf16 %v4234, %v4233
        %v4238 = vpack.c.bf16 %v4236, %v4235
        %v4239 = vld [vmem:[#allocation13] sm:$0xff]
        %v4240 = vld [vmem:[#allocation13 + $0x8] sm:$0xff]
        %v4241 = vld [vmem:[#allocation13 + $0x10] sm:$0xff]
        %v4242 = vld [vmem:[#allocation13 + $0x18] sm:$0xff]
        %v4243 = vld [vmem:[#allocation13 + $0x20] sm:$0xff]
        %v4244 = vld [vmem:[#allocation13 + $0x28] sm:$0xff]
        %v4245 = vld [vmem:[#allocation13 + $0x30] sm:$0xff]
        %v4246 = vld [vmem:[#allocation13 + $0x38] sm:$0xff]
        %v4247 = vld [vmem:[#allocation13 + $0x40] sm:$0xff]
        %v4248 = vld [vmem:[#allocation13 + $0x48] sm:$0xff]
        %v4249 = vld [vmem:[#allocation13 + $0x50] sm:$0xff]
        %v4250 = vld [vmem:[#allocation13 + $0x58] sm:$0xff]
        %v4251 = vld [vmem:[#allocation13 + $0x60] sm:$0xff]
        %v4252 = vld [vmem:[#allocation13 + $0x68] sm:$0xff]
        %v4253 = vld [vmem:[#allocation13 + $0x70] sm:$0xff]
        %v4254 = vld [vmem:[#allocation13 + $0x78] sm:$0xff]
        %v4255 = vld [vmem:[#allocation13 + $0x80] sm:$0xff]
        %v4256 = vld [vmem:[#allocation13 + $0x88] sm:$0xff]
        %v4257 = vld [vmem:[#allocation13 + $0x90] sm:$0xff]
        %v4258 = vld [vmem:[#allocation13 + $0x98] sm:$0xff]
        %v4259 = vld [vmem:[#allocation13 + $0xa0] sm:$0xff]
        %v4260 = vld [vmem:[#allocation13 + $0xa8] sm:$0xff]
        %v4261 = vld [vmem:[#allocation13 + $0xb0] sm:$0xff]
        %v4262 = vld [vmem:[#allocation13 + $0xb8] sm:$0xff]
        %v4263 = vld [vmem:[#allocation13 + $0xc0] sm:$0xff]
        %v4264 = vld [vmem:[#allocation13 + $0xc8] sm:$0xff]
        %v4265 = vld [vmem:[#allocation13 + $0xd0] sm:$0xff]
        %v4266 = vld [vmem:[#allocation13 + $0xd8] sm:$0xff]
        %v4267 = vld [vmem:[#allocation13 + $0xe0] sm:$0xff]
        %v4268 = vld [vmem:[#allocation13 + $0xe8] sm:$0xff]
        %v4269 = vld [vmem:[#allocation13 + $0xf0] sm:$0xff]
        %v4270 = vld [vmem:[#allocation13 + $0xf8] sm:$0xff]
        %v4271 = vld [vmem:[%s16] sm:$0xf]
        %v4273 = vlaneseq
        %v4274 = vshrl.u32 %v4273, 7
        %v4275 = vsub.s32 0, %v4274
        %v4276 = vrot.slane %v4271, %v4275
        %v4277 = vlaneseq
        %v4278 = vshrl.u32 %v4277, 7
        %v4279 = vsub.s32 1, %v4278
        %v4280 = vrot.slane %v4271, %v4279
        %v4281 = vlaneseq
        %v4282 = vshrl.u32 %v4281, 7
        %v4283 = vsub.s32 2, %v4282
        %v4284 = vrot.slane %v4271, %v4283
        %v4285 = vlaneseq
        %v4286 = vshrl.u32 %v4285, 7
        %v4287 = vsub.s32 3, %v4286
        %v4288 = vrot.slane %v4271, %v4287
        %v4325 = vunpack.c.l.b16 %v4239
        %v4326 = vunpack.c.h.b16 %v4239
        %v4327 = vunpack.c.l.b16 %v4240
        %v4328 = vunpack.c.h.b16 %v4240
        %v4329 = vunpack.c.l.b16 %v4241
        %v4330 = vunpack.c.h.b16 %v4241
        %v4331 = vunpack.c.l.b16 %v4242
        %v4332 = vunpack.c.h.b16 %v4242
        %v4333 = vunpack.c.l.b16 %v4243
        %v4334 = vunpack.c.h.b16 %v4243
        %v4335 = vunpack.c.l.b16 %v4244
        %v4336 = vunpack.c.h.b16 %v4244
        %v4337 = vunpack.c.l.b16 %v4245
        %v4338 = vunpack.c.h.b16 %v4245
        %v4339 = vunpack.c.l.b16 %v4246
        %v4340 = vunpack.c.h.b16 %v4246
        %v4341 = vunpack.c.l.b16 %v4247
        %v4342 = vunpack.c.h.b16 %v4247
        %v4343 = vunpack.c.l.b16 %v4248
        %v4344 = vunpack.c.h.b16 %v4248
        %v4345 = vunpack.c.l.b16 %v4249
        %v4346 = vunpack.c.h.b16 %v4249
        %v4347 = vunpack.c.l.b16 %v4250
        %v4348 = vunpack.c.h.b16 %v4250
        %v4349 = vunpack.c.l.b16 %v4251
        %v4350 = vunpack.c.h.b16 %v4251
        %v4351 = vunpack.c.l.b16 %v4252
        %v4352 = vunpack.c.h.b16 %v4252
        %v4353 = vunpack.c.l.b16 %v4253
        %v4354 = vunpack.c.h.b16 %v4253
        %v4355 = vunpack.c.l.b16 %v4254
        %v4356 = vunpack.c.h.b16 %v4254
        %v4357 = vunpack.c.l.b16 %v4255
        %v4358 = vunpack.c.h.b16 %v4255
        %v4359 = vunpack.c.l.b16 %v4256
        %v4360 = vunpack.c.h.b16 %v4256
        %v4361 = vunpack.c.l.b16 %v4257
        %v4362 = vunpack.c.h.b16 %v4257
        %v4363 = vunpack.c.l.b16 %v4258
        %v4364 = vunpack.c.h.b16 %v4258
        %v4365 = vunpack.c.l.b16 %v4259
        %v4366 = vunpack.c.h.b16 %v4259
        %v4367 = vunpack.c.l.b16 %v4260
        %v4368 = vunpack.c.h.b16 %v4260
        %v4369 = vunpack.c.l.b16 %v4261
        %v4370 = vunpack.c.h.b16 %v4261
        %v4371 = vunpack.c.l.b16 %v4262
        %v4372 = vunpack.c.h.b16 %v4262
        %v4373 = vunpack.c.l.b16 %v4263
        %v4374 = vunpack.c.h.b16 %v4263
        %v4375 = vunpack.c.l.b16 %v4264
        %v4376 = vunpack.c.h.b16 %v4264
        %v4377 = vunpack.c.l.b16 %v4265
        %v4378 = vunpack.c.h.b16 %v4265
        %v4379 = vunpack.c.l.b16 %v4266
        %v4380 = vunpack.c.h.b16 %v4266
        %v4381 = vunpack.c.l.b16 %v4267
        %v4382 = vunpack.c.h.b16 %v4267
        %v4383 = vunpack.c.l.b16 %v4268
        %v4384 = vunpack.c.h.b16 %v4268
        %v4385 = vunpack.c.l.b16 %v4269
        %v4386 = vunpack.c.h.b16 %v4269
        %v4387 = vunpack.c.l.b16 %v4270
        %v4388 = vunpack.c.h.b16 %v4270
        %v4389 = vpack.c.b16 %v4329, %v4325
        %v4390 = vpack.c.b16 %v4330, %v4326
        %v4391 = vpack.c.b16 %v4331, %v4327
        %v4392 = vpack.c.b16 %v4332, %v4328
        %v4393 = vpack.c.b16 %v4337, %v4333
        %v4394 = vpack.c.b16 %v4338, %v4334
        %v4395 = vpack.c.b16 %v4339, %v4335
        %v4396 = vpack.c.b16 %v4340, %v4336
        %v4397 = vpack.c.b16 %v4345, %v4341
        %v4398 = vpack.c.b16 %v4346, %v4342
        %v4399 = vpack.c.b16 %v4347, %v4343
        %v4400 = vpack.c.b16 %v4348, %v4344
        %v4401 = vpack.c.b16 %v4353, %v4349
        %v4402 = vpack.c.b16 %v4354, %v4350
        %v4403 = vpack.c.b16 %v4355, %v4351
        %v4404 = vpack.c.b16 %v4356, %v4352
        %v4405 = vpack.c.b16 %v4361, %v4357
        %v4406 = vpack.c.b16 %v4362, %v4358
        %v4407 = vpack.c.b16 %v4363, %v4359
        %v4408 = vpack.c.b16 %v4364, %v4360
        %v4409 = vpack.c.b16 %v4369, %v4365
        %v4410 = vpack.c.b16 %v4370, %v4366
        %v4411 = vpack.c.b16 %v4371, %v4367
        %v4412 = vpack.c.b16 %v4372, %v4368
        %v4413 = vpack.c.b16 %v4377, %v4373
        %v4414 = vpack.c.b16 %v4378, %v4374
        %v4415 = vpack.c.b16 %v4379, %v4375
        %v4416 = vpack.c.b16 %v4380, %v4376
        %v4417 = vpack.c.b16 %v4385, %v4381
        %v4418 = vpack.c.b16 %v4386, %v4382
        %v4419 = vpack.c.b16 %v4387, %v4383
        %v4420 = vpack.c.b16 %v4388, %v4384
        %4453 = vmatprep.subr.bf16.mxu0 %v4390
        %4454 = vmatpush1.bf16.msra.mxu0 %v4389
        %4455 = vmatprep.subr.bf16.mxu0 %v4394
        %4456 = vmatpush1.bf16.msra.mxu0 %v4393
        %4457 = vmatprep.subr.bf16.mxu0 %v4398
        %4458 = vmatpush1.bf16.msra.mxu0 %v4397
        %4459 = vmatprep.subr.bf16.mxu0 %v4402
        %4460 = vmatpush1.bf16.msra.mxu0 %v4401
        %4461 = vmatprep.subr.bf16.mxu0 %v4406
        %4462 = vmatpush1.bf16.msra.mxu0 %v4405
        %4463 = vmatprep.subr.bf16.mxu0 %v4410
        %4464 = vmatpush1.bf16.msra.mxu0 %v4409
        %4465 = vmatprep.subr.bf16.mxu0 %v4414
        %4466 = vmatpush1.bf16.msra.mxu0 %v4413
        %4467 = vmatprep.subr.bf16.mxu0 %v4418
        %4468 = vmatpush1.bf16.msra.mxu0 %v4417
        %4469 = vmatprep.subr.bf16.mxu0 0
        %4470 = vmatpush1.bf16.msra.mxu0 0
        %4471 = vmatprep.subr.bf16.mxu0 0
        %4472 = vmatpush1.bf16.msra.mxu0 0
        %4473 = vmatprep.subr.bf16.mxu0 0
        %4474 = vmatpush1.bf16.msra.mxu0 0
        %4475 = vmatprep.subr.bf16.mxu0 0
        %4476 = vmatpush1.bf16.msra.mxu0 0
        %4477 = vmatprep.subr.bf16.mxu0 0
        %4478 = vmatpush1.bf16.msra.mxu0 0
        %4479 = vmatprep.subr.bf16.mxu0 0
        %4480 = vmatpush1.bf16.msra.mxu0 0
        %4481 = vmatprep.subr.bf16.mxu0 0
        %4482 = vmatpush1.bf16.msra.mxu0 0
        %4483 = vmatprep.subr.bf16.mxu0 0
        %4484 = vmatpush1.bf16.msra.mxu0 0
        %4485 = vmatprep.mubr.bf16.mxu0 0
        %4486 = vmatmul.mubr.bf16.gmra.mrb[0].mxu0 %v4237
        %v4487 = vpop.f32.mrb[0].mxu0
        %v4488 = vadd.f32 %v4276, %v4487
        %v4489 = vpop.f32.mrb[0].mxu0
        %v4490 = vadd.f32 %v4280, %v4489
        %v4491 = vpop.f32.mrb[0].mxu0
        %v4492 = vadd.f32 %v4276, %v4491
        %v4493 = vpop.f32.mrb[0].mxu0
        %v4494 = vadd.f32 %v4280, %v4493
        %4495 = vmatprep.mubr.bf16.mxu0 0
        %4496 = vmatmul.mubr.bf16.gmra.mrb[0].mxu0 %v4238
        %v4497 = vpop.f32.mrb[0].mxu0
        %v4498 = vadd.f32 %v4276, %v4497
        %v4499 = vpop.f32.mrb[0].mxu0
        %v4500 = vadd.f32 %v4280, %v4499
        %v4501 = vpop.f32.mrb[0].mxu0
        %v4502 = vadd.f32 %v4276, %v4501
        %v4503 = vpop.f32.mrb[0].mxu0
        %v4504 = vadd.f32 %v4280, %v4503
        %4505 = vdwg.mxu0
        %4506 = vmatprep.subr.bf16.mxu0 %v4392
        %4507 = vmatpush1.bf16.msra.mxu0 %v4391
        %4508 = vmatprep.subr.bf16.mxu0 %v4396
        %4509 = vmatpush1.bf16.msra.mxu0 %v4395
        %4510 = vmatprep.subr.bf16.mxu0 %v4400
        %4511 = vmatpush1.bf16.msra.mxu0 %v4399
        %4512 = vmatprep.subr.bf16.mxu0 %v4404
        %4513 = vmatpush1.bf16.msra.mxu0 %v4403
        %4514 = vmatprep.subr.bf16.mxu0 %v4408
        %4515 = vmatpush1.bf16.msra.mxu0 %v4407
        %4516 = vmatprep.subr.bf16.mxu0 %v4412
        %4517 = vmatpush1.bf16.msra.mxu0 %v4411
        %4518 = vmatprep.subr.bf16.mxu0 %v4416
        %4519 = vmatpush1.bf16.msra.mxu0 %v4415
        %4520 = vmatprep.subr.bf16.mxu0 %v4420
        %4521 = vmatpush1.bf16.msra.mxu0 %v4419
        %4522 = vmatprep.subr.bf16.mxu0 0
        %4523 = vmatpush1.bf16.msra.mxu0 0
        %4524 = vmatprep.subr.bf16.mxu0 0
        %4525 = vmatpush1.bf16.msra.mxu0 0
        %4526 = vmatprep.subr.bf16.mxu0 0
        %4527 = vmatpush1.bf16.msra.mxu0 0
        %4528 = vmatprep.subr.bf16.mxu0 0
        %4529 = vmatpush1.bf16.msra.mxu0 0
        %4530 = vmatprep.subr.bf16.mxu0 0
        %4531 = vmatpush1.bf16.msra.mxu0 0
        %4532 = vmatprep.subr.bf16.mxu0 0
        %4533 = vmatpush1.bf16.msra.mxu0 0
        %4534 = vmatprep.subr.bf16.mxu0 0
        %4535 = vmatpush1.bf16.msra.mxu0 0
        %4536 = vmatprep.subr.bf16.mxu0 0
        %4537 = vmatpush1.bf16.msra.mxu0 0
        %4538 = vmatprep.mubr.bf16.mxu0 0
        %4539 = vmatmul.mubr.bf16.gmra.mrb[0].mxu0 %v4237
        %v4540 = vpop.f32.mrb[0].mxu0
        %v4541 = vadd.f32 %v4284, %v4540
        %v4542 = vpop.f32.mrb[0].mxu0
        %v4543 = vadd.f32 %v4288, %v4542
        %v4544 = vpop.f32.mrb[0].mxu0
        %v4545 = vadd.f32 %v4284, %v4544
        %v4546 = vpop.f32.mrb[0].mxu0
        %v4547 = vadd.f32 %v4288, %v4546
        %4548 = vmatprep.mubr.bf16.mxu0 0
        %4549 = vmatmul.mubr.bf16.gmra.mrb[0].mxu0 %v4238
        %v4550 = vpop.f32.mrb[0].mxu0
        %v4551 = vadd.f32 %v4284, %v4550
        %v4552 = vpop.f32.mrb[0].mxu0
        %v4553 = vadd.f32 %v4288, %v4552
        %v4554 = vpop.f32.mrb[0].mxu0
        %v4555 = vadd.f32 %v4284, %v4554
        %v4556 = vpop.f32.mrb[0].mxu0
        %v4557 = vadd.f32 %v4288, %v4556
        %4558 = vdwg.mxu0
        %v4559 = vmul.f32 %v4488, 0.5
        %v4560 = vmul.f32 %v4490, 0.5
        %v4561 = vmul.f32 %v4541, 0.5
        %v4562 = vmul.f32 %v4543, 0.5
        %v4563 = vmul.f32 %v4492, 0.5
        %v4564 = vmul.f32 %v4494, 0.5
        %v4565 = vmul.f32 %v4545, 0.5
        %v4566 = vmul.f32 %v4547, 0.5
        %v4567 = vmul.f32 %v4498, 0.5
        %v4568 = vmul.f32 %v4500, 0.5
        %v4569 = vmul.f32 %v4551, 0.5
        %v4570 = vmul.f32 %v4553, 0.5
        %v4571 = vmul.f32 %v4502, 0.5
        %v4572 = vmul.f32 %v4504, 0.5
        %v4573 = vmul.f32 %v4555, 0.5
        %v4574 = vmul.f32 %v4557, 0.5
        %v4575 = vmul.f32 %v4488, 0.70710677
        %v4576 = vmul.f32 %v4490, 0.70710677
        %v4577 = vmul.f32 %v4541, 0.70710677
        %v4578 = vmul.f32 %v4543, 0.70710677
        %v4579 = vmul.f32 %v4492, 0.70710677
        %v4580 = vmul.f32 %v4494, 0.70710677
        %v4581 = vmul.f32 %v4545, 0.70710677
        %v4582 = vmul.f32 %v4547, 0.70710677
        %v4583 = vmul.f32 %v4498, 0.70710677
        %v4584 = vmul.f32 %v4500, 0.70710677
        %v4585 = vmul.f32 %v4551, 0.70710677
        %v4586 = vmul.f32 %v4553, 0.70710677
        %v4587 = vmul.f32 %v4502, 0.70710677
        %v4588 = vmul.f32 %v4504, 0.70710677
        %v4589 = vmul.f32 %v4555, 0.70710677
        %v4590 = vmul.f32 %v4557, 0.70710677
        %v4591 = verf.f32.pop %v4575
        %v4592 = verf.f32.pop %v4576
        %v4593 = verf.f32.pop %v4577
        %v4594 = verf.f32.pop %v4578
        %v4595 = verf.f32.pop %v4579
        %v4596 = verf.f32.pop %v4580
        %v4597 = verf.f32.pop %v4581
        %v4598 = verf.f32.pop %v4582
        %v4599 = verf.f32.pop %v4583
        %v4600 = verf.f32.pop %v4584
        %v4601 = verf.f32.pop %v4585
        %v4602 = verf.f32.pop %v4586
        %v4603 = verf.f32.pop %v4587
        %v4604 = verf.f32.pop %v4588
        %v4605 = verf.f32.pop %v4589
        %v4606 = verf.f32.pop %v4590
        %v4607 = vadd.f32 %v4591, 1.0
        %v4608 = vadd.f32 %v4592, 1.0
        %v4609 = vadd.f32 %v4593, 1.0
        %v4610 = vadd.f32 %v4594, 1.0
        %v4611 = vadd.f32 %v4595, 1.0
        %v4612 = vadd.f32 %v4596, 1.0
        %v4613 = vadd.f32 %v4597, 1.0
        %v4614 = vadd.f32 %v4598, 1.0
        %v4615 = vadd.f32 %v4599, 1.0
        %v4616 = vadd.f32 %v4600, 1.0
        %v4617 = vadd.f32 %v4601, 1.0
        %v4618 = vadd.f32 %v4602, 1.0
        %v4619 = vadd.f32 %v4603, 1.0
        %v4620 = vadd.f32 %v4604, 1.0
        %v4621 = vadd.f32 %v4605, 1.0
        %v4622 = vadd.f32 %v4606, 1.0
        %v4623 = vmul.f32 %v4559, %v4607
        %v4624 = vmul.f32 %v4560, %v4608
        %v4625 = vmul.f32 %v4561, %v4609
        %v4626 = vmul.f32 %v4562, %v4610
        %v4627 = vmul.f32 %v4563, %v4611
        %v4628 = vmul.f32 %v4564, %v4612
        %v4629 = vmul.f32 %v4565, %v4613
        %v4630 = vmul.f32 %v4566, %v4614
        %v4631 = vmul.f32 %v4567, %v4615
        %v4632 = vmul.f32 %v4568, %v4616
        %v4633 = vmul.f32 %v4569, %v4617
        %v4634 = vmul.f32 %v4570, %v4618
        %v4635 = vmul.f32 %v4571, %v4619
        %v4636 = vmul.f32 %v4572, %v4620
        %v4637 = vmul.f32 %v4573, %v4621
        %v4638 = vmul.f32 %v4574, %v4622
        %v4639 = vpack.c.bf16 %v4627, %v4623
        %v4640 = vpack.c.bf16 %v4628, %v4624
        %v4641 = vpack.c.bf16 %v4629, %v4625
        %v4642 = vpack.c.bf16 %v4630, %v4626
        %v4643 = vpack.c.bf16 %v4635, %v4631
        %v4644 = vpack.c.bf16 %v4636, %v4632
        %v4645 = vpack.c.bf16 %v4637, %v4633
        %v4646 = vpack.c.bf16 %v4638, %v4634
        %v4647 = vld [vmem:[#allocation14] sm:$0xf]
        %v4648 = vld [vmem:[#allocation14 + $0x4] sm:$0xf]
        %v4649 = vld [vmem:[#allocation14 + $0x8] sm:$0xf]
        %v4650 = vld [vmem:[#allocation14 + $0xc] sm:$0xf]
        %v4651 = vld [vmem:[#allocation14 + $0x10] sm:$0xf]
        %v4652 = vld [vmem:[#allocation14 + $0x14] sm:$0xf]
        %v4653 = vld [vmem:[#allocation14 + $0x18] sm:$0xf]
        %v4654 = vld [vmem:[#allocation14 + $0x1c] sm:$0xf]
        %v4655 = vld [vmem:[#allocation14 + $0x20] sm:$0xf]
        %v4656 = vld [vmem:[#allocation14 + $0x24] sm:$0xf]
        %v4657 = vld [vmem:[#allocation14 + $0x28] sm:$0xf]
        %v4658 = vld [vmem:[#allocation14 + $0x2c] sm:$0xf]
        %v4659 = vld [vmem:[#allocation14 + $0x30] sm:$0xf]
        %v4660 = vld [vmem:[#allocation14 + $0x34] sm:$0xf]
        %v4661 = vld [vmem:[#allocation14 + $0x38] sm:$0xf]
        %v4662 = vld [vmem:[#allocation14 + $0x3c] sm:$0xf]
        %v4663 = vld [vmem:[#allocation14 + $0x40] sm:$0xf]
        %v4664 = vld [vmem:[#allocation14 + $0x44] sm:$0xf]
        %v4665 = vld [vmem:[#allocation14 + $0x48] sm:$0xf]
        %v4666 = vld [vmem:[#allocation14 + $0x4c] sm:$0xf]
        %v4667 = vld [vmem:[#allocation14 + $0x50] sm:$0xf]
        %v4668 = vld [vmem:[#allocation14 + $0x54] sm:$0xf]
        %v4669 = vld [vmem:[#allocation14 + $0x58] sm:$0xf]
        %v4670 = vld [vmem:[#allocation14 + $0x5c] sm:$0xf]
        %v4671 = vld [vmem:[#allocation14 + $0x60] sm:$0xf]
        %v4672 = vld [vmem:[#allocation14 + $0x64] sm:$0xf]
        %v4673 = vld [vmem:[#allocation14 + $0x68] sm:$0xf]
        %v4674 = vld [vmem:[#allocation14 + $0x6c] sm:$0xf]
        %v4675 = vld [vmem:[#allocation14 + $0x70] sm:$0xf]
        %v4676 = vld [vmem:[#allocation14 + $0x74] sm:$0xf]
        %v4677 = vld [vmem:[#allocation14 + $0x78] sm:$0xf]
        %v4678 = vld [vmem:[#allocation14 + $0x7c] sm:$0xf]
        %v4679 = vld [vmem:[#allocation14 + $0x80] sm:$0xf]
        %v4680 = vld [vmem:[#allocation14 + $0x84] sm:$0xf]
        %v4681 = vld [vmem:[#allocation14 + $0x88] sm:$0xf]
        %v4682 = vld [vmem:[#allocation14 + $0x8c] sm:$0xf]
        %v4683 = vld [vmem:[#allocation14 + $0x90] sm:$0xf]
        %v4684 = vld [vmem:[#allocation14 + $0x94] sm:$0xf]
        %v4685 = vld [vmem:[#allocation14 + $0x98] sm:$0xf]
        %v4686 = vld [vmem:[#allocation14 + $0x9c] sm:$0xf]
        %v4687 = vld [vmem:[#allocation14 + $0xa0] sm:$0xf]
        %v4688 = vld [vmem:[#allocation14 + $0xa4] sm:$0xf]
        %v4689 = vld [vmem:[#allocation14 + $0xa8] sm:$0xf]
        %v4690 = vld [vmem:[#allocation14 + $0xac] sm:$0xf]
        %v4691 = vld [vmem:[#allocation14 + $0xb0] sm:$0xf]
        %v4692 = vld [vmem:[#allocation14 + $0xb4] sm:$0xf]
        %v4693 = vld [vmem:[#allocation14 + $0xb8] sm:$0xf]
        %v4694 = vld [vmem:[#allocation14 + $0xbc] sm:$0xf]
        %v4695 = vld [vmem:[#allocation14 + $0xc0] sm:$0xf]
        %v4696 = vld [vmem:[#allocation14 + $0xc4] sm:$0xf]
        %v4697 = vld [vmem:[#allocation14 + $0xc8] sm:$0xf]
        %v4698 = vld [vmem:[#allocation14 + $0xcc] sm:$0xf]
        %v4699 = vld [vmem:[#allocation14 + $0xd0] sm:$0xf]
        %v4700 = vld [vmem:[#allocation14 + $0xd4] sm:$0xf]
        %v4701 = vld [vmem:[#allocation14 + $0xd8] sm:$0xf]
        %v4702 = vld [vmem:[#allocation14 + $0xdc] sm:$0xf]
        %v4703 = vld [vmem:[#allocation14 + $0xe0] sm:$0xf]
        %v4704 = vld [vmem:[#allocation14 + $0xe4] sm:$0xf]
        %v4705 = vld [vmem:[#allocation14 + $0xe8] sm:$0xf]
        %v4706 = vld [vmem:[#allocation14 + $0xec] sm:$0xf]
        %v4707 = vld [vmem:[#allocation14 + $0xf0] sm:$0xf]
        %v4708 = vld [vmem:[#allocation14 + $0xf4] sm:$0xf]
        %v4709 = vld [vmem:[#allocation14 + $0xf8] sm:$0xf]
        %v4710 = vld [vmem:[#allocation14 + $0xfc] sm:$0xf]
        %v4711 = vld [vmem:[%s18] sm:$0x1]
        %v4713 = vlaneseq
        %v4714 = vshrl.u32 %v4713, 7
        %v4715 = vsub.s32 0, %v4714
        %v4716 = vrot.slane %v4711, %v4715
        %v4782 = vunpack.c.l.b16 %v4647
        %v4783 = vunpack.c.l.b16 %v4648
        %v4784 = vunpack.c.l.b16 %v4649
        %v4785 = vunpack.c.l.b16 %v4650
        %v4786 = vunpack.c.l.b16 %v4651
        %v4787 = vunpack.c.l.b16 %v4652
        %v4788 = vunpack.c.l.b16 %v4653
        %v4789 = vunpack.c.l.b16 %v4654
        %v4790 = vunpack.c.l.b16 %v4655
        %v4791 = vunpack.c.l.b16 %v4656
        %v4792 = vunpack.c.l.b16 %v4657
        %v4793 = vunpack.c.l.b16 %v4658
        %v4794 = vunpack.c.l.b16 %v4659
        %v4795 = vunpack.c.l.b16 %v4660
        %v4796 = vunpack.c.l.b16 %v4661
        %v4797 = vunpack.c.l.b16 %v4662
        %v4798 = vunpack.c.l.b16 %v4663
        %v4799 = vunpack.c.l.b16 %v4664
        %v4800 = vunpack.c.l.b16 %v4665
        %v4801 = vunpack.c.l.b16 %v4666
        %v4802 = vunpack.c.l.b16 %v4667
        %v4803 = vunpack.c.l.b16 %v4668
        %v4804 = vunpack.c.l.b16 %v4669
        %v4805 = vunpack.c.l.b16 %v4670
        %v4806 = vunpack.c.l.b16 %v4671
        %v4807 = vunpack.c.l.b16 %v4672
        %v4808 = vunpack.c.l.b16 %v4673
        %v4809 = vunpack.c.l.b16 %v4674
        %v4810 = vunpack.c.l.b16 %v4675
        %v4811 = vunpack.c.l.b16 %v4676
        %v4812 = vunpack.c.l.b16 %v4677
        %v4813 = vunpack.c.l.b16 %v4678
        %v4814 = vunpack.c.l.b16 %v4679
        %v4815 = vunpack.c.l.b16 %v4680
        %v4816 = vunpack.c.l.b16 %v4681
        %v4817 = vunpack.c.l.b16 %v4682
        %v4818 = vunpack.c.l.b16 %v4683
        %v4819 = vunpack.c.l.b16 %v4684
        %v4820 = vunpack.c.l.b16 %v4685
        %v4821 = vunpack.c.l.b16 %v4686
        %v4822 = vunpack.c.l.b16 %v4687
        %v4823 = vunpack.c.l.b16 %v4688
        %v4824 = vunpack.c.l.b16 %v4689
        %v4825 = vunpack.c.l.b16 %v4690
        %v4826 = vunpack.c.l.b16 %v4691
        %v4827 = vunpack.c.l.b16 %v4692
        %v4828 = vunpack.c.l.b16 %v4693
        %v4829 = vunpack.c.l.b16 %v4694
        %v4830 = vunpack.c.l.b16 %v4695
        %v4831 = vunpack.c.l.b16 %v4696
        %v4832 = vunpack.c.l.b16 %v4697
        %v4833 = vunpack.c.l.b16 %v4698
        %v4834 = vunpack.c.l.b16 %v4699
        %v4835 = vunpack.c.l.b16 %v4700
        %v4836 = vunpack.c.l.b16 %v4701
        %v4837 = vunpack.c.l.b16 %v4702
        %v4838 = vunpack.c.l.b16 %v4703
        %v4839 = vunpack.c.l.b16 %v4704
        %v4840 = vunpack.c.l.b16 %v4705
        %v4841 = vunpack.c.l.b16 %v4706
        %v4842 = vunpack.c.l.b16 %v4707
        %v4843 = vunpack.c.l.b16 %v4708
        %v4844 = vunpack.c.l.b16 %v4709
        %v4845 = vunpack.c.l.b16 %v4710
        %v4846 = vpack.c.b16 %v4783, %v4782
        %v4847 = vpack.c.b16 %v4785, %v4784
        %v4848 = vpack.c.b16 %v4787, %v4786
        %v4849 = vpack.c.b16 %v4789, %v4788
        %v4850 = vpack.c.b16 %v4791, %v4790
        %v4851 = vpack.c.b16 %v4793, %v4792
        %v4852 = vpack.c.b16 %v4795, %v4794
        %v4853 = vpack.c.b16 %v4797, %v4796
        %v4854 = vpack.c.b16 %v4799, %v4798
        %v4855 = vpack.c.b16 %v4801, %v4800
        %v4856 = vpack.c.b16 %v4803, %v4802
        %v4857 = vpack.c.b16 %v4805, %v4804
        %v4858 = vpack.c.b16 %v4807, %v4806
        %v4859 = vpack.c.b16 %v4809, %v4808
        %v4860 = vpack.c.b16 %v4811, %v4810
        %v4861 = vpack.c.b16 %v4813, %v4812
        %v4862 = vpack.c.b16 %v4815, %v4814
        %v4863 = vpack.c.b16 %v4817, %v4816
        %v4864 = vpack.c.b16 %v4819, %v4818
        %v4865 = vpack.c.b16 %v4821, %v4820
        %v4866 = vpack.c.b16 %v4823, %v4822
        %v4867 = vpack.c.b16 %v4825, %v4824
        %v4868 = vpack.c.b16 %v4827, %v4826
        %v4869 = vpack.c.b16 %v4829, %v4828
        %v4870 = vpack.c.b16 %v4831, %v4830
        %v4871 = vpack.c.b16 %v4833, %v4832
        %v4872 = vpack.c.b16 %v4835, %v4834
        %v4873 = vpack.c.b16 %v4837, %v4836
        %v4874 = vpack.c.b16 %v4839, %v4838
        %v4875 = vpack.c.b16 %v4841, %v4840
        %v4876 = vpack.c.b16 %v4843, %v4842
        %v4877 = vpack.c.b16 %v4845, %v4844
        %4910 = vmatprep.subr.bf16.mxu0 0
        %4911 = vmatpush1.bf16.msra.mxu0 %v4846
        %4912 = vmatprep.subr.bf16.mxu0 0
        %4913 = vmatpush1.bf16.msra.mxu0 %v4847
        %4914 = vmatprep.subr.bf16.mxu0 0
        %4915 = vmatpush1.bf16.msra.mxu0 %v4848
        %4916 = vmatprep.subr.bf16.mxu0 0
        %4917 = vmatpush1.bf16.msra.mxu0 %v4849
        %4918 = vmatprep.subr.bf16.mxu0 0
        %4919 = vmatpush1.bf16.msra.mxu0 %v4850
        %4920 = vmatprep.subr.bf16.mxu0 0
        %4921 = vmatpush1.bf16.msra.mxu0 %v4851
        %4922 = vmatprep.subr.bf16.mxu0 0
        %4923 = vmatpush1.bf16.msra.mxu0 %v4852
        %4924 = vmatprep.subr.bf16.mxu0 0
        %4925 = vmatpush1.bf16.msra.mxu0 %v4853
        %4926 = vmatprep.subr.bf16.mxu0 0
        %4927 = vmatpush1.bf16.msra.mxu0 %v4854
        %4928 = vmatprep.subr.bf16.mxu0 0
        %4929 = vmatpush1.bf16.msra.mxu0 %v4855
        %4930 = vmatprep.subr.bf16.mxu0 0
        %4931 = vmatpush1.bf16.msra.mxu0 %v4856
        %4932 = vmatprep.subr.bf16.mxu0 0
        %4933 = vmatpush1.bf16.msra.mxu0 %v4857
        %4934 = vmatprep.subr.bf16.mxu0 0
        %4935 = vmatpush1.bf16.msra.mxu0 %v4858
        %4936 = vmatprep.subr.bf16.mxu0 0
        %4937 = vmatpush1.bf16.msra.mxu0 %v4859
        %4938 = vmatprep.subr.bf16.mxu0 0
        %4939 = vmatpush1.bf16.msra.mxu0 %v4860
        %4940 = vmatprep.subr.bf16.mxu0 0
        %4941 = vmatpush1.bf16.msra.mxu0 %v4861
        %4942 = vmatprep.mubr.bf16.mxu0 %v4640
        %4943 = vmatmul.mubr.bf16.gmra.mrb[0].mxu0 %v4639
        %v4944 = vpop.f32.mrb[0].mxu0
        %v4945 = vadd.f32 %v4716, %v4944
        %v4946 = vpop.f32.mrb[0].mxu0
        %v4947 = vpop.f32.mrb[0].mxu0
        %v4948 = vadd.f32 %v4716, %v4947
        %v4949 = vpop.f32.mrb[0].mxu0
        %4950 = vmatprep.mubr.bf16.mxu0 %v4644
        %4951 = vmatmul.mubr.bf16.gmra.mrb[0].mxu0 %v4643
        %v4952 = vpop.f32.mrb[0].mxu0
        %v4953 = vadd.f32 %v4716, %v4952
        %v4954 = vpop.f32.mrb[0].mxu0
        %v4955 = vpop.f32.mrb[0].mxu0
        %v4956 = vadd.f32 %v4716, %v4955
        %v4957 = vpop.f32.mrb[0].mxu0
        %4958 = vdwg.mxu0
        %4959 = vmatprep.subr.bf16.mxu0 0
        %4960 = vmatpush1.bf16.msra.mxu0 %v4862
        %4961 = vmatprep.subr.bf16.mxu0 0
        %4962 = vmatpush1.bf16.msra.mxu0 %v4863
        %4963 = vmatprep.subr.bf16.mxu0 0
        %4964 = vmatpush1.bf16.msra.mxu0 %v4864
        %4965 = vmatprep.subr.bf16.mxu0 0
        %4966 = vmatpush1.bf16.msra.mxu0 %v4865
        %4967 = vmatprep.subr.bf16.mxu0 0
        %4968 = vmatpush1.bf16.msra.mxu0 %v4866
        %4969 = vmatprep.subr.bf16.mxu0 0
        %4970 = vmatpush1.bf16.msra.mxu0 %v4867
        %4971 = vmatprep.subr.bf16.mxu0 0
        %4972 = vmatpush1.bf16.msra.mxu0 %v4868
        %4973 = vmatprep.subr.bf16.mxu0 0
        %4974 = vmatpush1.bf16.msra.mxu0 %v4869
        %4975 = vmatprep.subr.bf16.mxu0 0
        %4976 = vmatpush1.bf16.msra.mxu0 %v4870
        %4977 = vmatprep.subr.bf16.mxu0 0
        %4978 = vmatpush1.bf16.msra.mxu0 %v4871
        %4979 = vmatprep.subr.bf16.mxu0 0
        %4980 = vmatpush1.bf16.msra.mxu0 %v4872
        %4981 = vmatprep.subr.bf16.mxu0 0
        %4982 = vmatpush1.bf16.msra.mxu0 %v4873
        %4983 = vmatprep.subr.bf16.mxu0 0
        %4984 = vmatpush1.bf16.msra.mxu0 %v4874
        %4985 = vmatprep.subr.bf16.mxu0 0
        %4986 = vmatpush1.bf16.msra.mxu0 %v4875
        %4987 = vmatprep.subr.bf16.mxu0 0
        %4988 = vmatpush1.bf16.msra.mxu0 %v4876
        %4989 = vmatprep.subr.bf16.mxu0 0
        %4990 = vmatpush1.bf16.msra.mxu0 %v4877
        %4991 = vmatprep.mubr.bf16.mxu0 %v4642
        %4992 = vmatmul.mubr.bf16.gmra.mrb[0].mxu0 %v4641
        %v4993 = vpop.f32.mrb[0].mxu0
        %v4994 = vadd.f32 %v4945, %v4993
        %v4995 = vpop.f32.mrb[0].mxu0
        %v4996 = vpop.f32.mrb[0].mxu0
        %v4997 = vadd.f32 %v4948, %v4996
        %v4998 = vpop.f32.mrb[0].mxu0
        %4999 = vmatprep.mubr.bf16.mxu0 %v4646
        %5000 = vmatmul.mubr.bf16.gmra.mrb[0].mxu0 %v4645
        %v5001 = vpop.f32.mrb[0].mxu0
        %v5002 = vadd.f32 %v4953, %v5001
        %v5003 = vpop.f32.mrb[0].mxu0
        %v5004 = vpop.f32.mrb[0].mxu0
        %v5005 = vadd.f32 %v4956, %v5004
        %v5006 = vpop.f32.mrb[0].mxu0
        %5007 = vdwg.mxu0
        %v5008 = vadd.f32 %v4167, %v4994
        %v5009 = vadd.f32 %v4168, %v4997
        %v5010 = vadd.f32 %v4169, %v5002
        %v5011 = vadd.f32 %v4170, %v5005
        %5012 = vst [vmem:[%s741] sm:$0xff] %v5008
        %5013 = vst [vmem:[%s741 + $0x8] sm:$0xff] %v5009
        %5014 = vst [vmem:[%s741 + $0x10] sm:$0xff] %v5010
        %5015 = vst [vmem:[%s741 + $0x18] sm:$0xff] %v5011
        %s5016 = sand.u32 %s457, 1
        %s5017 = scalar_lea.sflag [#allocation4], %s5016
        %s5018 = sand.u32 %s457, 1
        %s5019 = smul.addr %s5018, 32
        %s5020 = scalar_lea.vmem [#allocation16], %s5019
        // Predicated region
        $region129: #{tpu_custom_call.1} parent=95 // pred_check
          %p5021 = pneg %p467
        $region130: #{tpu_custom_call.1} parent=95 // pred_check_branch
          %5023 = sbr.rel (%p5021) target = $region132
        $region131: #{tpu_custom_call.1} parent=95 // pred_region
          %s5024 = smul.u32 2, %s40
          %s5026 = ssub.s32 512, 512
          %5027 = vsyncadd %s5017, %s5026
          %s5028 = smul.addr %s5024, 2
          %s5029 = smul.addr %s5028, 128
          %s5030 = scalar_lea.hbm %s19, %s5029
          %s5031 = sshll.u32 %s5020, 4
          %s5032 = int_to_ptr.vmem [resolvable:$true] %s5031
          %5037 = dma.vmem_to_hbm [thread:$0]  %s5032, 512, %s5030, %s5017, 128, 128, 8
        $region132: #{tpu_custom_call.1} parent=95 // pred_fallthru
          _
      $region96: #{tpu_custom_call.1} parent=5 // pred_fallthru
        _
      %p5038 = scmp.le.s32.totalorder 2, %s35
      // Predicated region
      $region133: #{tpu_custom_call.1} parent=5 // pred_check
        %p5039 = pneg %p5038
      $region134: #{tpu_custom_call.1} parent=5 // pred_check_branch
        %5041 = sbr.rel (%p5039) target = $region136
      $region135: #{tpu_custom_call.1} parent=5 // pred_region
        %s5042 = ssub.s32 %s35, 2
        // Predicated region
        $region137: #{tpu_custom_call.1} parent=135 // pred_check
          %p5043 = pneg %p473
        $region138: #{tpu_custom_call.1} parent=135 // pred_check_branch
          %5045 = sbr.rel (%p5043) target = $region140
        $region139: #{tpu_custom_call.1} parent=135 // pred_region
          %s5046 = sand.u32 %s458, 1
          %s5047 = scalar_lea.sflag [#allocation4], %s5046
          %s5048 = sand.u32 %s458, 1
          %s5049 = smul.addr %s5048, 32
          %s5050 = scalar_lea.vmem [#allocation16], %s5049
          %5051 = dma.done %s5047, 512
        $region140: #{tpu_custom_call.1} parent=135 // pred_fallthru
          _
      $region136: #{tpu_custom_call.1} parent=5 // pred_fallthru
        _
    $region6: #{tpu_custom_call.1} parent=1 // loop_footer
      %s39 = sadd.s32 1, %s35
    $region7: #{tpu_custom_call.1} parent=1 // loop_footer_branch
      %34 = sbr.rel target = $region3
    $region8: #{tpu_custom_call.1} parent=1 // loop_exit
      _
    %5052 = vsyncpa [#allocation3], 1
    %s5053 = scalar_lea.sflag [#allocation3], 1
    %5054 = vsyncpa %s5053, 1
    %5055 = vsyncpa [#allocation6], 1
    %5056 = vsyncpa [#allocation9], 1
    %5057 = vsyncpa [#allocation12], 1
    %5058 = vsyncpa [#allocation15], 1
    %5059 = vsyncpa [#allocation4], 1
    %s5060 = scalar_lea.sflag [#allocation4], 1
    %5061 = vsyncpa %s5060, 1

</llo_original>
